<compile_context>
chip_gen: v6e
topology: v6e:2x2x1
jax: 0.10.0
libtpu: 0.0.40
codegen_flags: <defaults>
</compile_context>

<pallas_src>
import functools
import math

import jax
import jax.numpy as jnp
from jax.experimental import pallas as pl
from jax.experimental.pallas import tpu as pltpu

EPS = 1e-5
NEG_INF = -1e30


def _rmsnorm(x, w):
    var = jnp.mean(x * x, axis=-1, keepdims=True)
    return x * jax.lax.rsqrt(var + EPS) * w


# ---------------------------------------------------------------------------
# Single fused kernel: obs_proj + L transformer blocks + pooling head
# ---------------------------------------------------------------------------
def _fwd_kernel(obs_ref, ow_ref, obp_ref, bias_ref,
                ln1_ref, wq_ref, bq_ref, wk_ref, bk_ref, wv_ref, bv_ref,
                wo_ref, bo_ref, ln2_ref, w1_ref, b1_ref, w2_ref, b2_ref,
                lnf_ref, pw_ref, pb_ref, hw_ref,
                o_ref, *, num_heads, num_layers, batch, seq):
    B, S, H, L = batch, seq, num_heads, num_layers
    N = B * S
    F = obs_ref.shape[-1]
    D = ow_ref.shape[-1]
    dh = D // H
    scale = 1.0 / math.sqrt(dh)

    # ---- obs projection; (linear bias + position embedding) precomputed in wrapper ----
    obs = obs_ref[...].reshape(N, F).astype(jnp.bfloat16)
    x = jnp.dot(obs, ow_ref[...], preferred_element_type=jnp.float32) + obp_ref[...]

    attn_bias = bias_ref[...]          # (N, N): 0 where attended, -1e30 elsewhere

    for li in range(L):                # static unroll; all layer weights VMEM-resident
        # ---- pre-norm causal multi-head self-attention ----
        h = _rmsnorm(x, ln1_ref[li]).astype(jnp.bfloat16)                  # (N, D)
        q = jnp.stack([jnp.dot(h, wq_ref[li, hi], preferred_element_type=jnp.float32)
                       + bq_ref[li, hi] for hi in range(H)], axis=0)       # (H, N, dh)
        k = jnp.stack([jnp.dot(h, wk_ref[li, hi], preferred_element_type=jnp.float32)
                       + bk_ref[li, hi] for hi in range(H)], axis=0)
        v = jnp.stack([jnp.dot(h, wv_ref[li, hi], preferred_element_type=jnp.float32)
                       + bv_ref[li, hi] for hi in range(H)], axis=0)

        s = jnp.einsum('hqd,hkd->hqk', q, k,
                       preferred_element_type=jnp.float32) * scale + attn_bias
        s = s - jnp.max(s, axis=-1, keepdims=True)
        p = jnp.exp(s)                                                     # f32 softmax
        p = p * pl.reciprocal(jnp.sum(p, axis=-1, keepdims=True), approx=True)
        ctx = jnp.einsum('hqk,hkd->hqd', p, v,
                         preferred_element_type=jnp.float32)               # (H, N, dh)

        # output projection via per-head weight slabs (no lane-axis concat of heads)
        attn = bo_ref[li]                                                  # (1, D)
        for hi in range(H):
            attn = attn + jnp.dot(ctx[hi].astype(jnp.bfloat16), wo_ref[li, hi],
                                  preferred_element_type=jnp.float32)
        x = x + attn                            # dropout = identity at inference

        # ---- pre-norm feed-forward ----
        h2 = _rmsnorm(x, ln2_ref[li]).astype(jnp.bfloat16)
        ff = jnp.dot(h2, w1_ref[li], preferred_element_type=jnp.float32) + b1_ref[li]
        ff = jax.nn.gelu(ff)
        ff = jnp.dot(ff.astype(jnp.bfloat16), w2_ref[li],
                     preferred_element_type=jnp.float32) + b2_ref[li]
        x = x + ff

    # ---- final RMSNorm + attention pooling + lm_head ----
    xb = _rmsnorm(x, lnf_ref[...]).reshape(B, S, D)
    logits = jnp.sum(xb * pw_ref[...], axis=-1, keepdims=True) + pb_ref[...]   # (B, S, 1)
    logits = logits - jnp.max(logits, axis=1, keepdims=True)
    w = jnp.exp(logits)
    w = w * pl.reciprocal(jnp.sum(w, axis=1, keepdims=True), approx=True)
    pooled = jnp.sum(w * xb, axis=1)                                           # (B, D)
    o_ref[...] = jnp.dot(pooled.astype(jnp.bfloat16), hw_ref[...],
                         preferred_element_type=jnp.float32)


# ---------------------------------------------------------------------------
# Wrapper
# ---------------------------------------------------------------------------
def transformer_forward(params, obs, *, num_heads, objective):
    B, S, F = obs.shape
    D = params["obs_proj_w"].shape[1]
    L, H = params["wq"].shape[0], params["wq"].shape[1]
    dh = params["wq"].shape[3]
    d_ff = params["w1"].shape[-1]
    A = params["lm_head_w"].shape[1]
    N = B * S
    assert H == num_heads and H * dh == D

    # Constants folded outside the kernel (one broadcast add inside instead of two,
    # and no in-kernel mask construction).
    obp = jnp.tile(params["obs_proj_b"] + params["pos_emb"], (B, 1))            # (N, D)
    rows = jnp.arange(N)
    same_batch = (rows[:, None] // S) == (rows[None, :] // S)
    causal = rows[None, :] <= rows[:, None]
    attn_bias = jnp.where(same_batch & causal, 0.0, NEG_INF).astype(jnp.float32)

    full = lambda shape: pl.BlockSpec(shape, lambda *_: (0,) * len(shape))
    kernel = functools.partial(_fwd_kernel, num_heads=H, num_layers=L, batch=B, seq=S)

    out = pl.pallas_call(
        kernel,
        grid=(1,),
        in_specs=[
            full((B, S, F)),                               # obs
            full((F, D)),                                  # obs_proj_w (bf16)
            full((N, D)),                                  # bias + position embedding
            full((N, N)),                                  # additive block-causal mask
            full((L, 1, D)),                               # ln1
            full((L, H, D, dh)), full((L, H, 1, dh)),      # wq, bq
            full((L, H, D, dh)), full((L, H, 1, dh)),      # wk, bk
            full((L, H, D, dh)), full((L, H, 1, dh)),      # wv, bv
            full((L, H, dh, D)), full((L, 1, D)),          # wo, bo
            full((L, 1, D)),                               # ln2
            full((L, D, d_ff)), full((L, 1, d_ff)),        # w1, b1
            full((L, d_ff, D)), full((L, 1, D)),           # w2, b2
            full((1, D)),                                  # ln_final
            full((1, D)), full((1, 1)),                    # pooling weight / bias
            full((D, A)),                                  # lm_head (bf16)
        ],
        out_specs=full((B, A)),
        out_shape=jax.ShapeDtypeStruct((B, A), jnp.float32),
        compiler_params=pltpu.CompilerParams(dimension_semantics=("arbitrary",)),
    )(obs, params["obs_proj_w"], obp, attn_bias,
      params["ln1"], params["wq"], params["bq"], params["wk"], params["bk"],
      params["wv"], params["bv"], params["wo"], params["bo"],
      params["ln2"], params["w1"], params["b1"], params["w2"], params["b2"],
      params["ln_final"], params["pool_w"], params["pool_b"], params["lm_head_w"])

    if objective == "regression":
        out = jax.nn.sigmoid(out).squeeze(-1)
    return out


# ---------------------------------------------------------------------------
# Deterministic parameter init (nn.Linear-style uniform), stacked per layer,
# weight matrices cast to bf16, Q/K/V/O pre-split per head.
# ---------------------------------------------------------------------------
def init_params(key, obs_size, action_size, seq_len, d_model, d_ff, num_layers,
                num_heads, objective):
    dh = d_model // num_heads

    def dense(k, fan_in, fan_out):
        kw, kb = jax.random.split(k)
        bound = 1.0 / math.sqrt(fan_in)
        w = jax.random.uniform(kw, (fan_in, fan_out), jnp.float32, -bound, bound)
        b = jax.random.uniform(kb, (1, fan_out), jnp.float32, -bound, bound)
        return w, b

    def split_heads_in(w):      # (D, D) -> (H, D, dh)
        return jnp.transpose(w.reshape(d_model, num_heads, dh), (1, 0, 2))

    def split_heads_bias(b):    # (1, D) -> (H, 1, dh)
        return b.reshape(num_heads, 1, dh)

    keys = jax.random.split(key, 4 + num_layers)
    opw, opb = dense(keys[0], obs_size, d_model)
    pos = 0.02 * jax.random.normal(keys[1], (seq_len, d_model), jnp.float32)

    names = ("ln1", "wq", "bq", "wk", "bk", "wv", "bv", "wo", "bo",
             "ln2", "w1", "b1", "w2", "b2")
    stk = {n: [] for n in names}
    for li in range(num_layers):
        lk = jax.random.split(keys[4 + li], 6)
        wq, bq = dense(lk[0], d_model, d_model)
        wk, bk = dense(lk[1], d_model, d_model)
        wv, bv = dense(lk[2], d_model, d_model)
        wo, bo = dense(lk[3], d_model, d_model)
        w1, b1 = dense(lk[4], d_model, d_ff)
        w2, b2 = dense(lk[5], d_ff, d_model)
        stk["ln1"].append(jnp.ones((1, d_model), jnp.float32))
        stk["wq"].append(split_heads_in(wq)); stk["bq"].append(split_heads_bias(bq))
        stk["wk"].append(split_heads_in(wk)); stk["bk"].append(split_heads_bias(bk))
        stk["wv"].append(split_heads_in(wv)); stk["bv"].append(split_heads_bias(bv))
        stk["wo"].append(wo.reshape(num_heads, dh, d_model)); stk["bo"].append(bo)
        stk["ln2"].append(jnp.ones((1, d_model), jnp.float32))
        stk["w1"].append(w1); stk["b1"].append(b1)
        stk["w2"].append(w2); stk["b2"].append(b2)

    pool_w, pool_b = dense(keys[2], d_model, 1)      # AttentionPooling: Linear(D, 1)
    out_size = action_size if objective == "classification" else 1
    bound = 1.0 / math.sqrt(d_model)
    lm_w = jax.random.uniform(keys[3], (d_model, out_size), jnp.float32, -bound, bound)

    bf16 = lambda t: t.astype(jnp.bfloat16)
    return dict(
        obs_proj_w=bf16(opw), obs_proj_b=opb, pos_emb=pos,
        ln1=jnp.stack(stk["ln1"]),
        wq=bf16(jnp.stack(stk["wq"])), bq=jnp.stack(stk["bq"]),
        wk=bf16(jnp.stack(stk["wk"])), bk=jnp.stack(stk["bk"]),
        wv=bf16(jnp.stack(stk["wv"])), bv=jnp.stack(stk["bv"]),
        wo=bf16(jnp.stack(stk["wo"])), bo=jnp.stack(stk["bo"]),
        ln2=jnp.stack(stk["ln2"]),
        w1=bf16(jnp.stack(stk["w1"])), b1=jnp.stack(stk["b1"]),
        w2=bf16(jnp.stack(stk["w2"])), b2=jnp.stack(stk["b2"]),
        ln_final=jnp.ones((1, d_model), jnp.float32),
        pool_w=pool_w.T, pool_b=pool_b.reshape(1, 1),
        lm_head_w=bf16(lm_w))


if __name__ == "__main__":
    OBS_SIZE, ACTION_SIZE, SEQ_LEN, BATCH = 24, 6, 8, 2
    cfg = dict(d_model=32, num_heads=4, d_ff=64, num_layers=2)
    OBJECTIVE = "classification"

    key = jax.random.PRNGKey(0)
    kp, kx = jax.random.split(key)
    params = init_params(kp, OBS_SIZE, ACTION_SIZE, SEQ_LEN, cfg["d_model"],
                         cfg["d_ff"], cfg["num_layers"], cfg["num_heads"], OBJECTIVE)
    obs = jax.random.normal(kx, (BATCH, SEQ_LEN, OBS_SIZE), jnp.float32)

    out = transformer_forward(params, obs, num_heads=cfg["num_heads"],
                              objective=OBJECTIVE)
    out = jax.block_until_ready(out)
    assert out.shape == (BATCH, ACTION_SIZE), out.shape
    assert bool(jnp.all(jnp.isfinite(out)))
    print("KERNEL_OK")
</pallas_src>

<mosaic_0001>
module attributes {stable_mosaic.version = 11 : i64} {
  func.func @_fwd_kernel(%arg0: i32, %arg1: memref<2x8x24xf32, #tpu.memory_space<vmem>>, %arg2: memref<24x32xbf16, #tpu.memory_space<vmem>>, %arg3: memref<16x32xf32, #tpu.memory_space<vmem>>, %arg4: memref<16x16xf32, #tpu.memory_space<vmem>>, %arg5: memref<2x1x32xf32, #tpu.memory_space<vmem>>, %arg6: memref<2x4x32x8xbf16, #tpu.memory_space<vmem>>, %arg7: memref<2x4x1x8xf32, #tpu.memory_space<vmem>>, %arg8: memref<2x4x32x8xbf16, #tpu.memory_space<vmem>>, %arg9: memref<2x4x1x8xf32, #tpu.memory_space<vmem>>, %arg10: memref<2x4x32x8xbf16, #tpu.memory_space<vmem>>, %arg11: memref<2x4x1x8xf32, #tpu.memory_space<vmem>>, %arg12: memref<2x4x8x32xbf16, #tpu.memory_space<vmem>>, %arg13: memref<2x1x32xf32, #tpu.memory_space<vmem>>, %arg14: memref<2x1x32xf32, #tpu.memory_space<vmem>>, %arg15: memref<2x32x64xbf16, #tpu.memory_space<vmem>>, %arg16: memref<2x1x64xf32, #tpu.memory_space<vmem>>, %arg17: memref<2x64x32xbf16, #tpu.memory_space<vmem>>, %arg18: memref<2x1x32xf32, #tpu.memory_space<vmem>>, %arg19: memref<1x32xf32, #tpu.memory_space<vmem>>, %arg20: memref<1x32xf32, #tpu.memory_space<vmem>>, %arg21: memref<1x1xf32, #tpu.memory_space<vmem>>, %arg22: memref<32x6xbf16, #tpu.memory_space<vmem>>, %arg23: memref<2x6xf32, #tpu.memory_space<vmem>>) attributes {dimension_semantics = [#tpu.dimension_semantics<arbitrary>], iteration_bounds = array<i64: 1>, scalar_prefetch = 0 : i64, scratch_operands = 0 : i64, tpu.core_type = #tpu.core_type<tc>, window_params = [{pipeline_mode = #tpu.pipeline_mode<synchronous>, transform_indices = @transform_0, window_bounds = array<i64: 2, 8, 24>}, {pipeline_mode = #tpu.pipeline_mode<synchronous>, transform_indices = @transform_1, window_bounds = array<i64: 24, 32>}, {pipeline_mode = #tpu.pipeline_mode<synchronous>, transform_indices = @transform_2, window_bounds = array<i64: 16, 32>}, {pipeline_mode = #tpu.pipeline_mode<synchronous>, transform_indices = @transform_3, window_bounds = array<i64: 16, 16>}, {pipeline_mode = #tpu.pipeline_mode<synchronous>, transform_indices = @transform_4, window_bounds = array<i64: 2, 1, 32>}, {pipeline_mode = #tpu.pipeline_mode<synchronous>, transform_indices = @transform_5, window_bounds = array<i64: 2, 4, 32, 8>}, {pipeline_mode = #tpu.pipeline_mode<synchronous>, transform_indices = @transform_6, window_bounds = array<i64: 2, 4, 1, 8>}, {pipeline_mode = #tpu.pipeline_mode<synchronous>, transform_indices = @transform_7, window_bounds = array<i64: 2, 4, 32, 8>}, {pipeline_mode = #tpu.pipeline_mode<synchronous>, transform_indices = @transform_8, window_bounds = array<i64: 2, 4, 1, 8>}, {pipeline_mode = #tpu.pipeline_mode<synchronous>, transform_indices = @transform_9, window_bounds = array<i64: 2, 4, 32, 8>}, {pipeline_mode = #tpu.pipeline_mode<synchronous>, transform_indices = @transform_10, window_bounds = array<i64: 2, 4, 1, 8>}, {pipeline_mode = #tpu.pipeline_mode<synchronous>, transform_indices = @transform_11, window_bounds = array<i64: 2, 4, 8, 32>}, {pipeline_mode = #tpu.pipeline_mode<synchronous>, transform_indices = @transform_12, window_bounds = array<i64: 2, 1, 32>}, {pipeline_mode = #tpu.pipeline_mode<synchronous>, transform_indices = @transform_13, window_bounds = array<i64: 2, 1, 32>}, {pipeline_mode = #tpu.pipeline_mode<synchronous>, transform_indices = @transform_14, window_bounds = array<i64: 2, 32, 64>}, {pipeline_mode = #tpu.pipeline_mode<synchronous>, transform_indices = @transform_15, window_bounds = array<i64: 2, 1, 64>}, {pipeline_mode = #tpu.pipeline_mode<synchronous>, transform_indices = @transform_16, window_bounds = array<i64: 2, 64, 32>}, {pipeline_mode = #tpu.pipeline_mode<synchronous>, transform_indices = @transform_17, window_bounds = array<i64: 2, 1, 32>}, {pipeline_mode = #tpu.pipeline_mode<synchronous>, transform_indices = @transform_18, window_bounds = array<i64: 1, 32>}, {pipeline_mode = #tpu.pipeline_mode<synchronous>, transform_indices = @transform_19, window_bounds = array<i64: 1, 32>}, {pipeline_mode = #tpu.pipeline_mode<synchronous>, transform_indices = @transform_20, window_bounds = array<i64: 1, 1>}, {pipeline_mode = #tpu.pipeline_mode<synchronous>, transform_indices = @transform_21, window_bounds = array<i64: 32, 6>}, {pipeline_mode = #tpu.pipeline_mode<synchronous>, transform_indices = @transform_22, window_bounds = array<i64: 2, 6>}]} {
    %c0 = arith.constant 0 : index
    %c0_0 = arith.constant 0 : index
    %c0_1 = arith.constant 0 : index
    %0 = vector.load %arg1[%c0, %c0_0, %c0_1] : memref<2x8x24xf32, #tpu.memory_space<vmem>>, vector<2x8x24xf32>
    %1 = vector.shape_cast %0 : vector<2x8x24xf32> to vector<16x24xf32>
    %2 = arith.truncf %1 : vector<16x24xf32> to vector<16x24xbf16>
    %c0_2 = arith.constant 0 : index
    %c0_3 = arith.constant 0 : index
    %3 = vector.load %arg2[%c0_2, %c0_3] : memref<24x32xbf16, #tpu.memory_space<vmem>>, vector<24x32xbf16>
    %cst = arith.constant dense<0.000000e+00> : vector<16x32xf32>
    %4 = tpu.matmul %2, %3, %cst {dimension_numbers = #tpu.dot_dimension_numbers<[1], [0], [0], [1], [0, 0, 1, 1], [], []>} : vector<16x24xbf16>, vector<24x32xbf16>, vector<16x32xf32> -> vector<16x32xf32>
    %c0_4 = arith.constant 0 : index
    %c0_5 = arith.constant 0 : index
    %5 = vector.load %arg3[%c0_4, %c0_5] : memref<16x32xf32, #tpu.memory_space<vmem>>, vector<16x32xf32>
    %6 = arith.addf %4, %5 : vector<16x32xf32>
    %c0_6 = arith.constant 0 : index
    %c0_7 = arith.constant 0 : index
    %7 = vector.load %arg4[%c0_6, %c0_7] : memref<16x16xf32, #tpu.memory_space<vmem>>, vector<16x16xf32>
    %c0_8 = arith.constant 0 : index
    %c0_9 = arith.constant 0 : index
    %c0_10 = arith.constant 0 : index
    %8 = vector.load %arg5[%c0_8, %c0_9, %c0_10] : memref<2x1x32xf32, #tpu.memory_space<vmem>>, vector<1x1x32xf32>
    %9 = vector.shape_cast %8 : vector<1x1x32xf32> to vector<1x32xf32>
    %10 = arith.mulf %6, %6 : vector<16x32xf32>
    %cst_11 = arith.constant dense<0.000000e+00> : vector<16xf32>
    %11 = vector.multi_reduction <add>, %10, %cst_11 [1] : vector<16x32xf32> to vector<16xf32>
    %12 = vector.shape_cast %11 : vector<16xf32> to vector<16x1xf32>
    %cst_12 = arith.constant 3.200000e+01 : f32
    %13 = vector.broadcast %cst_12 : f32 to vector<16x1xf32>
    %14 = arith.divf %12, %13 : vector<16x1xf32>
    %cst_13 = arith.constant 9.99999974E-6 : f32
    %15 = vector.broadcast %cst_13 : f32 to vector<16x1xf32>
    %16 = arith.addf %14, %15 : vector<16x1xf32>
    %17 = math.rsqrt %16 : vector<16x1xf32>
    %18 = vector.broadcast %17 : vector<16x1xf32> to vector<16x32xf32>
    %19 = arith.mulf %6, %18 : vector<16x32xf32>
    %20 = vector.broadcast %9 : vector<1x32xf32> to vector<16x32xf32>
    %21 = arith.mulf %19, %20 : vector<16x32xf32>
    %22 = arith.truncf %21 : vector<16x32xf32> to vector<16x32xbf16>
    %c0_14 = arith.constant 0 : index
    %c0_15 = arith.constant 0 : index
    %c0_16 = arith.constant 0 : index
    %c0_17 = arith.constant 0 : index
    %23 = vector.load %arg6[%c0_14, %c0_15, %c0_16, %c0_17] : memref<2x4x32x8xbf16, #tpu.memory_space<vmem>>, vector<1x1x32x8xbf16>
    %24 = vector.shape_cast %23 : vector<1x1x32x8xbf16> to vector<32x8xbf16>
    %cst_18 = arith.constant dense<0.000000e+00> : vector<16x8xf32>
    %25 = tpu.matmul %22, %24, %cst_18 {dimension_numbers = #tpu.dot_dimension_numbers<[1], [0], [0], [1], [0, 0, 1, 1], [], []>} : vector<16x32xbf16>, vector<32x8xbf16>, vector<16x8xf32> -> vector<16x8xf32>
    %c0_19 = arith.constant 0 : index
    %c0_20 = arith.constant 0 : index
    %c0_21 = arith.constant 0 : index
    %c0_22 = arith.constant 0 : index
    %26 = vector.load %arg7[%c0_19, %c0_20, %c0_21, %c0_22] : memref<2x4x1x8xf32, #tpu.memory_space<vmem>>, vector<1x1x1x8xf32>
    %27 = vector.shape_cast %26 : vector<1x1x1x8xf32> to vector<1x8xf32>
    %28 = vector.broadcast %27 : vector<1x8xf32> to vector<16x8xf32>
    %29 = arith.addf %25, %28 : vector<16x8xf32>
    %c0_23 = arith.constant 0 : index
    %c1 = arith.constant 1 : index
    %c0_24 = arith.constant 0 : index
    %c0_25 = arith.constant 0 : index
    %30 = vector.load %arg6[%c0_23, %c1, %c0_24, %c0_25] : memref<2x4x32x8xbf16, #tpu.memory_space<vmem>>, vector<1x1x32x8xbf16>
    %31 = vector.shape_cast %30 : vector<1x1x32x8xbf16> to vector<32x8xbf16>
    %cst_26 = arith.constant dense<0.000000e+00> : vector<16x8xf32>
    %32 = tpu.matmul %22, %31, %cst_26 {dimension_numbers = #tpu.dot_dimension_numbers<[1], [0], [0], [1], [0, 0, 1, 1], [], []>} : vector<16x32xbf16>, vector<32x8xbf16>, vector<16x8xf32> -> vector<16x8xf32>
    %c0_27 = arith.constant 0 : index
    %c1_28 = arith.constant 1 : index
    %c0_29 = arith.constant 0 : index
    %c0_30 = arith.constant 0 : index
    %33 = vector.load %arg7[%c0_27, %c1_28, %c0_29, %c0_30] : memref<2x4x1x8xf32, #tpu.memory_space<vmem>>, vector<1x1x1x8xf32>
    %34 = vector.shape_cast %33 : vector<1x1x1x8xf32> to vector<1x8xf32>
    %35 = vector.broadcast %34 : vector<1x8xf32> to vector<16x8xf32>
    %36 = arith.addf %32, %35 : vector<16x8xf32>
    %c0_31 = arith.constant 0 : index
    %c2 = arith.constant 2 : index
    %c0_32 = arith.constant 0 : index
    %c0_33 = arith.constant 0 : index
    %37 = vector.load %arg6[%c0_31, %c2, %c0_32, %c0_33] : memref<2x4x32x8xbf16, #tpu.memory_space<vmem>>, vector<1x1x32x8xbf16>
    %38 = vector.shape_cast %37 : vector<1x1x32x8xbf16> to vector<32x8xbf16>
    %cst_34 = arith.constant dense<0.000000e+00> : vector<16x8xf32>
    %39 = tpu.matmul %22, %38, %cst_34 {dimension_numbers = #tpu.dot_dimension_numbers<[1], [0], [0], [1], [0, 0, 1, 1], [], []>} : vector<16x32xbf16>, vector<32x8xbf16>, vector<16x8xf32> -> vector<16x8xf32>
    %c0_35 = arith.constant 0 : index
    %c2_36 = arith.constant 2 : index
    %c0_37 = arith.constant 0 : index
    %c0_38 = arith.constant 0 : index
    %40 = vector.load %arg7[%c0_35, %c2_36, %c0_37, %c0_38] : memref<2x4x1x8xf32, #tpu.memory_space<vmem>>, vector<1x1x1x8xf32>
    %41 = vector.shape_cast %40 : vector<1x1x1x8xf32> to vector<1x8xf32>
    %42 = vector.broadcast %41 : vector<1x8xf32> to vector<16x8xf32>
    %43 = arith.addf %39, %42 : vector<16x8xf32>
    %c0_39 = arith.constant 0 : index
    %c3 = arith.constant 3 : index
    %c0_40 = arith.constant 0 : index
    %c0_41 = arith.constant 0 : index
    %44 = vector.load %arg6[%c0_39, %c3, %c0_40, %c0_41] : memref<2x4x32x8xbf16, #tpu.memory_space<vmem>>, vector<1x1x32x8xbf16>
    %45 = vector.shape_cast %44 : vector<1x1x32x8xbf16> to vector<32x8xbf16>
    %cst_42 = arith.constant dense<0.000000e+00> : vector<16x8xf32>
    %46 = tpu.matmul %22, %45, %cst_42 {dimension_numbers = #tpu.dot_dimension_numbers<[1], [0], [0], [1], [0, 0, 1, 1], [], []>} : vector<16x32xbf16>, vector<32x8xbf16>, vector<16x8xf32> -> vector<16x8xf32>
    %c0_43 = arith.constant 0 : index
    %c3_44 = arith.constant 3 : index
    %c0_45 = arith.constant 0 : index
    %c0_46 = arith.constant 0 : index
    %47 = vector.load %arg7[%c0_43, %c3_44, %c0_45, %c0_46] : memref<2x4x1x8xf32, #tpu.memory_space<vmem>>, vector<1x1x1x8xf32>
    %48 = vector.shape_cast %47 : vector<1x1x1x8xf32> to vector<1x8xf32>
    %49 = vector.broadcast %48 : vector<1x8xf32> to vector<16x8xf32>
    %50 = arith.addf %46, %49 : vector<16x8xf32>
    %51 = vector.shape_cast %29 : vector<16x8xf32> to vector<1x16x8xf32>
    %52 = vector.shape_cast %36 : vector<16x8xf32> to vector<1x16x8xf32>
    %53 = vector.shape_cast %43 : vector<16x8xf32> to vector<1x16x8xf32>
    %54 = vector.shape_cast %50 : vector<16x8xf32> to vector<1x16x8xf32>
    %55 = tpu.concatenate %51, %52, %53, %54 in 0 : vector<1x16x8xf32>, vector<1x16x8xf32>, vector<1x16x8xf32>, vector<1x16x8xf32> -> vector<4x16x8xf32>
    %c0_47 = arith.constant 0 : index
    %c0_48 = arith.constant 0 : index
    %c0_49 = arith.constant 0 : index
    %c0_50 = arith.constant 0 : index
    %56 = vector.load %arg8[%c0_47, %c0_48, %c0_49, %c0_50] : memref<2x4x32x8xbf16, #tpu.memory_space<vmem>>, vector<1x1x32x8xbf16>
    %57 = vector.shape_cast %56 : vector<1x1x32x8xbf16> to vector<32x8xbf16>
    %cst_51 = arith.constant dense<0.000000e+00> : vector<16x8xf32>
    %58 = tpu.matmul %22, %57, %cst_51 {dimension_numbers = #tpu.dot_dimension_numbers<[1], [0], [0], [1], [0, 0, 1, 1], [], []>} : vector<16x32xbf16>, vector<32x8xbf16>, vector<16x8xf32> -> vector<16x8xf32>
    %c0_52 = arith.constant 0 : index
    %c0_53 = arith.constant 0 : index
    %c0_54 = arith.constant 0 : index
    %c0_55 = arith.constant 0 : index
    %59 = vector.load %arg9[%c0_52, %c0_53, %c0_54, %c0_55] : memref<2x4x1x8xf32, #tpu.memory_space<vmem>>, vector<1x1x1x8xf32>
    %60 = vector.shape_cast %59 : vector<1x1x1x8xf32> to vector<1x8xf32>
    %61 = vector.broadcast %60 : vector<1x8xf32> to vector<16x8xf32>
    %62 = arith.addf %58, %61 : vector<16x8xf32>
    %c0_56 = arith.constant 0 : index
    %c1_57 = arith.constant 1 : index
    %c0_58 = arith.constant 0 : index
    %c0_59 = arith.constant 0 : index
    %63 = vector.load %arg8[%c0_56, %c1_57, %c0_58, %c0_59] : memref<2x4x32x8xbf16, #tpu.memory_space<vmem>>, vector<1x1x32x8xbf16>
    %64 = vector.shape_cast %63 : vector<1x1x32x8xbf16> to vector<32x8xbf16>
    %cst_60 = arith.constant dense<0.000000e+00> : vector<16x8xf32>
    %65 = tpu.matmul %22, %64, %cst_60 {dimension_numbers = #tpu.dot_dimension_numbers<[1], [0], [0], [1], [0, 0, 1, 1], [], []>} : vector<16x32xbf16>, vector<32x8xbf16>, vector<16x8xf32> -> vector<16x8xf32>
    %c0_61 = arith.constant 0 : index
    %c1_62 = arith.constant 1 : index
    %c0_63 = arith.constant 0 : index
    %c0_64 = arith.constant 0 : index
    %66 = vector.load %arg9[%c0_61, %c1_62, %c0_63, %c0_64] : memref<2x4x1x8xf32, #tpu.memory_space<vmem>>, vector<1x1x1x8xf32>
    %67 = vector.shape_cast %66 : vector<1x1x1x8xf32> to vector<1x8xf32>
    %68 = vector.broadcast %67 : vector<1x8xf32> to vector<16x8xf32>
    %69 = arith.addf %65, %68 : vector<16x8xf32>
    %c0_65 = arith.constant 0 : index
    %c2_66 = arith.constant 2 : index
    %c0_67 = arith.constant 0 : index
    %c0_68 = arith.constant 0 : index
    %70 = vector.load %arg8[%c0_65, %c2_66, %c0_67, %c0_68] : memref<2x4x32x8xbf16, #tpu.memory_space<vmem>>, vector<1x1x32x8xbf16>
    %71 = vector.shape_cast %70 : vector<1x1x32x8xbf16> to vector<32x8xbf16>
    %cst_69 = arith.constant dense<0.000000e+00> : vector<16x8xf32>
    %72 = tpu.matmul %22, %71, %cst_69 {dimension_numbers = #tpu.dot_dimension_numbers<[1], [0], [0], [1], [0, 0, 1, 1], [], []>} : vector<16x32xbf16>, vector<32x8xbf16>, vector<16x8xf32> -> vector<16x8xf32>
    %c0_70 = arith.constant 0 : index
    %c2_71 = arith.constant 2 : index
    %c0_72 = arith.constant 0 : index
    %c0_73 = arith.constant 0 : index
    %73 = vector.load %arg9[%c0_70, %c2_71, %c0_72, %c0_73] : memref<2x4x1x8xf32, #tpu.memory_space<vmem>>, vector<1x1x1x8xf32>
    %74 = vector.shape_cast %73 : vector<1x1x1x8xf32> to vector<1x8xf32>
    %75 = vector.broadcast %74 : vector<1x8xf32> to vector<16x8xf32>
    %76 = arith.addf %72, %75 : vector<16x8xf32>
    %c0_74 = arith.constant 0 : index
    %c3_75 = arith.constant 3 : index
    %c0_76 = arith.constant 0 : index
    %c0_77 = arith.constant 0 : index
    %77 = vector.load %arg8[%c0_74, %c3_75, %c0_76, %c0_77] : memref<2x4x32x8xbf16, #tpu.memory_space<vmem>>, vector<1x1x32x8xbf16>
    %78 = vector.shape_cast %77 : vector<1x1x32x8xbf16> to vector<32x8xbf16>
    %cst_78 = arith.constant dense<0.000000e+00> : vector<16x8xf32>
    %79 = tpu.matmul %22, %78, %cst_78 {dimension_numbers = #tpu.dot_dimension_numbers<[1], [0], [0], [1], [0, 0, 1, 1], [], []>} : vector<16x32xbf16>, vector<32x8xbf16>, vector<16x8xf32> -> vector<16x8xf32>
    %c0_79 = arith.constant 0 : index
    %c3_80 = arith.constant 3 : index
    %c0_81 = arith.constant 0 : index
    %c0_82 = arith.constant 0 : index
    %80 = vector.load %arg9[%c0_79, %c3_80, %c0_81, %c0_82] : memref<2x4x1x8xf32, #tpu.memory_space<vmem>>, vector<1x1x1x8xf32>
    %81 = vector.shape_cast %80 : vector<1x1x1x8xf32> to vector<1x8xf32>
    %82 = vector.broadcast %81 : vector<1x8xf32> to vector<16x8xf32>
    %83 = arith.addf %79, %82 : vector<16x8xf32>
    %84 = vector.shape_cast %62 : vector<16x8xf32> to vector<1x16x8xf32>
    %85 = vector.shape_cast %69 : vector<16x8xf32> to vector<1x16x8xf32>
    %86 = vector.shape_cast %76 : vector<16x8xf32> to vector<1x16x8xf32>
    %87 = vector.shape_cast %83 : vector<16x8xf32> to vector<1x16x8xf32>
    %88 = tpu.concatenate %84, %85, %86, %87 in 0 : vector<1x16x8xf32>, vector<1x16x8xf32>, vector<1x16x8xf32>, vector<1x16x8xf32> -> vector<4x16x8xf32>
    %c0_83 = arith.constant 0 : index
    %c0_84 = arith.constant 0 : index
    %c0_85 = arith.constant 0 : index
    %c0_86 = arith.constant 0 : index
    %89 = vector.load %arg10[%c0_83, %c0_84, %c0_85, %c0_86] : memref<2x4x32x8xbf16, #tpu.memory_space<vmem>>, vector<1x1x32x8xbf16>
    %90 = vector.shape_cast %89 : vector<1x1x32x8xbf16> to vector<32x8xbf16>
    %cst_87 = arith.constant dense<0.000000e+00> : vector<16x8xf32>
    %91 = tpu.matmul %22, %90, %cst_87 {dimension_numbers = #tpu.dot_dimension_numbers<[1], [0], [0], [1], [0, 0, 1, 1], [], []>} : vector<16x32xbf16>, vector<32x8xbf16>, vector<16x8xf32> -> vector<16x8xf32>
    %c0_88 = arith.constant 0 : index
    %c0_89 = arith.constant 0 : index
    %c0_90 = arith.constant 0 : index
    %c0_91 = arith.constant 0 : index
    %92 = vector.load %arg11[%c0_88, %c0_89, %c0_90, %c0_91] : memref<2x4x1x8xf32, #tpu.memory_space<vmem>>, vector<1x1x1x8xf32>
    %93 = vector.shape_cast %92 : vector<1x1x1x8xf32> to vector<1x8xf32>
    %94 = vector.broadcast %93 : vector<1x8xf32> to vector<16x8xf32>
    %95 = arith.addf %91, %94 : vector<16x8xf32>
    %c0_92 = arith.constant 0 : index
    %c1_93 = arith.constant 1 : index
    %c0_94 = arith.constant 0 : index
    %c0_95 = arith.constant 0 : index
    %96 = vector.load %arg10[%c0_92, %c1_93, %c0_94, %c0_95] : memref<2x4x32x8xbf16, #tpu.memory_space<vmem>>, vector<1x1x32x8xbf16>
    %97 = vector.shape_cast %96 : vector<1x1x32x8xbf16> to vector<32x8xbf16>
    %cst_96 = arith.constant dense<0.000000e+00> : vector<16x8xf32>
    %98 = tpu.matmul %22, %97, %cst_96 {dimension_numbers = #tpu.dot_dimension_numbers<[1], [0], [0], [1], [0, 0, 1, 1], [], []>} : vector<16x32xbf16>, vector<32x8xbf16>, vector<16x8xf32> -> vector<16x8xf32>
    %c0_97 = arith.constant 0 : index
    %c1_98 = arith.constant 1 : index
    %c0_99 = arith.constant 0 : index
    %c0_100 = arith.constant 0 : index
    %99 = vector.load %arg11[%c0_97, %c1_98, %c0_99, %c0_100] : memref<2x4x1x8xf32, #tpu.memory_space<vmem>>, vector<1x1x1x8xf32>
    %100 = vector.shape_cast %99 : vector<1x1x1x8xf32> to vector<1x8xf32>
    %101 = vector.broadcast %100 : vector<1x8xf32> to vector<16x8xf32>
    %102 = arith.addf %98, %101 : vector<16x8xf32>
    %c0_101 = arith.constant 0 : index
    %c2_102 = arith.constant 2 : index
    %c0_103 = arith.constant 0 : index
    %c0_104 = arith.constant 0 : index
    %103 = vector.load %arg10[%c0_101, %c2_102, %c0_103, %c0_104] : memref<2x4x32x8xbf16, #tpu.memory_space<vmem>>, vector<1x1x32x8xbf16>
    %104 = vector.shape_cast %103 : vector<1x1x32x8xbf16> to vector<32x8xbf16>
    %cst_105 = arith.constant dense<0.000000e+00> : vector<16x8xf32>
    %105 = tpu.matmul %22, %104, %cst_105 {dimension_numbers = #tpu.dot_dimension_numbers<[1], [0], [0], [1], [0, 0, 1, 1], [], []>} : vector<16x32xbf16>, vector<32x8xbf16>, vector<16x8xf32> -> vector<16x8xf32>
    %c0_106 = arith.constant 0 : index
    %c2_107 = arith.constant 2 : index
    %c0_108 = arith.constant 0 : index
    %c0_109 = arith.constant 0 : index
    %106 = vector.load %arg11[%c0_106, %c2_107, %c0_108, %c0_109] : memref<2x4x1x8xf32, #tpu.memory_space<vmem>>, vector<1x1x1x8xf32>
    %107 = vector.shape_cast %106 : vector<1x1x1x8xf32> to vector<1x8xf32>
    %108 = vector.broadcast %107 : vector<1x8xf32> to vector<16x8xf32>
    %109 = arith.addf %105, %108 : vector<16x8xf32>
    %c0_110 = arith.constant 0 : index
    %c3_111 = arith.constant 3 : index
    %c0_112 = arith.constant 0 : index
    %c0_113 = arith.constant 0 : index
    %110 = vector.load %arg10[%c0_110, %c3_111, %c0_112, %c0_113] : memref<2x4x32x8xbf16, #tpu.memory_space<vmem>>, vector<1x1x32x8xbf16>
    %111 = vector.shape_cast %110 : vector<1x1x32x8xbf16> to vector<32x8xbf16>
    %cst_114 = arith.constant dense<0.000000e+00> : vector<16x8xf32>
    %112 = tpu.matmul %22, %111, %cst_114 {dimension_numbers = #tpu.dot_dimension_numbers<[1], [0], [0], [1], [0, 0, 1, 1], [], []>} : vector<16x32xbf16>, vector<32x8xbf16>, vector<16x8xf32> -> vector<16x8xf32>
    %c0_115 = arith.constant 0 : index
    %c3_116 = arith.constant 3 : index
    %c0_117 = arith.constant 0 : index
    %c0_118 = arith.constant 0 : index
    %113 = vector.load %arg11[%c0_115, %c3_116, %c0_117, %c0_118] : memref<2x4x1x8xf32, #tpu.memory_space<vmem>>, vector<1x1x1x8xf32>
    %114 = vector.shape_cast %113 : vector<1x1x1x8xf32> to vector<1x8xf32>
    %115 = vector.broadcast %114 : vector<1x8xf32> to vector<16x8xf32>
    %116 = arith.addf %112, %115 : vector<16x8xf32>
    %117 = vector.shape_cast %95 : vector<16x8xf32> to vector<1x16x8xf32>
    %118 = vector.shape_cast %102 : vector<16x8xf32> to vector<1x16x8xf32>
    %119 = vector.shape_cast %109 : vector<16x8xf32> to vector<1x16x8xf32>
    %120 = vector.shape_cast %116 : vector<16x8xf32> to vector<1x16x8xf32>
    %121 = tpu.concatenate %117, %118, %119, %120 in 0 : vector<1x16x8xf32>, vector<1x16x8xf32>, vector<1x16x8xf32>, vector<1x16x8xf32> -> vector<4x16x8xf32>
    "tpu.trace_start"() <{level = 10 : i32, message = "hqd,hkd->hqk"}> : () -> ()
    %cst_119 = arith.constant dense<0.000000e+00> : vector<4x16x16xf32>
    %122 = tpu.matmul %55, %88, %cst_119 {dimension_numbers = #tpu.dot_dimension_numbers<[2], [2], [1], [1], [0, 0, 0, 1, 1, 1], [0], [0]>} : vector<4x16x8xf32>, vector<4x16x8xf32>, vector<4x16x16xf32> -> vector<4x16x16xf32>
    "tpu.trace_stop"() : () -> ()
    %cst_120 = arith.constant 0.353553385 : f32
    %123 = vector.broadcast %cst_120 : f32 to vector<4x16x16xf32>
    %124 = arith.mulf %122, %123 : vector<4x16x16xf32>
    %125 = vector.shape_cast %7 : vector<16x16xf32> to vector<1x16x16xf32>
    %126 = vector.broadcast %125 : vector<1x16x16xf32> to vector<4x16x16xf32>
    %127 = arith.addf %124, %126 : vector<4x16x16xf32>
    %cst_121 = arith.constant dense<0xFF800000> : vector<4x16xf32>
    %128 = vector.multi_reduction <maximumf>, %127, %cst_121 [2] : vector<4x16x16xf32> to vector<4x16xf32>
    %129 = vector.shape_cast %128 : vector<4x16xf32> to vector<4x16x1xf32>
    %130 = vector.broadcast %129 : vector<4x16x1xf32> to vector<4x16x16xf32>
    %131 = arith.subf %127, %130 : vector<4x16x16xf32>
    %132 = math.exp %131 : vector<4x16x16xf32>
    %cst_122 = arith.constant dense<0.000000e+00> : vector<4x16xf32>
    %133 = vector.multi_reduction <add>, %132, %cst_122 [2] : vector<4x16x16xf32> to vector<4x16xf32>
    %134 = vector.shape_cast %133 : vector<4x16xf32> to vector<4x16x1xf32>
    %135 = tpu.reciprocal %134 {approx = true} : vector<4x16x1xf32> -> vector<4x16x1xf32>
    %136 = vector.broadcast %135 : vector<4x16x1xf32> to vector<4x16x16xf32>
    %137 = arith.mulf %132, %136 : vector<4x16x16xf32>
    "tpu.trace_start"() <{level = 10 : i32, message = "hqk,hkd->hqd"}> : () -> ()
    %cst_123 = arith.constant dense<0.000000e+00> : vector<4x16x8xf32>
    %138 = tpu.matmul %137, %121, %cst_123 {dimension_numbers = #tpu.dot_dimension_numbers<[2], [1], [1], [2], [0, 0, 0, 1, 1, 2], [0], [0]>} : vector<4x16x16xf32>, vector<4x16x8xf32>, vector<4x16x8xf32> -> vector<4x16x8xf32>
    "tpu.trace_stop"() : () -> ()
    %c0_124 = arith.constant 0 : index
    %c0_125 = arith.constant 0 : index
    %c0_126 = arith.constant 0 : index
    %139 = vector.load %arg13[%c0_124, %c0_125, %c0_126] : memref<2x1x32xf32, #tpu.memory_space<vmem>>, vector<1x1x32xf32>
    %140 = vector.shape_cast %139 : vector<1x1x32xf32> to vector<1x32xf32>
    %141 = vector.extract_strided_slice %138 {offsets = [0, 0, 0], sizes = [1, 16, 8], strides = [1, 1, 1]} : vector<4x16x8xf32> to vector<1x16x8xf32>
    %142 = vector.shape_cast %141 : vector<1x16x8xf32> to vector<16x8xf32>
    %143 = arith.truncf %142 : vector<16x8xf32> to vector<16x8xbf16>
    %c0_127 = arith.constant 0 : index
    %c0_128 = arith.constant 0 : index
    %c0_129 = arith.constant 0 : index
    %c0_130 = arith.constant 0 : index
    %144 = vector.load %arg12[%c0_127, %c0_128, %c0_129, %c0_130] : memref<2x4x8x32xbf16, #tpu.memory_space<vmem>>, vector<1x1x8x32xbf16>
    %145 = vector.shape_cast %144 : vector<1x1x8x32xbf16> to vector<8x32xbf16>
    %cst_131 = arith.constant dense<0.000000e+00> : vector<16x32xf32>
    %146 = tpu.matmul %143, %145, %cst_131 {dimension_numbers = #tpu.dot_dimension_numbers<[1], [0], [0], [1], [0, 0, 1, 1], [], []>} : vector<16x8xbf16>, vector<8x32xbf16>, vector<16x32xf32> -> vector<16x32xf32>
    %147 = vector.broadcast %140 : vector<1x32xf32> to vector<16x32xf32>
    %148 = arith.addf %147, %146 : vector<16x32xf32>
    %149 = vector.extract_strided_slice %138 {offsets = [1, 0, 0], sizes = [1, 16, 8], strides = [1, 1, 1]} : vector<4x16x8xf32> to vector<1x16x8xf32>
    %150 = vector.shape_cast %149 : vector<1x16x8xf32> to vector<16x8xf32>
    %151 = arith.truncf %150 : vector<16x8xf32> to vector<16x8xbf16>
    %c0_132 = arith.constant 0 : index
    %c1_133 = arith.constant 1 : index
    %c0_134 = arith.constant 0 : index
    %c0_135 = arith.constant 0 : index
    %152 = vector.load %arg12[%c0_132, %c1_133, %c0_134, %c0_135] : memref<2x4x8x32xbf16, #tpu.memory_space<vmem>>, vector<1x1x8x32xbf16>
    %153 = vector.shape_cast %152 : vector<1x1x8x32xbf16> to vector<8x32xbf16>
    %cst_136 = arith.constant dense<0.000000e+00> : vector<16x32xf32>
    %154 = tpu.matmul %151, %153, %cst_136 {dimension_numbers = #tpu.dot_dimension_numbers<[1], [0], [0], [1], [0, 0, 1, 1], [], []>} : vector<16x8xbf16>, vector<8x32xbf16>, vector<16x32xf32> -> vector<16x32xf32>
    %155 = arith.addf %148, %154 : vector<16x32xf32>
    %156 = vector.extract_strided_slice %138 {offsets = [2, 0, 0], sizes = [1, 16, 8], strides = [1, 1, 1]} : vector<4x16x8xf32> to vector<1x16x8xf32>
    %157 = vector.shape_cast %156 : vector<1x16x8xf32> to vector<16x8xf32>
    %158 = arith.truncf %157 : vector<16x8xf32> to vector<16x8xbf16>
    %c0_137 = arith.constant 0 : index
    %c2_138 = arith.constant 2 : index
    %c0_139 = arith.constant 0 : index
    %c0_140 = arith.constant 0 : index
    %159 = vector.load %arg12[%c0_137, %c2_138, %c0_139, %c0_140] : memref<2x4x8x32xbf16, #tpu.memory_space<vmem>>, vector<1x1x8x32xbf16>
    %160 = vector.shape_cast %159 : vector<1x1x8x32xbf16> to vector<8x32xbf16>
    %cst_141 = arith.constant dense<0.000000e+00> : vector<16x32xf32>
    %161 = tpu.matmul %158, %160, %cst_141 {dimension_numbers = #tpu.dot_dimension_numbers<[1], [0], [0], [1], [0, 0, 1, 1], [], []>} : vector<16x8xbf16>, vector<8x32xbf16>, vector<16x32xf32> -> vector<16x32xf32>
    %162 = arith.addf %155, %161 : vector<16x32xf32>
    %163 = vector.extract_strided_slice %138 {offsets = [3, 0, 0], sizes = [1, 16, 8], strides = [1, 1, 1]} : vector<4x16x8xf32> to vector<1x16x8xf32>
    %164 = vector.shape_cast %163 : vector<1x16x8xf32> to vector<16x8xf32>
    %165 = arith.truncf %164 : vector<16x8xf32> to vector<16x8xbf16>
    %c0_142 = arith.constant 0 : index
    %c3_143 = arith.constant 3 : index
    %c0_144 = arith.constant 0 : index
    %c0_145 = arith.constant 0 : index
    %166 = vector.load %arg12[%c0_142, %c3_143, %c0_144, %c0_145] : memref<2x4x8x32xbf16, #tpu.memory_space<vmem>>, vector<1x1x8x32xbf16>
    %167 = vector.shape_cast %166 : vector<1x1x8x32xbf16> to vector<8x32xbf16>
    %cst_146 = arith.constant dense<0.000000e+00> : vector<16x32xf32>
    %168 = tpu.matmul %165, %167, %cst_146 {dimension_numbers = #tpu.dot_dimension_numbers<[1], [0], [0], [1], [0, 0, 1, 1], [], []>} : vector<16x8xbf16>, vector<8x32xbf16>, vector<16x32xf32> -> vector<16x32xf32>
    %169 = arith.addf %162, %168 : vector<16x32xf32>
    %170 = arith.addf %6, %169 : vector<16x32xf32>
    %c0_147 = arith.constant 0 : index
    %c0_148 = arith.constant 0 : index
    %c0_149 = arith.constant 0 : index
    %171 = vector.load %arg14[%c0_147, %c0_148, %c0_149] : memref<2x1x32xf32, #tpu.memory_space<vmem>>, vector<1x1x32xf32>
    %172 = vector.shape_cast %171 : vector<1x1x32xf32> to vector<1x32xf32>
    %173 = arith.mulf %170, %170 : vector<16x32xf32>
    %cst_150 = arith.constant dense<0.000000e+00> : vector<16xf32>
    %174 = vector.multi_reduction <add>, %173, %cst_150 [1] : vector<16x32xf32> to vector<16xf32>
    %175 = vector.shape_cast %174 : vector<16xf32> to vector<16x1xf32>
    %cst_151 = arith.constant 3.200000e+01 : f32
    %176 = vector.broadcast %cst_151 : f32 to vector<16x1xf32>
    %177 = arith.divf %175, %176 : vector<16x1xf32>
    %cst_152 = arith.constant 9.99999974E-6 : f32
    %178 = vector.broadcast %cst_152 : f32 to vector<16x1xf32>
    %179 = arith.addf %177, %178 : vector<16x1xf32>
    %180 = math.rsqrt %179 : vector<16x1xf32>
    %181 = vector.broadcast %180 : vector<16x1xf32> to vector<16x32xf32>
    %182 = arith.mulf %170, %181 : vector<16x32xf32>
    %183 = vector.broadcast %172 : vector<1x32xf32> to vector<16x32xf32>
    %184 = arith.mulf %182, %183 : vector<16x32xf32>
    %185 = arith.truncf %184 : vector<16x32xf32> to vector<16x32xbf16>
    %c0_153 = arith.constant 0 : index
    %c0_154 = arith.constant 0 : index
    %c0_155 = arith.constant 0 : index
    %186 = vector.load %arg15[%c0_153, %c0_154, %c0_155] : memref<2x32x64xbf16, #tpu.memory_space<vmem>>, vector<1x32x64xbf16>
    %187 = vector.shape_cast %186 : vector<1x32x64xbf16> to vector<32x64xbf16>
    %cst_156 = arith.constant dense<0.000000e+00> : vector<16x64xf32>
    %188 = tpu.matmul %185, %187, %cst_156 {dimension_numbers = #tpu.dot_dimension_numbers<[1], [0], [0], [1], [0, 0, 1, 1], [], []>} : vector<16x32xbf16>, vector<32x64xbf16>, vector<16x64xf32> -> vector<16x64xf32>
    %c0_157 = arith.constant 0 : index
    %c0_158 = arith.constant 0 : index
    %c0_159 = arith.constant 0 : index
    %189 = vector.load %arg16[%c0_157, %c0_158, %c0_159] : memref<2x1x64xf32, #tpu.memory_space<vmem>>, vector<1x1x64xf32>
    %190 = vector.shape_cast %189 : vector<1x1x64xf32> to vector<1x64xf32>
    %191 = vector.broadcast %190 : vector<1x64xf32> to vector<16x64xf32>
    %192 = arith.addf %188, %191 : vector<16x64xf32>
    %193 = arith.mulf %192, %192 : vector<16x64xf32>
    %194 = arith.mulf %192, %193 : vector<16x64xf32>
    %cst_160 = arith.constant 4.471500e-02 : f32
    %195 = vector.broadcast %cst_160 : f32 to vector<16x64xf32>
    %196 = arith.mulf %195, %194 : vector<16x64xf32>
    %197 = arith.addf %192, %196 : vector<16x64xf32>
    %cst_161 = arith.constant 0.797884583 : f32
    %198 = vector.broadcast %cst_161 : f32 to vector<16x64xf32>
    %199 = arith.mulf %198, %197 : vector<16x64xf32>
    %200 = math.tanh %199 : vector<16x64xf32>
    %cst_162 = arith.constant 1.000000e+00 : f32
    %201 = vector.broadcast %cst_162 : f32 to vector<16x64xf32>
    %202 = arith.addf %201, %200 : vector<16x64xf32>
    %cst_163 = arith.constant 5.000000e-01 : f32
    %203 = vector.broadcast %cst_163 : f32 to vector<16x64xf32>
    %204 = arith.mulf %203, %202 : vector<16x64xf32>
    %205 = arith.mulf %192, %204 : vector<16x64xf32>
    %206 = arith.truncf %205 : vector<16x64xf32> to vector<16x64xbf16>
    %c0_164 = arith.constant 0 : index
    %c0_165 = arith.constant 0 : index
    %c0_166 = arith.constant 0 : index
    %207 = vector.load %arg17[%c0_164, %c0_165, %c0_166] : memref<2x64x32xbf16, #tpu.memory_space<vmem>>, vector<1x64x32xbf16>
    %208 = vector.shape_cast %207 : vector<1x64x32xbf16> to vector<64x32xbf16>
    %cst_167 = arith.constant dense<0.000000e+00> : vector<16x32xf32>
    %209 = tpu.matmul %206, %208, %cst_167 {dimension_numbers = #tpu.dot_dimension_numbers<[1], [0], [0], [1], [0, 0, 1, 1], [], []>} : vector<16x64xbf16>, vector<64x32xbf16>, vector<16x32xf32> -> vector<16x32xf32>
    %c0_168 = arith.constant 0 : index
    %c0_169 = arith.constant 0 : index
    %c0_170 = arith.constant 0 : index
    %210 = vector.load %arg18[%c0_168, %c0_169, %c0_170] : memref<2x1x32xf32, #tpu.memory_space<vmem>>, vector<1x1x32xf32>
    %211 = vector.shape_cast %210 : vector<1x1x32xf32> to vector<1x32xf32>
    %212 = vector.broadcast %211 : vector<1x32xf32> to vector<16x32xf32>
    %213 = arith.addf %209, %212 : vector<16x32xf32>
    %214 = arith.addf %170, %213 : vector<16x32xf32>
    %c1_171 = arith.constant 1 : index
    %c0_172 = arith.constant 0 : index
    %c0_173 = arith.constant 0 : index
    %215 = vector.load %arg5[%c1_171, %c0_172, %c0_173] : memref<2x1x32xf32, #tpu.memory_space<vmem>>, vector<1x1x32xf32>
    %216 = vector.shape_cast %215 : vector<1x1x32xf32> to vector<1x32xf32>
    %217 = arith.mulf %214, %214 : vector<16x32xf32>
    %cst_174 = arith.constant dense<0.000000e+00> : vector<16xf32>
    %218 = vector.multi_reduction <add>, %217, %cst_174 [1] : vector<16x32xf32> to vector<16xf32>
    %219 = vector.shape_cast %218 : vector<16xf32> to vector<16x1xf32>
    %cst_175 = arith.constant 3.200000e+01 : f32
    %220 = vector.broadcast %cst_175 : f32 to vector<16x1xf32>
    %221 = arith.divf %219, %220 : vector<16x1xf32>
    %cst_176 = arith.constant 9.99999974E-6 : f32
    %222 = vector.broadcast %cst_176 : f32 to vector<16x1xf32>
    %223 = arith.addf %221, %222 : vector<16x1xf32>
    %224 = math.rsqrt %223 : vector<16x1xf32>
    %225 = vector.broadcast %224 : vector<16x1xf32> to vector<16x32xf32>
    %226 = arith.mulf %214, %225 : vector<16x32xf32>
    %227 = vector.broadcast %216 : vector<1x32xf32> to vector<16x32xf32>
    %228 = arith.mulf %226, %227 : vector<16x32xf32>
    %229 = arith.truncf %228 : vector<16x32xf32> to vector<16x32xbf16>
    %c1_177 = arith.constant 1 : index
    %c0_178 = arith.constant 0 : index
    %c0_179 = arith.constant 0 : index
    %c0_180 = arith.constant 0 : index
    %230 = vector.load %arg6[%c1_177, %c0_178, %c0_179, %c0_180] : memref<2x4x32x8xbf16, #tpu.memory_space<vmem>>, vector<1x1x32x8xbf16>
    %231 = vector.shape_cast %230 : vector<1x1x32x8xbf16> to vector<32x8xbf16>
    %cst_181 = arith.constant dense<0.000000e+00> : vector<16x8xf32>
    %232 = tpu.matmul %229, %231, %cst_181 {dimension_numbers = #tpu.dot_dimension_numbers<[1], [0], [0], [1], [0, 0, 1, 1], [], []>} : vector<16x32xbf16>, vector<32x8xbf16>, vector<16x8xf32> -> vector<16x8xf32>
    %c1_182 = arith.constant 1 : index
    %c0_183 = arith.constant 0 : index
    %c0_184 = arith.constant 0 : index
    %c0_185 = arith.constant 0 : index
    %233 = vector.load %arg7[%c1_182, %c0_183, %c0_184, %c0_185] : memref<2x4x1x8xf32, #tpu.memory_space<vmem>>, vector<1x1x1x8xf32>
    %234 = vector.shape_cast %233 : vector<1x1x1x8xf32> to vector<1x8xf32>
    %235 = vector.broadcast %234 : vector<1x8xf32> to vector<16x8xf32>
    %236 = arith.addf %232, %235 : vector<16x8xf32>
    %c1_186 = arith.constant 1 : index
    %c1_187 = arith.constant 1 : index
    %c0_188 = arith.constant 0 : index
    %c0_189 = arith.constant 0 : index
    %237 = vector.load %arg6[%c1_186, %c1_187, %c0_188, %c0_189] : memref<2x4x32x8xbf16, #tpu.memory_space<vmem>>, vector<1x1x32x8xbf16>
    %238 = vector.shape_cast %237 : vector<1x1x32x8xbf16> to vector<32x8xbf16>
    %cst_190 = arith.constant dense<0.000000e+00> : vector<16x8xf32>
    %239 = tpu.matmul %229, %238, %cst_190 {dimension_numbers = #tpu.dot_dimension_numbers<[1], [0], [0], [1], [0, 0, 1, 1], [], []>} : vector<16x32xbf16>, vector<32x8xbf16>, vector<16x8xf32> -> vector<16x8xf32>
    %c1_191 = arith.constant 1 : index
    %c1_192 = arith.constant 1 : index
    %c0_193 = arith.constant 0 : index
    %c0_194 = arith.constant 0 : index
    %240 = vector.load %arg7[%c1_191, %c1_192, %c0_193, %c0_194] : memref<2x4x1x8xf32, #tpu.memory_space<vmem>>, vector<1x1x1x8xf32>
    %241 = vector.shape_cast %240 : vector<1x1x1x8xf32> to vector<1x8xf32>
    %242 = vector.broadcast %241 : vector<1x8xf32> to vector<16x8xf32>
    %243 = arith.addf %239, %242 : vector<16x8xf32>
    %c1_195 = arith.constant 1 : index
    %c2_196 = arith.constant 2 : index
    %c0_197 = arith.constant 0 : index
    %c0_198 = arith.constant 0 : index
    %244 = vector.load %arg6[%c1_195, %c2_196, %c0_197, %c0_198] : memref<2x4x32x8xbf16, #tpu.memory_space<vmem>>, vector<1x1x32x8xbf16>
    %245 = vector.shape_cast %244 : vector<1x1x32x8xbf16> to vector<32x8xbf16>
    %cst_199 = arith.constant dense<0.000000e+00> : vector<16x8xf32>
    %246 = tpu.matmul %229, %245, %cst_199 {dimension_numbers = #tpu.dot_dimension_numbers<[1], [0], [0], [1], [0, 0, 1, 1], [], []>} : vector<16x32xbf16>, vector<32x8xbf16>, vector<16x8xf32> -> vector<16x8xf32>
    %c1_200 = arith.constant 1 : index
    %c2_201 = arith.constant 2 : index
    %c0_202 = arith.constant 0 : index
    %c0_203 = arith.constant 0 : index
    %247 = vector.load %arg7[%c1_200, %c2_201, %c0_202, %c0_203] : memref<2x4x1x8xf32, #tpu.memory_space<vmem>>, vector<1x1x1x8xf32>
    %248 = vector.shape_cast %247 : vector<1x1x1x8xf32> to vector<1x8xf32>
    %249 = vector.broadcast %248 : vector<1x8xf32> to vector<16x8xf32>
    %250 = arith.addf %246, %249 : vector<16x8xf32>
    %c1_204 = arith.constant 1 : index
    %c3_205 = arith.constant 3 : index
    %c0_206 = arith.constant 0 : index
    %c0_207 = arith.constant 0 : index
    %251 = vector.load %arg6[%c1_204, %c3_205, %c0_206, %c0_207] : memref<2x4x32x8xbf16, #tpu.memory_space<vmem>>, vector<1x1x32x8xbf16>
    %252 = vector.shape_cast %251 : vector<1x1x32x8xbf16> to vector<32x8xbf16>
    %cst_208 = arith.constant dense<0.000000e+00> : vector<16x8xf32>
    %253 = tpu.matmul %229, %252, %cst_208 {dimension_numbers = #tpu.dot_dimension_numbers<[1], [0], [0], [1], [0, 0, 1, 1], [], []>} : vector<16x32xbf16>, vector<32x8xbf16>, vector<16x8xf32> -> vector<16x8xf32>
    %c1_209 = arith.constant 1 : index
    %c3_210 = arith.constant 3 : index
    %c0_211 = arith.constant 0 : index
    %c0_212 = arith.constant 0 : index
    %254 = vector.load %arg7[%c1_209, %c3_210, %c0_211, %c0_212] : memref<2x4x1x8xf32, #tpu.memory_space<vmem>>, vector<1x1x1x8xf32>
    %255 = vector.shape_cast %254 : vector<1x1x1x8xf32> to vector<1x8xf32>
    %256 = vector.broadcast %255 : vector<1x8xf32> to vector<16x8xf32>
    %257 = arith.addf %253, %256 : vector<16x8xf32>
    %258 = vector.shape_cast %236 : vector<16x8xf32> to vector<1x16x8xf32>
    %259 = vector.shape_cast %243 : vector<16x8xf32> to vector<1x16x8xf32>
    %260 = vector.shape_cast %250 : vector<16x8xf32> to vector<1x16x8xf32>
    %261 = vector.shape_cast %257 : vector<16x8xf32> to vector<1x16x8xf32>
    %262 = tpu.concatenate %258, %259, %260, %261 in 0 : vector<1x16x8xf32>, vector<1x16x8xf32>, vector<1x16x8xf32>, vector<1x16x8xf32> -> vector<4x16x8xf32>
    %c1_213 = arith.constant 1 : index
    %c0_214 = arith.constant 0 : index
    %c0_215 = arith.constant 0 : index
    %c0_216 = arith.constant 0 : index
    %263 = vector.load %arg8[%c1_213, %c0_214, %c0_215, %c0_216] : memref<2x4x32x8xbf16, #tpu.memory_space<vmem>>, vector<1x1x32x8xbf16>
    %264 = vector.shape_cast %263 : vector<1x1x32x8xbf16> to vector<32x8xbf16>
    %cst_217 = arith.constant dense<0.000000e+00> : vector<16x8xf32>
    %265 = tpu.matmul %229, %264, %cst_217 {dimension_numbers = #tpu.dot_dimension_numbers<[1], [0], [0], [1], [0, 0, 1, 1], [], []>} : vector<16x32xbf16>, vector<32x8xbf16>, vector<16x8xf32> -> vector<16x8xf32>
    %c1_218 = arith.constant 1 : index
    %c0_219 = arith.constant 0 : index
    %c0_220 = arith.constant 0 : index
    %c0_221 = arith.constant 0 : index
    %266 = vector.load %arg9[%c1_218, %c0_219, %c0_220, %c0_221] : memref<2x4x1x8xf32, #tpu.memory_space<vmem>>, vector<1x1x1x8xf32>
    %267 = vector.shape_cast %266 : vector<1x1x1x8xf32> to vector<1x8xf32>
    %268 = vector.broadcast %267 : vector<1x8xf32> to vector<16x8xf32>
    %269 = arith.addf %265, %268 : vector<16x8xf32>
    %c1_222 = arith.constant 1 : index
    %c1_223 = arith.constant 1 : index
    %c0_224 = arith.constant 0 : index
    %c0_225 = arith.constant 0 : index
    %270 = vector.load %arg8[%c1_222, %c1_223, %c0_224, %c0_225] : memref<2x4x32x8xbf16, #tpu.memory_space<vmem>>, vector<1x1x32x8xbf16>
    %271 = vector.shape_cast %270 : vector<1x1x32x8xbf16> to vector<32x8xbf16>
    %cst_226 = arith.constant dense<0.000000e+00> : vector<16x8xf32>
    %272 = tpu.matmul %229, %271, %cst_226 {dimension_numbers = #tpu.dot_dimension_numbers<[1], [0], [0], [1], [0, 0, 1, 1], [], []>} : vector<16x32xbf16>, vector<32x8xbf16>, vector<16x8xf32> -> vector<16x8xf32>
    %c1_227 = arith.constant 1 : index
    %c1_228 = arith.constant 1 : index
    %c0_229 = arith.constant 0 : index
    %c0_230 = arith.constant 0 : index
    %273 = vector.load %arg9[%c1_227, %c1_228, %c0_229, %c0_230] : memref<2x4x1x8xf32, #tpu.memory_space<vmem>>, vector<1x1x1x8xf32>
    %274 = vector.shape_cast %273 : vector<1x1x1x8xf32> to vector<1x8xf32>
    %275 = vector.broadcast %274 : vector<1x8xf32> to vector<16x8xf32>
    %276 = arith.addf %272, %275 : vector<16x8xf32>
    %c1_231 = arith.constant 1 : index
    %c2_232 = arith.constant 2 : index
    %c0_233 = arith.constant 0 : index
    %c0_234 = arith.constant 0 : index
    %277 = vector.load %arg8[%c1_231, %c2_232, %c0_233, %c0_234] : memref<2x4x32x8xbf16, #tpu.memory_space<vmem>>, vector<1x1x32x8xbf16>
    %278 = vector.shape_cast %277 : vector<1x1x32x8xbf16> to vector<32x8xbf16>
    %cst_235 = arith.constant dense<0.000000e+00> : vector<16x8xf32>
    %279 = tpu.matmul %229, %278, %cst_235 {dimension_numbers = #tpu.dot_dimension_numbers<[1], [0], [0], [1], [0, 0, 1, 1], [], []>} : vector<16x32xbf16>, vector<32x8xbf16>, vector<16x8xf32> -> vector<16x8xf32>
    %c1_236 = arith.constant 1 : index
    %c2_237 = arith.constant 2 : index
    %c0_238 = arith.constant 0 : index
    %c0_239 = arith.constant 0 : index
    %280 = vector.load %arg9[%c1_236, %c2_237, %c0_238, %c0_239] : memref<2x4x1x8xf32, #tpu.memory_space<vmem>>, vector<1x1x1x8xf32>
    %281 = vector.shape_cast %280 : vector<1x1x1x8xf32> to vector<1x8xf32>
    %282 = vector.broadcast %281 : vector<1x8xf32> to vector<16x8xf32>
    %283 = arith.addf %279, %282 : vector<16x8xf32>
    %c1_240 = arith.constant 1 : index
    %c3_241 = arith.constant 3 : index
    %c0_242 = arith.constant 0 : index
    %c0_243 = arith.constant 0 : index
    %284 = vector.load %arg8[%c1_240, %c3_241, %c0_242, %c0_243] : memref<2x4x32x8xbf16, #tpu.memory_space<vmem>>, vector<1x1x32x8xbf16>
    %285 = vector.shape_cast %284 : vector<1x1x32x8xbf16> to vector<32x8xbf16>
    %cst_244 = arith.constant dense<0.000000e+00> : vector<16x8xf32>
    %286 = tpu.matmul %229, %285, %cst_244 {dimension_numbers = #tpu.dot_dimension_numbers<[1], [0], [0], [1], [0, 0, 1, 1], [], []>} : vector<16x32xbf16>, vector<32x8xbf16>, vector<16x8xf32> -> vector<16x8xf32>
    %c1_245 = arith.constant 1 : index
    %c3_246 = arith.constant 3 : index
    %c0_247 = arith.constant 0 : index
    %c0_248 = arith.constant 0 : index
    %287 = vector.load %arg9[%c1_245, %c3_246, %c0_247, %c0_248] : memref<2x4x1x8xf32, #tpu.memory_space<vmem>>, vector<1x1x1x8xf32>
    %288 = vector.shape_cast %287 : vector<1x1x1x8xf32> to vector<1x8xf32>
    %289 = vector.broadcast %288 : vector<1x8xf32> to vector<16x8xf32>
    %290 = arith.addf %286, %289 : vector<16x8xf32>
    %291 = vector.shape_cast %269 : vector<16x8xf32> to vector<1x16x8xf32>
    %292 = vector.shape_cast %276 : vector<16x8xf32> to vector<1x16x8xf32>
    %293 = vector.shape_cast %283 : vector<16x8xf32> to vector<1x16x8xf32>
    %294 = vector.shape_cast %290 : vector<16x8xf32> to vector<1x16x8xf32>
    %295 = tpu.concatenate %291, %292, %293, %294 in 0 : vector<1x16x8xf32>, vector<1x16x8xf32>, vector<1x16x8xf32>, vector<1x16x8xf32> -> vector<4x16x8xf32>
    %c1_249 = arith.constant 1 : index
    %c0_250 = arith.constant 0 : index
    %c0_251 = arith.constant 0 : index
    %c0_252 = arith.constant 0 : index
    %296 = vector.load %arg10[%c1_249, %c0_250, %c0_251, %c0_252] : memref<2x4x32x8xbf16, #tpu.memory_space<vmem>>, vector<1x1x32x8xbf16>
    %297 = vector.shape_cast %296 : vector<1x1x32x8xbf16> to vector<32x8xbf16>
    %cst_253 = arith.constant dense<0.000000e+00> : vector<16x8xf32>
    %298 = tpu.matmul %229, %297, %cst_253 {dimension_numbers = #tpu.dot_dimension_numbers<[1], [0], [0], [1], [0, 0, 1, 1], [], []>} : vector<16x32xbf16>, vector<32x8xbf16>, vector<16x8xf32> -> vector<16x8xf32>
    %c1_254 = arith.constant 1 : index
    %c0_255 = arith.constant 0 : index
    %c0_256 = arith.constant 0 : index
    %c0_257 = arith.constant 0 : index
    %299 = vector.load %arg11[%c1_254, %c0_255, %c0_256, %c0_257] : memref<2x4x1x8xf32, #tpu.memory_space<vmem>>, vector<1x1x1x8xf32>
    %300 = vector.shape_cast %299 : vector<1x1x1x8xf32> to vector<1x8xf32>
    %301 = vector.broadcast %300 : vector<1x8xf32> to vector<16x8xf32>
    %302 = arith.addf %298, %301 : vector<16x8xf32>
    %c1_258 = arith.constant 1 : index
    %c1_259 = arith.constant 1 : index
    %c0_260 = arith.constant 0 : index
    %c0_261 = arith.constant 0 : index
    %303 = vector.load %arg10[%c1_258, %c1_259, %c0_260, %c0_261] : memref<2x4x32x8xbf16, #tpu.memory_space<vmem>>, vector<1x1x32x8xbf16>
    %304 = vector.shape_cast %303 : vector<1x1x32x8xbf16> to vector<32x8xbf16>
    %cst_262 = arith.constant dense<0.000000e+00> : vector<16x8xf32>
    %305 = tpu.matmul %229, %304, %cst_262 {dimension_numbers = #tpu.dot_dimension_numbers<[1], [0], [0], [1], [0, 0, 1, 1], [], []>} : vector<16x32xbf16>, vector<32x8xbf16>, vector<16x8xf32> -> vector<16x8xf32>
    %c1_263 = arith.constant 1 : index
    %c1_264 = arith.constant 1 : index
    %c0_265 = arith.constant 0 : index
    %c0_266 = arith.constant 0 : index
    %306 = vector.load %arg11[%c1_263, %c1_264, %c0_265, %c0_266] : memref<2x4x1x8xf32, #tpu.memory_space<vmem>>, vector<1x1x1x8xf32>
    %307 = vector.shape_cast %306 : vector<1x1x1x8xf32> to vector<1x8xf32>
    %308 = vector.broadcast %307 : vector<1x8xf32> to vector<16x8xf32>
    %309 = arith.addf %305, %308 : vector<16x8xf32>
    %c1_267 = arith.constant 1 : index
    %c2_268 = arith.constant 2 : index
    %c0_269 = arith.constant 0 : index
    %c0_270 = arith.constant 0 : index
    %310 = vector.load %arg10[%c1_267, %c2_268, %c0_269, %c0_270] : memref<2x4x32x8xbf16, #tpu.memory_space<vmem>>, vector<1x1x32x8xbf16>
    %311 = vector.shape_cast %310 : vector<1x1x32x8xbf16> to vector<32x8xbf16>
    %cst_271 = arith.constant dense<0.000000e+00> : vector<16x8xf32>
    %312 = tpu.matmul %229, %311, %cst_271 {dimension_numbers = #tpu.dot_dimension_numbers<[1], [0], [0], [1], [0, 0, 1, 1], [], []>} : vector<16x32xbf16>, vector<32x8xbf16>, vector<16x8xf32> -> vector<16x8xf32>
    %c1_272 = arith.constant 1 : index
    %c2_273 = arith.constant 2 : index
    %c0_274 = arith.constant 0 : index
    %c0_275 = arith.constant 0 : index
    %313 = vector.load %arg11[%c1_272, %c2_273, %c0_274, %c0_275] : memref<2x4x1x8xf32, #tpu.memory_space<vmem>>, vector<1x1x1x8xf32>
    %314 = vector.shape_cast %313 : vector<1x1x1x8xf32> to vector<1x8xf32>
    %315 = vector.broadcast %314 : vector<1x8xf32> to vector<16x8xf32>
    %316 = arith.addf %312, %315 : vector<16x8xf32>
    %c1_276 = arith.constant 1 : index
    %c3_277 = arith.constant 3 : index
    %c0_278 = arith.constant 0 : index
    %c0_279 = arith.constant 0 : index
    %317 = vector.load %arg10[%c1_276, %c3_277, %c0_278, %c0_279] : memref<2x4x32x8xbf16, #tpu.memory_space<vmem>>, vector<1x1x32x8xbf16>
    %318 = vector.shape_cast %317 : vector<1x1x32x8xbf16> to vector<32x8xbf16>
    %cst_280 = arith.constant dense<0.000000e+00> : vector<16x8xf32>
    %319 = tpu.matmul %229, %318, %cst_280 {dimension_numbers = #tpu.dot_dimension_numbers<[1], [0], [0], [1], [0, 0, 1, 1], [], []>} : vector<16x32xbf16>, vector<32x8xbf16>, vector<16x8xf32> -> vector<16x8xf32>
    %c1_281 = arith.constant 1 : index
    %c3_282 = arith.constant 3 : index
    %c0_283 = arith.constant 0 : index
    %c0_284 = arith.constant 0 : index
    %320 = vector.load %arg11[%c1_281, %c3_282, %c0_283, %c0_284] : memref<2x4x1x8xf32, #tpu.memory_space<vmem>>, vector<1x1x1x8xf32>
    %321 = vector.shape_cast %320 : vector<1x1x1x8xf32> to vector<1x8xf32>
    %322 = vector.broadcast %321 : vector<1x8xf32> to vector<16x8xf32>
    %323 = arith.addf %319, %322 : vector<16x8xf32>
    %324 = vector.shape_cast %302 : vector<16x8xf32> to vector<1x16x8xf32>
    %325 = vector.shape_cast %309 : vector<16x8xf32> to vector<1x16x8xf32>
    %326 = vector.shape_cast %316 : vector<16x8xf32> to vector<1x16x8xf32>
    %327 = vector.shape_cast %323 : vector<16x8xf32> to vector<1x16x8xf32>
    %328 = tpu.concatenate %324, %325, %326, %327 in 0 : vector<1x16x8xf32>, vector<1x16x8xf32>, vector<1x16x8xf32>, vector<1x16x8xf32> -> vector<4x16x8xf32>
    "tpu.trace_start"() <{level = 10 : i32, message = "hqd,hkd->hqk"}> : () -> ()
    %cst_285 = arith.constant dense<0.000000e+00> : vector<4x16x16xf32>
    %329 = tpu.matmul %262, %295, %cst_285 {dimension_numbers = #tpu.dot_dimension_numbers<[2], [2], [1], [1], [0, 0, 0, 1, 1, 1], [0], [0]>} : vector<4x16x8xf32>, vector<4x16x8xf32>, vector<4x16x16xf32> -> vector<4x16x16xf32>
    "tpu.trace_stop"() : () -> ()
    %cst_286 = arith.constant 0.353553385 : f32
    %330 = vector.broadcast %cst_286 : f32 to vector<4x16x16xf32>
    %331 = arith.mulf %329, %330 : vector<4x16x16xf32>
    %332 = vector.shape_cast %7 : vector<16x16xf32> to vector<1x16x16xf32>
    %333 = vector.broadcast %332 : vector<1x16x16xf32> to vector<4x16x16xf32>
    %334 = arith.addf %331, %333 : vector<4x16x16xf32>
    %cst_287 = arith.constant dense<0xFF800000> : vector<4x16xf32>
    %335 = vector.multi_reduction <maximumf>, %334, %cst_287 [2] : vector<4x16x16xf32> to vector<4x16xf32>
    %336 = vector.shape_cast %335 : vector<4x16xf32> to vector<4x16x1xf32>
    %337 = vector.broadcast %336 : vector<4x16x1xf32> to vector<4x16x16xf32>
    %338 = arith.subf %334, %337 : vector<4x16x16xf32>
    %339 = math.exp %338 : vector<4x16x16xf32>
    %cst_288 = arith.constant dense<0.000000e+00> : vector<4x16xf32>
    %340 = vector.multi_reduction <add>, %339, %cst_288 [2] : vector<4x16x16xf32> to vector<4x16xf32>
    %341 = vector.shape_cast %340 : vector<4x16xf32> to vector<4x16x1xf32>
    %342 = tpu.reciprocal %341 {approx = true} : vector<4x16x1xf32> -> vector<4x16x1xf32>
    %343 = vector.broadcast %342 : vector<4x16x1xf32> to vector<4x16x16xf32>
    %344 = arith.mulf %339, %343 : vector<4x16x16xf32>
    "tpu.trace_start"() <{level = 10 : i32, message = "hqk,hkd->hqd"}> : () -> ()
    %cst_289 = arith.constant dense<0.000000e+00> : vector<4x16x8xf32>
    %345 = tpu.matmul %344, %328, %cst_289 {dimension_numbers = #tpu.dot_dimension_numbers<[2], [1], [1], [2], [0, 0, 0, 1, 1, 2], [0], [0]>} : vector<4x16x16xf32>, vector<4x16x8xf32>, vector<4x16x8xf32> -> vector<4x16x8xf32>
    "tpu.trace_stop"() : () -> ()
    %c1_290 = arith.constant 1 : index
    %c0_291 = arith.constant 0 : index
    %c0_292 = arith.constant 0 : index
    %346 = vector.load %arg13[%c1_290, %c0_291, %c0_292] : memref<2x1x32xf32, #tpu.memory_space<vmem>>, vector<1x1x32xf32>
    %347 = vector.shape_cast %346 : vector<1x1x32xf32> to vector<1x32xf32>
    %348 = vector.extract_strided_slice %345 {offsets = [0, 0, 0], sizes = [1, 16, 8], strides = [1, 1, 1]} : vector<4x16x8xf32> to vector<1x16x8xf32>
    %349 = vector.shape_cast %348 : vector<1x16x8xf32> to vector<16x8xf32>
    %350 = arith.truncf %349 : vector<16x8xf32> to vector<16x8xbf16>
    %c1_293 = arith.constant 1 : index
    %c0_294 = arith.constant 0 : index
    %c0_295 = arith.constant 0 : index
    %c0_296 = arith.constant 0 : index
    %351 = vector.load %arg12[%c1_293, %c0_294, %c0_295, %c0_296] : memref<2x4x8x32xbf16, #tpu.memory_space<vmem>>, vector<1x1x8x32xbf16>
    %352 = vector.shape_cast %351 : vector<1x1x8x32xbf16> to vector<8x32xbf16>
    %cst_297 = arith.constant dense<0.000000e+00> : vector<16x32xf32>
    %353 = tpu.matmul %350, %352, %cst_297 {dimension_numbers = #tpu.dot_dimension_numbers<[1], [0], [0], [1], [0, 0, 1, 1], [], []>} : vector<16x8xbf16>, vector<8x32xbf16>, vector<16x32xf32> -> vector<16x32xf32>
    %354 = vector.broadcast %347 : vector<1x32xf32> to vector<16x32xf32>
    %355 = arith.addf %354, %353 : vector<16x32xf32>
    %356 = vector.extract_strided_slice %345 {offsets = [1, 0, 0], sizes = [1, 16, 8], strides = [1, 1, 1]} : vector<4x16x8xf32> to vector<1x16x8xf32>
    %357 = vector.shape_cast %356 : vector<1x16x8xf32> to vector<16x8xf32>
    %358 = arith.truncf %357 : vector<16x8xf32> to vector<16x8xbf16>
    %c1_298 = arith.constant 1 : index
    %c1_299 = arith.constant 1 : index
    %c0_300 = arith.constant 0 : index
    %c0_301 = arith.constant 0 : index
    %359 = vector.load %arg12[%c1_298, %c1_299, %c0_300, %c0_301] : memref<2x4x8x32xbf16, #tpu.memory_space<vmem>>, vector<1x1x8x32xbf16>
    %360 = vector.shape_cast %359 : vector<1x1x8x32xbf16> to vector<8x32xbf16>
    %cst_302 = arith.constant dense<0.000000e+00> : vector<16x32xf32>
    %361 = tpu.matmul %358, %360, %cst_302 {dimension_numbers = #tpu.dot_dimension_numbers<[1], [0], [0], [1], [0, 0, 1, 1], [], []>} : vector<16x8xbf16>, vector<8x32xbf16>, vector<16x32xf32> -> vector<16x32xf32>
    %362 = arith.addf %355, %361 : vector<16x32xf32>
    %363 = vector.extract_strided_slice %345 {offsets = [2, 0, 0], sizes = [1, 16, 8], strides = [1, 1, 1]} : vector<4x16x8xf32> to vector<1x16x8xf32>
    %364 = vector.shape_cast %363 : vector<1x16x8xf32> to vector<16x8xf32>
    %365 = arith.truncf %364 : vector<16x8xf32> to vector<16x8xbf16>
    %c1_303 = arith.constant 1 : index
    %c2_304 = arith.constant 2 : index
    %c0_305 = arith.constant 0 : index
    %c0_306 = arith.constant 0 : index
    %366 = vector.load %arg12[%c1_303, %c2_304, %c0_305, %c0_306] : memref<2x4x8x32xbf16, #tpu.memory_space<vmem>>, vector<1x1x8x32xbf16>
    %367 = vector.shape_cast %366 : vector<1x1x8x32xbf16> to vector<8x32xbf16>
    %cst_307 = arith.constant dense<0.000000e+00> : vector<16x32xf32>
    %368 = tpu.matmul %365, %367, %cst_307 {dimension_numbers = #tpu.dot_dimension_numbers<[1], [0], [0], [1], [0, 0, 1, 1], [], []>} : vector<16x8xbf16>, vector<8x32xbf16>, vector<16x32xf32> -> vector<16x32xf32>
    %369 = arith.addf %362, %368 : vector<16x32xf32>
    %370 = vector.extract_strided_slice %345 {offsets = [3, 0, 0], sizes = [1, 16, 8], strides = [1, 1, 1]} : vector<4x16x8xf32> to vector<1x16x8xf32>
    %371 = vector.shape_cast %370 : vector<1x16x8xf32> to vector<16x8xf32>
    %372 = arith.truncf %371 : vector<16x8xf32> to vector<16x8xbf16>
    %c1_308 = arith.constant 1 : index
    %c3_309 = arith.constant 3 : index
    %c0_310 = arith.constant 0 : index
    %c0_311 = arith.constant 0 : index
    %373 = vector.load %arg12[%c1_308, %c3_309, %c0_310, %c0_311] : memref<2x4x8x32xbf16, #tpu.memory_space<vmem>>, vector<1x1x8x32xbf16>
    %374 = vector.shape_cast %373 : vector<1x1x8x32xbf16> to vector<8x32xbf16>
    %cst_312 = arith.constant dense<0.000000e+00> : vector<16x32xf32>
    %375 = tpu.matmul %372, %374, %cst_312 {dimension_numbers = #tpu.dot_dimension_numbers<[1], [0], [0], [1], [0, 0, 1, 1], [], []>} : vector<16x8xbf16>, vector<8x32xbf16>, vector<16x32xf32> -> vector<16x32xf32>
    %376 = arith.addf %369, %375 : vector<16x32xf32>
    %377 = arith.addf %214, %376 : vector<16x32xf32>
    %c1_313 = arith.constant 1 : index
    %c0_314 = arith.constant 0 : index
    %c0_315 = arith.constant 0 : index
    %378 = vector.load %arg14[%c1_313, %c0_314, %c0_315] : memref<2x1x32xf32, #tpu.memory_space<vmem>>, vector<1x1x32xf32>
    %379 = vector.shape_cast %378 : vector<1x1x32xf32> to vector<1x32xf32>
    %380 = arith.mulf %377, %377 : vector<16x32xf32>
    %cst_316 = arith.constant dense<0.000000e+00> : vector<16xf32>
    %381 = vector.multi_reduction <add>, %380, %cst_316 [1] : vector<16x32xf32> to vector<16xf32>
    %382 = vector.shape_cast %381 : vector<16xf32> to vector<16x1xf32>
    %cst_317 = arith.constant 3.200000e+01 : f32
    %383 = vector.broadcast %cst_317 : f32 to vector<16x1xf32>
    %384 = arith.divf %382, %383 : vector<16x1xf32>
    %cst_318 = arith.constant 9.99999974E-6 : f32
    %385 = vector.broadcast %cst_318 : f32 to vector<16x1xf32>
    %386 = arith.addf %384, %385 : vector<16x1xf32>
    %387 = math.rsqrt %386 : vector<16x1xf32>
    %388 = vector.broadcast %387 : vector<16x1xf32> to vector<16x32xf32>
    %389 = arith.mulf %377, %388 : vector<16x32xf32>
    %390 = vector.broadcast %379 : vector<1x32xf32> to vector<16x32xf32>
    %391 = arith.mulf %389, %390 : vector<16x32xf32>
    %392 = arith.truncf %391 : vector<16x32xf32> to vector<16x32xbf16>
    %c1_319 = arith.constant 1 : index
    %c0_320 = arith.constant 0 : index
    %c0_321 = arith.constant 0 : index
    %393 = vector.load %arg15[%c1_319, %c0_320, %c0_321] : memref<2x32x64xbf16, #tpu.memory_space<vmem>>, vector<1x32x64xbf16>
    %394 = vector.shape_cast %393 : vector<1x32x64xbf16> to vector<32x64xbf16>
    %cst_322 = arith.constant dense<0.000000e+00> : vector<16x64xf32>
    %395 = tpu.matmul %392, %394, %cst_322 {dimension_numbers = #tpu.dot_dimension_numbers<[1], [0], [0], [1], [0, 0, 1, 1], [], []>} : vector<16x32xbf16>, vector<32x64xbf16>, vector<16x64xf32> -> vector<16x64xf32>
    %c1_323 = arith.constant 1 : index
    %c0_324 = arith.constant 0 : index
    %c0_325 = arith.constant 0 : index
    %396 = vector.load %arg16[%c1_323, %c0_324, %c0_325] : memref<2x1x64xf32, #tpu.memory_space<vmem>>, vector<1x1x64xf32>
    %397 = vector.shape_cast %396 : vector<1x1x64xf32> to vector<1x64xf32>
    %398 = vector.broadcast %397 : vector<1x64xf32> to vector<16x64xf32>
    %399 = arith.addf %395, %398 : vector<16x64xf32>
    %400 = arith.mulf %399, %399 : vector<16x64xf32>
    %401 = arith.mulf %399, %400 : vector<16x64xf32>
    %cst_326 = arith.constant 4.471500e-02 : f32
    %402 = vector.broadcast %cst_326 : f32 to vector<16x64xf32>
    %403 = arith.mulf %402, %401 : vector<16x64xf32>
    %404 = arith.addf %399, %403 : vector<16x64xf32>
    %cst_327 = arith.constant 0.797884583 : f32
    %405 = vector.broadcast %cst_327 : f32 to vector<16x64xf32>
    %406 = arith.mulf %405, %404 : vector<16x64xf32>
    %407 = math.tanh %406 : vector<16x64xf32>
    %cst_328 = arith.constant 1.000000e+00 : f32
    %408 = vector.broadcast %cst_328 : f32 to vector<16x64xf32>
    %409 = arith.addf %408, %407 : vector<16x64xf32>
    %cst_329 = arith.constant 5.000000e-01 : f32
    %410 = vector.broadcast %cst_329 : f32 to vector<16x64xf32>
    %411 = arith.mulf %410, %409 : vector<16x64xf32>
    %412 = arith.mulf %399, %411 : vector<16x64xf32>
    %413 = arith.truncf %412 : vector<16x64xf32> to vector<16x64xbf16>
    %c1_330 = arith.constant 1 : index
    %c0_331 = arith.constant 0 : index
    %c0_332 = arith.constant 0 : index
    %414 = vector.load %arg17[%c1_330, %c0_331, %c0_332] : memref<2x64x32xbf16, #tpu.memory_space<vmem>>, vector<1x64x32xbf16>
    %415 = vector.shape_cast %414 : vector<1x64x32xbf16> to vector<64x32xbf16>
    %cst_333 = arith.constant dense<0.000000e+00> : vector<16x32xf32>
    %416 = tpu.matmul %413, %415, %cst_333 {dimension_numbers = #tpu.dot_dimension_numbers<[1], [0], [0], [1], [0, 0, 1, 1], [], []>} : vector<16x64xbf16>, vector<64x32xbf16>, vector<16x32xf32> -> vector<16x32xf32>
    %c1_334 = arith.constant 1 : index
    %c0_335 = arith.constant 0 : index
    %c0_336 = arith.constant 0 : index
    %417 = vector.load %arg18[%c1_334, %c0_335, %c0_336] : memref<2x1x32xf32, #tpu.memory_space<vmem>>, vector<1x1x32xf32>
    %418 = vector.shape_cast %417 : vector<1x1x32xf32> to vector<1x32xf32>
    %419 = vector.broadcast %418 : vector<1x32xf32> to vector<16x32xf32>
    %420 = arith.addf %416, %419 : vector<16x32xf32>
    %421 = arith.addf %377, %420 : vector<16x32xf32>
    %c0_337 = arith.constant 0 : index
    %c0_338 = arith.constant 0 : index
    %422 = vector.load %arg19[%c0_337, %c0_338] : memref<1x32xf32, #tpu.memory_space<vmem>>, vector<1x32xf32>
    %423 = arith.mulf %421, %421 : vector<16x32xf32>
    %cst_339 = arith.constant dense<0.000000e+00> : vector<16xf32>
    %424 = vector.multi_reduction <add>, %423, %cst_339 [1] : vector<16x32xf32> to vector<16xf32>
    %425 = vector.shape_cast %424 : vector<16xf32> to vector<16x1xf32>
    %cst_340 = arith.constant 3.200000e+01 : f32
    %426 = vector.broadcast %cst_340 : f32 to vector<16x1xf32>
    %427 = arith.divf %425, %426 : vector<16x1xf32>
    %cst_341 = arith.constant 9.99999974E-6 : f32
    %428 = vector.broadcast %cst_341 : f32 to vector<16x1xf32>
    %429 = arith.addf %427, %428 : vector<16x1xf32>
    %430 = math.rsqrt %429 : vector<16x1xf32>
    %431 = vector.broadcast %430 : vector<16x1xf32> to vector<16x32xf32>
    %432 = arith.mulf %421, %431 : vector<16x32xf32>
    %433 = vector.broadcast %422 : vector<1x32xf32> to vector<16x32xf32>
    %434 = arith.mulf %432, %433 : vector<16x32xf32>
    %435 = vector.shape_cast %434 : vector<16x32xf32> to vector<2x8x32xf32>
    %c0_342 = arith.constant 0 : index
    %c0_343 = arith.constant 0 : index
    %436 = vector.load %arg20[%c0_342, %c0_343] : memref<1x32xf32, #tpu.memory_space<vmem>>, vector<1x32xf32>
    %437 = vector.shape_cast %436 : vector<1x32xf32> to vector<1x1x32xf32>
    %438 = vector.broadcast %437 : vector<1x1x32xf32> to vector<2x8x32xf32>
    %439 = arith.mulf %435, %438 : vector<2x8x32xf32>
    %cst_344 = arith.constant dense<0.000000e+00> : vector<2x8xf32>
    %440 = vector.multi_reduction <add>, %439, %cst_344 [2] : vector<2x8x32xf32> to vector<2x8xf32>
    %441 = vector.shape_cast %440 : vector<2x8xf32> to vector<2x8x1xf32>
    %c0_345 = arith.constant 0 : index
    %c0_346 = arith.constant 0 : index
    %442 = vector.load %arg21[%c0_345, %c0_346] : memref<1x1xf32, #tpu.memory_space<vmem>>, vector<1x1xf32>
    %443 = vector.shape_cast %442 : vector<1x1xf32> to vector<1x1x1xf32>
    %444 = vector.broadcast %443 : vector<1x1x1xf32> to vector<2x8x1xf32>
    %445 = arith.addf %441, %444 : vector<2x8x1xf32>
    %cst_347 = arith.constant dense<0xFF800000> : vector<2x1xf32>
    %446 = vector.multi_reduction <maximumf>, %445, %cst_347 [1] : vector<2x8x1xf32> to vector<2x1xf32>
    %447 = vector.shape_cast %446 : vector<2x1xf32> to vector<2x1x1xf32>
    %448 = vector.broadcast %447 : vector<2x1x1xf32> to vector<2x8x1xf32>
    %449 = arith.subf %445, %448 : vector<2x8x1xf32>
    %450 = math.exp %449 : vector<2x8x1xf32>
    %cst_348 = arith.constant dense<0.000000e+00> : vector<2x1xf32>
    %451 = vector.multi_reduction <add>, %450, %cst_348 [1] : vector<2x8x1xf32> to vector<2x1xf32>
    %452 = vector.shape_cast %451 : vector<2x1xf32> to vector<2x1x1xf32>
    %453 = tpu.reciprocal %452 {approx = true} : vector<2x1x1xf32> -> vector<2x1x1xf32>
    %454 = vector.broadcast %453 : vector<2x1x1xf32> to vector<2x8x1xf32>
    %455 = arith.mulf %450, %454 : vector<2x8x1xf32>
    %456 = vector.broadcast %455 : vector<2x8x1xf32> to vector<2x8x32xf32>
    %457 = arith.mulf %456, %435 : vector<2x8x32xf32>
    %cst_349 = arith.constant dense<0.000000e+00> : vector<2x32xf32>
    %458 = vector.multi_reduction <add>, %457, %cst_349 [1] : vector<2x8x32xf32> to vector<2x32xf32>
    %459 = arith.truncf %458 : vector<2x32xf32> to vector<2x32xbf16>
    %c0_350 = arith.constant 0 : index
    %c0_351 = arith.constant 0 : index
    %460 = vector.load %arg22[%c0_350, %c0_351] : memref<32x6xbf16, #tpu.memory_space<vmem>>, vector<32x6xbf16>
    %cst_352 = arith.constant dense<0.000000e+00> : vector<2x6xf32>
    %461 = tpu.matmul %459, %460, %cst_352 {dimension_numbers = #tpu.dot_dimension_numbers<[1], [0], [0], [1], [0, 0, 1, 1], [], []>} : vector<2x32xbf16>, vector<32x6xbf16>, vector<2x6xf32> -> vector<2x6xf32>
    %c0_353 = arith.constant 0 : index
    %c0_354 = arith.constant 0 : index
    %462 = vector.load %arg23[%c0_353, %c0_354] : memref<2x6xf32, #tpu.memory_space<vmem>>, vector<2x6xf32>
    tpu.vector_store %arg23[%c0_353, %c0_354], %461 {strides = array<i32>} : memref<2x6xf32, #tpu.memory_space<vmem>>, vector<2x6xf32>,
    return
  }
  func.func @transform_0(%arg0: i32) -> (i32, i32, i32) {
    %c0_i32 = arith.constant 0 : i32
    %c0_i32_0 = arith.constant 0 : i32
    %c0_i32_1 = arith.constant 0 : i32
    %c0_i32_2 = arith.constant 0 : i32
    return %c0_i32, %c0_i32_0, %c0_i32_1 : i32, i32, i32
  }
  func.func @transform_1(%arg0: i32) -> (i32, i32) {
    %c0_i32 = arith.constant 0 : i32
    %c0_i32_0 = arith.constant 0 : i32
    %c0_i32_1 = arith.constant 0 : i32
    return %c0_i32, %c0_i32_0 : i32, i32
  }
  func.func @transform_2(%arg0: i32) -> (i32, i32) {
    %c0_i32 = arith.constant 0 : i32
    %c0_i32_0 = arith.constant 0 : i32
    %c0_i32_1 = arith.constant 0 : i32
    return %c0_i32, %c0_i32_0 : i32, i32
  }
  func.func @transform_3(%arg0: i32) -> (i32, i32) {
    %c0_i32 = arith.constant 0 : i32
    %c0_i32_0 = arith.constant 0 : i32
    %c0_i32_1 = arith.constant 0 : i32
    return %c0_i32, %c0_i32_0 : i32, i32
  }
  func.func @transform_4(%arg0: i32) -> (i32, i32, i32) {
    %c0_i32 = arith.constant 0 : i32
    %c0_i32_0 = arith.constant 0 : i32
    %c0_i32_1 = arith.constant 0 : i32
    %c0_i32_2 = arith.constant 0 : i32
    return %c0_i32, %c0_i32_0, %c0_i32_1 : i32, i32, i32
  }
  func.func @transform_5(%arg0: i32) -> (i32, i32, i32, i32) {
    %c0_i32 = arith.constant 0 : i32
    %c0_i32_0 = arith.constant 0 : i32
    %c0_i32_1 = arith.constant 0 : i32
    %c0_i32_2 = arith.constant 0 : i32
    %c0_i32_3 = arith.constant 0 : i32
    return %c0_i32, %c0_i32_0, %c0_i32_1, %c0_i32_2 : i32, i32, i32, i32
  }
  func.func @transform_6(%arg0: i32) -> (i32, i32, i32, i32) {
    %c0_i32 = arith.constant 0 : i32
    %c0_i32_0 = arith.constant 0 : i32
    %c0_i32_1 = arith.constant 0 : i32
    %c0_i32_2 = arith.constant 0 : i32
    %c0_i32_3 = arith.constant 0 : i32
    return %c0_i32, %c0_i32_0, %c0_i32_1, %c0_i32_2 : i32, i32, i32, i32
  }
  func.func @transform_7(%arg0: i32) -> (i32, i32, i32, i32) {
    %c0_i32 = arith.constant 0 : i32
    %c0_i32_0 = arith.constant 0 : i32
    %c0_i32_1 = arith.constant 0 : i32
    %c0_i32_2 = arith.constant 0 : i32
    %c0_i32_3 = arith.constant 0 : i32
    return %c0_i32, %c0_i32_0, %c0_i32_1, %c0_i32_2 : i32, i32, i32, i32
  }
  func.func @transform_8(%arg0: i32) -> (i32, i32, i32, i32) {
    %c0_i32 = arith.constant 0 : i32
    %c0_i32_0 = arith.constant 0 : i32
    %c0_i32_1 = arith.constant 0 : i32
    %c0_i32_2 = arith.constant 0 : i32
    %c0_i32_3 = arith.constant 0 : i32
    return %c0_i32, %c0_i32_0, %c0_i32_1, %c0_i32_2 : i32, i32, i32, i32
  }
  func.func @transform_9(%arg0: i32) -> (i32, i32, i32, i32) {
    %c0_i32 = arith.constant 0 : i32
    %c0_i32_0 = arith.constant 0 : i32
    %c0_i32_1 = arith.constant 0 : i32
    %c0_i32_2 = arith.constant 0 : i32
    %c0_i32_3 = arith.constant 0 : i32
    return %c0_i32, %c0_i32_0, %c0_i32_1, %c0_i32_2 : i32, i32, i32, i32
  }
  func.func @transform_10(%arg0: i32) -> (i32, i32, i32, i32) {
    %c0_i32 = arith.constant 0 : i32
    %c0_i32_0 = arith.constant 0 : i32
    %c0_i32_1 = arith.constant 0 : i32
    %c0_i32_2 = arith.constant 0 : i32
    %c0_i32_3 = arith.constant 0 : i32
    return %c0_i32, %c0_i32_0, %c0_i32_1, %c0_i32_2 : i32, i32, i32, i32
  }
  func.func @transform_11(%arg0: i32) -> (i32, i32, i32, i32) {
    %c0_i32 = arith.constant 0 : i32
    %c0_i32_0 = arith.constant 0 : i32
    %c0_i32_1 = arith.constant 0 : i32
    %c0_i32_2 = arith.constant 0 : i32
    %c0_i32_3 = arith.constant 0 : i32
    return %c0_i32, %c0_i32_0, %c0_i32_1, %c0_i32_2 : i32, i32, i32, i32
  }
  func.func @transform_12(%arg0: i32) -> (i32, i32, i32) {
    %c0_i32 = arith.constant 0 : i32
    %c0_i32_0 = arith.constant 0 : i32
    %c0_i32_1 = arith.constant 0 : i32
    %c0_i32_2 = arith.constant 0 : i32
    return %c0_i32, %c0_i32_0, %c0_i32_1 : i32, i32, i32
  }
  func.func @transform_13(%arg0: i32) -> (i32, i32, i32) {
    %c0_i32 = arith.constant 0 : i32
    %c0_i32_0 = arith.constant 0 : i32
    %c0_i32_1 = arith.constant 0 : i32
    %c0_i32_2 = arith.constant 0 : i32
    return %c0_i32, %c0_i32_0, %c0_i32_1 : i32, i32, i32
  }
  func.func @transform_14(%arg0: i32) -> (i32, i32, i32) {
    %c0_i32 = arith.constant 0 : i32
    %c0_i32_0 = arith.constant 0 : i32
    %c0_i32_1 = arith.constant 0 : i32
    %c0_i32_2 = arith.constant 0 : i32
    return %c0_i32, %c0_i32_0, %c0_i32_1 : i32, i32, i32
  }
  func.func @transform_15(%arg0: i32) -> (i32, i32, i32) {
    %c0_i32 = arith.constant 0 : i32
    %c0_i32_0 = arith.constant 0 : i32
    %c0_i32_1 = arith.constant 0 : i32
    %c0_i32_2 = arith.constant 0 : i32
    return %c0_i32, %c0_i32_0, %c0_i32_1 : i32, i32, i32
  }
  func.func @transform_16(%arg0: i32) -> (i32, i32, i32) {
    %c0_i32 = arith.constant 0 : i32
    %c0_i32_0 = arith.constant 0 : i32
    %c0_i32_1 = arith.constant 0 : i32
    %c0_i32_2 = arith.constant 0 : i32
    return %c0_i32, %c0_i32_0, %c0_i32_1 : i32, i32, i32
  }
  func.func @transform_17(%arg0: i32) -> (i32, i32, i32) {
    %c0_i32 = arith.constant 0 : i32
    %c0_i32_0 = arith.constant 0 : i32
    %c0_i32_1 = arith.constant 0 : i32
    %c0_i32_2 = arith.constant 0 : i32
    return %c0_i32, %c0_i32_0, %c0_i32_1 : i32, i32, i32
  }
  func.func @transform_18(%arg0: i32) -> (i32, i32) {
    %c0_i32 = arith.constant 0 : i32
    %c0_i32_0 = arith.constant 0 : i32
    %c0_i32_1 = arith.constant 0 : i32
    return %c0_i32, %c0_i32_0 : i32, i32
  }
  func.func @transform_19(%arg0: i32) -> (i32, i32) {
    %c0_i32 = arith.constant 0 : i32
    %c0_i32_0 = arith.constant 0 : i32
    %c0_i32_1 = arith.constant 0 : i32
    return %c0_i32, %c0_i32_0 : i32, i32
  }
  func.func @transform_20(%arg0: i32) -> (i32, i32) {
    %c0_i32 = arith.constant 0 : i32
    %c0_i32_0 = arith.constant 0 : i32
    %c0_i32_1 = arith.constant 0 : i32
    return %c0_i32, %c0_i32_0 : i32, i32
  }
  func.func @transform_21(%arg0: i32) -> (i32, i32) {
    %c0_i32 = arith.constant 0 : i32
    %c0_i32_0 = arith.constant 0 : i32
    %c0_i32_1 = arith.constant 0 : i32
    return %c0_i32, %c0_i32_0 : i32, i32
  }
  func.func @transform_22(%arg0: i32) -> (i32, i32) {
    %c0_i32 = arith.constant 0 : i32
    %c0_i32_0 = arith.constant 0 : i32
    %c0_i32_1 = arith.constant 0 : i32
    return %c0_i32, %c0_i32_0 : i32, i32
  }
}

</mosaic_0001>

<llo_original>
// kernel: tpu_custom_call.1
$region0: #{tpu_custom_call.1}
  #allocation0 [shape = 'u32[]', space=smem, size = 0x4, offset = 0x4, fixed_abs, tag = 'smem constant byte address 0x4 - core index']
  #allocation1 [shape = 'u32[144,128]{1,0:T(1,128)}', space=vmem, size = 0x12000, scoped, tag = 'internal scratch']
  #allocation2 [shape = 'f32[1,1]{1,0:T(1,128)S(1)}', space=vmem, size = 0x200, scoped, tag = 'scoped memory for tpu_custom_call.1']
  %s0 = inlined_call_operand.vmem [shape: f32[2,8,24], index: 0, kind: input, shape index: {}]
  %s1 = inlined_call_operand.vmem [shape: bf16[24,32], index: 1, kind: input, shape index: {}]
  %s2 = inlined_call_operand.vmem [shape: f32[16,32], index: 2, kind: input, shape index: {}]
  %s3 = inlined_call_operand.vmem [shape: f32[16,16], index: 3, kind: input, shape index: {}]
  %s4 = inlined_call_operand.vmem [shape: f32[2,1,32], index: 4, kind: input, shape index: {}]
  %s5 = inlined_call_operand.vmem [shape: bf16[2,4,32,8], index: 5, kind: input, shape index: {}]
  %s6 = inlined_call_operand.vmem [shape: f32[2,4,1,8], index: 6, kind: input, shape index: {}]
  %s7 = inlined_call_operand.vmem [shape: bf16[2,4,32,8], index: 7, kind: input, shape index: {}]
  %s8 = inlined_call_operand.vmem [shape: f32[2,4,1,8], index: 8, kind: input, shape index: {}]
  %s9 = inlined_call_operand.vmem [shape: bf16[2,4,32,8], index: 9, kind: input, shape index: {}]
  %s10 = inlined_call_operand.vmem [shape: f32[2,4,1,8], index: 10, kind: input, shape index: {}]
  %s11 = inlined_call_operand.vmem [shape: bf16[2,4,8,32], index: 11, kind: input, shape index: {}]
  %s12 = inlined_call_operand.vmem [shape: f32[2,1,32], index: 12, kind: input, shape index: {}]
  %s13 = inlined_call_operand.vmem [shape: f32[2,1,32], index: 13, kind: input, shape index: {}]
  %s14 = inlined_call_operand.vmem [shape: bf16[2,32,64], index: 14, kind: input, shape index: {}]
  %s15 = inlined_call_operand.vmem [shape: f32[2,1,64], index: 15, kind: input, shape index: {}]
  %s16 = inlined_call_operand.vmem [shape: bf16[2,64,32], index: 16, kind: input, shape index: {}]
  %s17 = inlined_call_operand.vmem [shape: f32[2,1,32], index: 17, kind: input, shape index: {}]
  %s18 = inlined_call_operand.vmem [shape: f32[1,32], index: 18, kind: input, shape index: {}]
  %s19 = inlined_call_operand.vmem [shape: f32[1,32], index: 19, kind: input, shape index: {}]
  %s20 = inlined_call_operand.<no memory space> [shape: f32[1,1], index: 20, kind: input, shape index: {}]
  %s21 = inlined_call_operand.vmem [shape: bf16[32,6], index: 21, kind: input, shape index: {}]
  %s22 = inlined_call_operand.hbm [shape: f32[2,6], index: 22, kind: output, shape index: {}]
  %s23 = sld [smem:[#allocation0]]
  $region98: #{tpu_custom_call.1} parent=0
    _
  %s25 = ssub.s32 1, %s23
  %s26 = scalar_select 0, %s25, %s23
  %v27 = vstv %s20
  %28 = vst [vmem:[#allocation2] sm:$0x1] %v27
  $region1: #{tpu_custom_call.1} parent=0
    #allocation3 [shape = 'u8[1024]{0}', space=vmem, size = 0x400, scoped, tag = 'output window, operand 0, single buffered']
    #allocation4 [shape = 's32[1]{0}', space=sflag, size = 0x4, scoped, tag = 'scoped memory for tpu_custom_call.1']
    %29 = vsyncpa [#allocation4], 0
    // Predicated region
    $region2: #{tpu_custom_call.1} parent=1 // pred_check
      _
    $region3: #{tpu_custom_call.1} parent=1 // pred_check_branch
      %31 = sbr.rel (0) target = $region5
    $region4: #{tpu_custom_call.1} parent=1 // pred_region
      _
    $region5: #{tpu_custom_call.1} parent=1 // pred_fallthru
      _
    // Predicated region
    $region6: #{tpu_custom_call.1} parent=1 // pred_check
      _
    $region7: #{tpu_custom_call.1} parent=1 // pred_check_branch
      %33 = sbr.rel (0) target = $region9
    $region8: #{tpu_custom_call.1} parent=1 // pred_region
      _
    $region9: #{tpu_custom_call.1} parent=1 // pred_fallthru
      _
    // Predicated region
    $region10: #{tpu_custom_call.1} parent=1 // pred_check
      _
    $region11: #{tpu_custom_call.1} parent=1 // pred_check_branch
      %35 = sbr.rel (0) target = $region13
    $region12: #{tpu_custom_call.1} parent=1 // pred_region
      _
    $region13: #{tpu_custom_call.1} parent=1 // pred_fallthru
      _
    // Predicated region
    $region14: #{tpu_custom_call.1} parent=1 // pred_check
      _
    $region15: #{tpu_custom_call.1} parent=1 // pred_check_branch
      %37 = sbr.rel (0) target = $region17
    $region16: #{tpu_custom_call.1} parent=1 // pred_region
      _
    $region17: #{tpu_custom_call.1} parent=1 // pred_fallthru
      _
    // Predicated region
    $region18: #{tpu_custom_call.1} parent=1 // pred_check
      _
    $region19: #{tpu_custom_call.1} parent=1 // pred_check_branch
      %39 = sbr.rel (0) target = $region21
    $region20: #{tpu_custom_call.1} parent=1 // pred_region
      _
    $region21: #{tpu_custom_call.1} parent=1 // pred_fallthru
      _
    // Predicated region
    $region22: #{tpu_custom_call.1} parent=1 // pred_check
      _
    $region23: #{tpu_custom_call.1} parent=1 // pred_check_branch
      %41 = sbr.rel (0) target = $region25
    $region24: #{tpu_custom_call.1} parent=1 // pred_region
      _
    $region25: #{tpu_custom_call.1} parent=1 // pred_fallthru
      _
    // Predicated region
    $region26: #{tpu_custom_call.1} parent=1 // pred_check
      _
    $region27: #{tpu_custom_call.1} parent=1 // pred_check_branch
      %43 = sbr.rel (0) target = $region29
    $region28: #{tpu_custom_call.1} parent=1 // pred_region
      _
    $region29: #{tpu_custom_call.1} parent=1 // pred_fallthru
      _
    // Predicated region
    $region30: #{tpu_custom_call.1} parent=1 // pred_check
      _
    $region31: #{tpu_custom_call.1} parent=1 // pred_check_branch
      %45 = sbr.rel (0) target = $region33
    $region32: #{tpu_custom_call.1} parent=1 // pred_region
      _
    $region33: #{tpu_custom_call.1} parent=1 // pred_fallthru
      _
    // Predicated region
    $region34: #{tpu_custom_call.1} parent=1 // pred_check
      _
    $region35: #{tpu_custom_call.1} parent=1 // pred_check_branch
      %47 = sbr.rel (0) target = $region37
    $region36: #{tpu_custom_call.1} parent=1 // pred_region
      _
    $region37: #{tpu_custom_call.1} parent=1 // pred_fallthru
      _
    // Predicated region
    $region38: #{tpu_custom_call.1} parent=1 // pred_check
      _
    $region39: #{tpu_custom_call.1} parent=1 // pred_check_branch
      %49 = sbr.rel (0) target = $region41
    $region40: #{tpu_custom_call.1} parent=1 // pred_region
      _
    $region41: #{tpu_custom_call.1} parent=1 // pred_fallthru
      _
    // Predicated region
    $region42: #{tpu_custom_call.1} parent=1 // pred_check
      _
    $region43: #{tpu_custom_call.1} parent=1 // pred_check_branch
      %51 = sbr.rel (0) target = $region45
    $region44: #{tpu_custom_call.1} parent=1 // pred_region
      _
    $region45: #{tpu_custom_call.1} parent=1 // pred_fallthru
      _
    // Predicated region
    $region46: #{tpu_custom_call.1} parent=1 // pred_check
      _
    $region47: #{tpu_custom_call.1} parent=1 // pred_check_branch
      %53 = sbr.rel (0) target = $region49
    $region48: #{tpu_custom_call.1} parent=1 // pred_region
      _
    $region49: #{tpu_custom_call.1} parent=1 // pred_fallthru
      _
    // Predicated region
    $region50: #{tpu_custom_call.1} parent=1 // pred_check
      _
    $region51: #{tpu_custom_call.1} parent=1 // pred_check_branch
      %55 = sbr.rel (0) target = $region53
    $region52: #{tpu_custom_call.1} parent=1 // pred_region
      _
    $region53: #{tpu_custom_call.1} parent=1 // pred_fallthru
      _
    // Predicated region
    $region54: #{tpu_custom_call.1} parent=1 // pred_check
      _
    $region55: #{tpu_custom_call.1} parent=1 // pred_check_branch
      %57 = sbr.rel (0) target = $region57
    $region56: #{tpu_custom_call.1} parent=1 // pred_region
      _
    $region57: #{tpu_custom_call.1} parent=1 // pred_fallthru
      _
    // Predicated region
    $region58: #{tpu_custom_call.1} parent=1 // pred_check
      _
    $region59: #{tpu_custom_call.1} parent=1 // pred_check_branch
      %59 = sbr.rel (0) target = $region61
    $region60: #{tpu_custom_call.1} parent=1 // pred_region
      _
    $region61: #{tpu_custom_call.1} parent=1 // pred_fallthru
      _
    // Predicated region
    $region62: #{tpu_custom_call.1} parent=1 // pred_check
      _
    $region63: #{tpu_custom_call.1} parent=1 // pred_check_branch
      %61 = sbr.rel (0) target = $region65
    $region64: #{tpu_custom_call.1} parent=1 // pred_region
      _
    $region65: #{tpu_custom_call.1} parent=1 // pred_fallthru
      _
    // Predicated region
    $region66: #{tpu_custom_call.1} parent=1 // pred_check
      _
    $region67: #{tpu_custom_call.1} parent=1 // pred_check_branch
      %63 = sbr.rel (0) target = $region69
    $region68: #{tpu_custom_call.1} parent=1 // pred_region
      _
    $region69: #{tpu_custom_call.1} parent=1 // pred_fallthru
      _
    // Predicated region
    $region70: #{tpu_custom_call.1} parent=1 // pred_check
      _
    $region71: #{tpu_custom_call.1} parent=1 // pred_check_branch
      %65 = sbr.rel (0) target = $region73
    $region72: #{tpu_custom_call.1} parent=1 // pred_region
      _
    $region73: #{tpu_custom_call.1} parent=1 // pred_fallthru
      _
    // Predicated region
    $region74: #{tpu_custom_call.1} parent=1 // pred_check
      _
    $region75: #{tpu_custom_call.1} parent=1 // pred_check_branch
      %67 = sbr.rel (0) target = $region77
    $region76: #{tpu_custom_call.1} parent=1 // pred_region
      _
    $region77: #{tpu_custom_call.1} parent=1 // pred_fallthru
      _
    // Predicated region
    $region78: #{tpu_custom_call.1} parent=1 // pred_check
      _
    $region79: #{tpu_custom_call.1} parent=1 // pred_check_branch
      %69 = sbr.rel (0) target = $region81
    $region80: #{tpu_custom_call.1} parent=1 // pred_region
      _
    $region81: #{tpu_custom_call.1} parent=1 // pred_fallthru
      _
    // Predicated region
    $region82: #{tpu_custom_call.1} parent=1 // pred_check
      _
    $region83: #{tpu_custom_call.1} parent=1 // pred_check_branch
      %71 = sbr.rel (0) target = $region85
    $region84: #{tpu_custom_call.1} parent=1 // pred_region
      _
    $region85: #{tpu_custom_call.1} parent=1 // pred_fallthru
      _
    // Predicated region
    $region86: #{tpu_custom_call.1} parent=1 // pred_check
      _
    $region87: #{tpu_custom_call.1} parent=1 // pred_check_branch
      %73 = sbr.rel (0) target = $region89
    $region88: #{tpu_custom_call.1} parent=1 // pred_region
      _
    $region89: #{tpu_custom_call.1} parent=1 // pred_fallthru
      _
    %v75 = vld [vmem:[%s0] sm:$0xff]
    %v76 = vld [vmem:[%s0 + $0x8] sm:$0xff]
    %v77 = vpack.c.bf16 %v76, %v75
    %v78 = vld [vmem:[%s1] sm:$0xf]
    %v79 = vld [vmem:[%s1 + $0x4] sm:$0xf]
    %v80 = vld [vmem:[%s1 + $0x8] sm:$0xf]
    %v81 = vld [vmem:[%s2] sm:$0xff]
    %v82 = vld [vmem:[%s2 + $0x8] sm:$0xff]
    %v86 = vunpack.c.l.b16 %v78
    %v87 = vunpack.c.l.b16 %v79
    %v88 = vunpack.c.l.b16 %v80
    %v89 = vpack.c.b16 %v87, %v86
    %v90 = vpack.c.b16 %v88, %v88
    %vm92 = vcmask 195584
    %v94 = vsel %vm92, %v77, 0
    %vm96 = vcmask 1043456
    %v98 = vsel %vm96, %v90, 0
    %100 = vmatprep.subr.bf16.mxu0 0
    %101 = vmatpush1.bf16.msra.mxu0 0
    %102 = vmatprep.subr.bf16.mxu0 0
    %103 = vmatpush1.bf16.msra.mxu0 0
    %104 = vmatprep.subr.bf16.mxu0 0
    %105 = vmatpush1.bf16.msra.mxu0 0
    %106 = vmatprep.subr.bf16.mxu0 0
    %107 = vmatpush1.bf16.msra.mxu0 0
    %108 = vmatprep.subr.bf16.mxu0 0
    %109 = vmatpush1.bf16.msra.mxu0 0
    %110 = vmatprep.subr.bf16.mxu0 0
    %111 = vmatpush1.bf16.msra.mxu0 0
    %112 = vmatprep.subr.bf16.mxu0 0
    %113 = vmatpush1.bf16.msra.mxu0 %v98
    %114 = vmatprep.subr.bf16.mxu0 0
    %115 = vmatpush1.bf16.msra.mxu0 %v89
    %116 = vmatprep.subr.bf16.mxu0 0
    %117 = vmatpush2.bf16.msra.mxu0 0
    %118 = vmatprep.subr.bf16.mxu0 0
    %119 = vmatpush2.bf16.msra.mxu0 0
    %120 = vmatprep.subr.bf16.mxu0 0
    %121 = vmatpush2.bf16.msra.mxu0 0
    %122 = vmatprep.subr.bf16.mxu0 0
    %123 = vmatpush2.bf16.msra.mxu0 0
    %124 = vmatprep.subr.bf16.mxu0 0
    %125 = vmatpush2.bf16.msra.mxu0 0
    %126 = vmatprep.subr.bf16.mxu0 0
    %127 = vmatpush2.bf16.msra.mxu0 0
    %128 = vmatprep.subr.bf16.mxu0 0
    %129 = vmatpush2.bf16.msra.mxu0 0
    %130 = vmatprep.subr.bf16.mxu0 0
    %131 = vmatpush2.bf16.msra.mxu0 0
    %132 = vmatprep.mubr.bf16.mxu0 0
    %133 = vmatmul.mubr.bf16.gmra.mxu0 %v94
    %v134 = vpop.f32.mrf.mxu0
    %v135 = vadd.f32 %v81, %v134
    %v136 = vpop.f32.mrf.mxu0
    %v137 = vpop.f32.mrf.mxu0
    %v138 = vadd.f32 %v82, %v137
    %v139 = vpop.f32.mrf.mxu0
    %140 = vdwg.mxu0
    %v141 = vld [vmem:[%s3] sm:$0xff]
    %v142 = vld [vmem:[%s3 + $0x8] sm:$0xff]
    %v143 = vld [vmem:[%s4] sm:$0x1]
    %v144 = vmul.f32 %v135, %v135
    %v145 = vmul.f32 %v138, %v138
    %vm146 = vcmask 261120
    %v147 = vsel %vm146, %v144, 0.0
    %148 = vadd.xlane.f32.xlu0 %v147
    %v149 = vpop.xlane.xlu0 %148
    %v150 = vsel %vm146, %v145, 0.0
    %151 = vadd.xlane.f32.xlu0 %v150
    %v152 = vpop.xlane.xlu0 %151
    %v153 = vrcp.pop 32.0
    %v154 = vmul.f32 %v149, %v153
    %v155 = vmul.f32 %v152, %v153
    %v156 = vadd.f32 %v154, 1e-05
    %v157 = vadd.f32 %v155, 1e-05
    %v158 = vrsqrt.pop %v156
    %v159 = vrsqrt.pop %v157
    %v160 = vmul.f32 %v135, %v158
    %v161 = vmul.f32 %v138, %v159
    %v163 = vlaneseq
    %v164 = vshrl.u32 %v163, 7
    %v165 = vsub.s32 0, %v164
    %v166 = vrot.slane %v143, %v165
    %v168 = vmul.f32 %v160, %v166
    %v169 = vmul.f32 %v161, %v166
    %v170 = vpack.c.bf16 %v169, %v168
    %v171 = vld [vmem:[%s5] sm:$0xf]
    %v172 = vld [vmem:[%s5 + $0x4] sm:$0xf]
    %v173 = vld [vmem:[%s5 + $0x8] sm:$0xf]
    %v174 = vld [vmem:[%s5 + $0xc] sm:$0xf]
    %v175 = vld [vmem:[%s6] sm:$0x1]
    %v177 = vlaneseq
    %v178 = vshrl.u32 %v177, 7
    %v179 = vsub.s32 0, %v178
    %v180 = vrot.slane %v175, %v179
    %v186 = vunpack.c.l.b16 %v171
    %v187 = vunpack.c.l.b16 %v172
    %v188 = vunpack.c.l.b16 %v173
    %v189 = vunpack.c.l.b16 %v174
    %v190 = vpack.c.b16 %v187, %v186
    %v191 = vpack.c.b16 %v189, %v188
    %v195 = vsel %vm146, %v170, 0
    %197 = vmatprep.subr.bf16.mxu0 0
    %198 = vmatpush1.bf16.msra.mxu0 0
    %199 = vmatprep.subr.bf16.mxu0 0
    %200 = vmatpush1.bf16.msra.mxu0 0
    %201 = vmatprep.subr.bf16.mxu0 0
    %202 = vmatpush1.bf16.msra.mxu0 0
    %203 = vmatprep.subr.bf16.mxu0 0
    %204 = vmatpush1.bf16.msra.mxu0 0
    %205 = vmatprep.subr.bf16.mxu0 0
    %206 = vmatpush1.bf16.msra.mxu0 0
    %207 = vmatprep.subr.bf16.mxu0 0
    %208 = vmatpush1.bf16.msra.mxu0 0
    %209 = vmatprep.subr.bf16.mxu0 0
    %210 = vmatpush1.bf16.msra.mxu0 %v191
    %211 = vmatprep.subr.bf16.mxu0 0
    %212 = vmatpush1.bf16.msra.mxu0 %v190
    %213 = vmatprep.subr.bf16.mxu0 0
    %214 = vmatpush2.bf16.msra.mxu0 0
    %215 = vmatprep.subr.bf16.mxu0 0
    %216 = vmatpush2.bf16.msra.mxu0 0
    %217 = vmatprep.subr.bf16.mxu0 0
    %218 = vmatpush2.bf16.msra.mxu0 0
    %219 = vmatprep.subr.bf16.mxu0 0
    %220 = vmatpush2.bf16.msra.mxu0 0
    %221 = vmatprep.subr.bf16.mxu0 0
    %222 = vmatpush2.bf16.msra.mxu0 0
    %223 = vmatprep.subr.bf16.mxu0 0
    %224 = vmatpush2.bf16.msra.mxu0 0
    %225 = vmatprep.subr.bf16.mxu0 0
    %226 = vmatpush2.bf16.msra.mxu0 0
    %227 = vmatprep.subr.bf16.mxu0 0
    %228 = vmatpush2.bf16.msra.mxu0 0
    %229 = vmatprep.mubr.bf16.mxu0 0
    %230 = vmatmul.mubr.bf16.gmra.mxu0 %v195
    %v231 = vpop.f32.mrf.mxu0
    %v232 = vadd.f32 %v180, %v231
    %v233 = vpop.f32.mrf.mxu0
    %v234 = vpop.f32.mrf.mxu0
    %v235 = vadd.f32 %v180, %v234
    %v236 = vpop.f32.mrf.mxu0
    %237 = vdwg.mxu0
    %s238 = scalar_lea.vmem %s5, 16
    %v239 = vld [vmem:[%s238] sm:$0xf]
    %v240 = vld [vmem:[%s238 + $0x4] sm:$0xf]
    %v241 = vld [vmem:[%s238 + $0x8] sm:$0xf]
    %v242 = vld [vmem:[%s238 + $0xc] sm:$0xf]
    %s243 = scalar_lea.vmem %s6, 1
    %v244 = vld [vmem:[%s243] sm:$0x1]
    %v246 = vlaneseq
    %v247 = vshrl.u32 %v246, 7
    %v248 = vsub.s32 0, %v247
    %v249 = vrot.slane %v244, %v248
    %v255 = vunpack.c.l.b16 %v239
    %v256 = vunpack.c.l.b16 %v240
    %v257 = vunpack.c.l.b16 %v241
    %v258 = vunpack.c.l.b16 %v242
    %v259 = vpack.c.b16 %v256, %v255
    %v260 = vpack.c.b16 %v258, %v257
    %263 = vmatprep.subr.bf16.mxu0 0
    %264 = vmatpush1.bf16.msra.mxu0 0
    %265 = vmatprep.subr.bf16.mxu0 0
    %266 = vmatpush1.bf16.msra.mxu0 0
    %267 = vmatprep.subr.bf16.mxu0 0
    %268 = vmatpush1.bf16.msra.mxu0 0
    %269 = vmatprep.subr.bf16.mxu0 0
    %270 = vmatpush1.bf16.msra.mxu0 0
    %271 = vmatprep.subr.bf16.mxu0 0
    %272 = vmatpush1.bf16.msra.mxu0 0
    %273 = vmatprep.subr.bf16.mxu0 0
    %274 = vmatpush1.bf16.msra.mxu0 0
    %275 = vmatprep.subr.bf16.mxu0 0
    %276 = vmatpush1.bf16.msra.mxu0 %v260
    %277 = vmatprep.subr.bf16.mxu0 0
    %278 = vmatpush1.bf16.msra.mxu0 %v259
    %279 = vmatprep.subr.bf16.mxu0 0
    %280 = vmatpush2.bf16.msra.mxu0 0
    %281 = vmatprep.subr.bf16.mxu0 0
    %282 = vmatpush2.bf16.msra.mxu0 0
    %283 = vmatprep.subr.bf16.mxu0 0
    %284 = vmatpush2.bf16.msra.mxu0 0
    %285 = vmatprep.subr.bf16.mxu0 0
    %286 = vmatpush2.bf16.msra.mxu0 0
    %287 = vmatprep.subr.bf16.mxu0 0
    %288 = vmatpush2.bf16.msra.mxu0 0
    %289 = vmatprep.subr.bf16.mxu0 0
    %290 = vmatpush2.bf16.msra.mxu0 0
    %291 = vmatprep.subr.bf16.mxu0 0
    %292 = vmatpush2.bf16.msra.mxu0 0
    %293 = vmatprep.subr.bf16.mxu0 0
    %294 = vmatpush2.bf16.msra.mxu0 0
    %295 = vmatprep.mubr.bf16.mxu0 0
    %296 = vmatmul.mubr.bf16.gmra.mxu0 %v195
    %v297 = vpop.f32.mrf.mxu0
    %v298 = vadd.f32 %v249, %v297
    %v299 = vpop.f32.mrf.mxu0
    %v300 = vpop.f32.mrf.mxu0
    %v301 = vadd.f32 %v249, %v300
    %v302 = vpop.f32.mrf.mxu0
    %303 = vdwg.mxu0
    %s304 = scalar_lea.vmem %s5, 32
    %v305 = vld [vmem:[%s304] sm:$0xf]
    %v306 = vld [vmem:[%s304 + $0x4] sm:$0xf]
    %v307 = vld [vmem:[%s304 + $0x8] sm:$0xf]
    %v308 = vld [vmem:[%s304 + $0xc] sm:$0xf]
    %s309 = scalar_lea.vmem %s6, 2
    %v310 = vld [vmem:[%s309] sm:$0x1]
    %v312 = vlaneseq
    %v313 = vshrl.u32 %v312, 7
    %v314 = vsub.s32 0, %v313
    %v315 = vrot.slane %v310, %v314
    %v321 = vunpack.c.l.b16 %v305
    %v322 = vunpack.c.l.b16 %v306
    %v323 = vunpack.c.l.b16 %v307
    %v324 = vunpack.c.l.b16 %v308
    %v325 = vpack.c.b16 %v322, %v321
    %v326 = vpack.c.b16 %v324, %v323
    %329 = vmatprep.subr.bf16.mxu0 0
    %330 = vmatpush1.bf16.msra.mxu0 0
    %331 = vmatprep.subr.bf16.mxu0 0
    %332 = vmatpush1.bf16.msra.mxu0 0
    %333 = vmatprep.subr.bf16.mxu0 0
    %334 = vmatpush1.bf16.msra.mxu0 0
    %335 = vmatprep.subr.bf16.mxu0 0
    %336 = vmatpush1.bf16.msra.mxu0 0
    %337 = vmatprep.subr.bf16.mxu0 0
    %338 = vmatpush1.bf16.msra.mxu0 0
    %339 = vmatprep.subr.bf16.mxu0 0
    %340 = vmatpush1.bf16.msra.mxu0 0
    %341 = vmatprep.subr.bf16.mxu0 0
    %342 = vmatpush1.bf16.msra.mxu0 %v326
    %343 = vmatprep.subr.bf16.mxu0 0
    %344 = vmatpush1.bf16.msra.mxu0 %v325
    %345 = vmatprep.subr.bf16.mxu0 0
    %346 = vmatpush2.bf16.msra.mxu0 0
    %347 = vmatprep.subr.bf16.mxu0 0
    %348 = vmatpush2.bf16.msra.mxu0 0
    %349 = vmatprep.subr.bf16.mxu0 0
    %350 = vmatpush2.bf16.msra.mxu0 0
    %351 = vmatprep.subr.bf16.mxu0 0
    %352 = vmatpush2.bf16.msra.mxu0 0
    %353 = vmatprep.subr.bf16.mxu0 0
    %354 = vmatpush2.bf16.msra.mxu0 0
    %355 = vmatprep.subr.bf16.mxu0 0
    %356 = vmatpush2.bf16.msra.mxu0 0
    %357 = vmatprep.subr.bf16.mxu0 0
    %358 = vmatpush2.bf16.msra.mxu0 0
    %359 = vmatprep.subr.bf16.mxu0 0
    %360 = vmatpush2.bf16.msra.mxu0 0
    %361 = vmatprep.mubr.bf16.mxu0 0
    %362 = vmatmul.mubr.bf16.gmra.mxu0 %v195
    %v363 = vpop.f32.mrf.mxu0
    %v364 = vadd.f32 %v315, %v363
    %v365 = vpop.f32.mrf.mxu0
    %v366 = vpop.f32.mrf.mxu0
    %v367 = vadd.f32 %v315, %v366
    %v368 = vpop.f32.mrf.mxu0
    %369 = vdwg.mxu0
    %s370 = scalar_lea.vmem %s5, 48
    %v371 = vld [vmem:[%s370] sm:$0xf]
    %v372 = vld [vmem:[%s370 + $0x4] sm:$0xf]
    %v373 = vld [vmem:[%s370 + $0x8] sm:$0xf]
    %v374 = vld [vmem:[%s370 + $0xc] sm:$0xf]
    %s375 = scalar_lea.vmem %s6, 3
    %v376 = vld [vmem:[%s375] sm:$0x1]
    %v378 = vlaneseq
    %v379 = vshrl.u32 %v378, 7
    %v380 = vsub.s32 0, %v379
    %v381 = vrot.slane %v376, %v380
    %v387 = vunpack.c.l.b16 %v371
    %v388 = vunpack.c.l.b16 %v372
    %v389 = vunpack.c.l.b16 %v373
    %v390 = vunpack.c.l.b16 %v374
    %v391 = vpack.c.b16 %v388, %v387
    %v392 = vpack.c.b16 %v390, %v389
    %395 = vmatprep.subr.bf16.mxu0 0
    %396 = vmatpush1.bf16.msra.mxu0 0
    %397 = vmatprep.subr.bf16.mxu0 0
    %398 = vmatpush1.bf16.msra.mxu0 0
    %399 = vmatprep.subr.bf16.mxu0 0
    %400 = vmatpush1.bf16.msra.mxu0 0
    %401 = vmatprep.subr.bf16.mxu0 0
    %402 = vmatpush1.bf16.msra.mxu0 0
    %403 = vmatprep.subr.bf16.mxu0 0
    %404 = vmatpush1.bf16.msra.mxu0 0
    %405 = vmatprep.subr.bf16.mxu0 0
    %406 = vmatpush1.bf16.msra.mxu0 0
    %407 = vmatprep.subr.bf16.mxu0 0
    %408 = vmatpush1.bf16.msra.mxu0 %v392
    %409 = vmatprep.subr.bf16.mxu0 0
    %410 = vmatpush1.bf16.msra.mxu0 %v391
    %411 = vmatprep.subr.bf16.mxu0 0
    %412 = vmatpush2.bf16.msra.mxu0 0
    %413 = vmatprep.subr.bf16.mxu0 0
    %414 = vmatpush2.bf16.msra.mxu0 0
    %415 = vmatprep.subr.bf16.mxu0 0
    %416 = vmatpush2.bf16.msra.mxu0 0
    %417 = vmatprep.subr.bf16.mxu0 0
    %418 = vmatpush2.bf16.msra.mxu0 0
    %419 = vmatprep.subr.bf16.mxu0 0
    %420 = vmatpush2.bf16.msra.mxu0 0
    %421 = vmatprep.subr.bf16.mxu0 0
    %422 = vmatpush2.bf16.msra.mxu0 0
    %423 = vmatprep.subr.bf16.mxu0 0
    %424 = vmatpush2.bf16.msra.mxu0 0
    %425 = vmatprep.subr.bf16.mxu0 0
    %426 = vmatpush2.bf16.msra.mxu0 0
    %427 = vmatprep.mubr.bf16.mxu0 0
    %428 = vmatmul.mubr.bf16.gmra.mxu0 %v195
    %v429 = vpop.f32.mrf.mxu0
    %v430 = vadd.f32 %v381, %v429
    %v431 = vpop.f32.mrf.mxu0
    %v432 = vpop.f32.mrf.mxu0
    %v433 = vadd.f32 %v381, %v432
    %v434 = vpop.f32.mrf.mxu0
    %435 = vdwg.mxu0
    %v436 = vld [vmem:[%s7] sm:$0xf]
    %v437 = vld [vmem:[%s7 + $0x4] sm:$0xf]
    %v438 = vld [vmem:[%s7 + $0x8] sm:$0xf]
    %v439 = vld [vmem:[%s7 + $0xc] sm:$0xf]
    %v440 = vld [vmem:[%s8] sm:$0x1]
    %v442 = vlaneseq
    %v443 = vshrl.u32 %v442, 7
    %v444 = vsub.s32 0, %v443
    %v445 = vrot.slane %v440, %v444
    %v451 = vunpack.c.l.b16 %v436
    %v452 = vunpack.c.l.b16 %v437
    %v453 = vunpack.c.l.b16 %v438
    %v454 = vunpack.c.l.b16 %v439
    %v455 = vpack.c.b16 %v452, %v451
    %v456 = vpack.c.b16 %v454, %v453
    %459 = vmatprep.subr.bf16.mxu0 0
    %460 = vmatpush1.bf16.msra.mxu0 0
    %461 = vmatprep.subr.bf16.mxu0 0
    %462 = vmatpush1.bf16.msra.mxu0 0
    %463 = vmatprep.subr.bf16.mxu0 0
    %464 = vmatpush1.bf16.msra.mxu0 0
    %465 = vmatprep.subr.bf16.mxu0 0
    %466 = vmatpush1.bf16.msra.mxu0 0
    %467 = vmatprep.subr.bf16.mxu0 0
    %468 = vmatpush1.bf16.msra.mxu0 0
    %469 = vmatprep.subr.bf16.mxu0 0
    %470 = vmatpush1.bf16.msra.mxu0 0
    %471 = vmatprep.subr.bf16.mxu0 0
    %472 = vmatpush1.bf16.msra.mxu0 %v456
    %473 = vmatprep.subr.bf16.mxu0 0
    %474 = vmatpush1.bf16.msra.mxu0 %v455
    %475 = vmatprep.subr.bf16.mxu0 0
    %476 = vmatpush2.bf16.msra.mxu0 0
    %477 = vmatprep.subr.bf16.mxu0 0
    %478 = vmatpush2.bf16.msra.mxu0 0
    %479 = vmatprep.subr.bf16.mxu0 0
    %480 = vmatpush2.bf16.msra.mxu0 0
    %481 = vmatprep.subr.bf16.mxu0 0
    %482 = vmatpush2.bf16.msra.mxu0 0
    %483 = vmatprep.subr.bf16.mxu0 0
    %484 = vmatpush2.bf16.msra.mxu0 0
    %485 = vmatprep.subr.bf16.mxu0 0
    %486 = vmatpush2.bf16.msra.mxu0 0
    %487 = vmatprep.subr.bf16.mxu0 0
    %488 = vmatpush2.bf16.msra.mxu0 0
    %489 = vmatprep.subr.bf16.mxu0 0
    %490 = vmatpush2.bf16.msra.mxu0 0
    %491 = vmatprep.mubr.bf16.mxu0 0
    %492 = vmatmul.mubr.bf16.gmra.mxu0 %v195
    %v493 = vpop.f32.mrf.mxu0
    %v494 = vadd.f32 %v445, %v493
    %v495 = vpop.f32.mrf.mxu0
    %v496 = vpop.f32.mrf.mxu0
    %v497 = vadd.f32 %v445, %v496
    %v498 = vpop.f32.mrf.mxu0
    %499 = vdwg.mxu0
    %s500 = scalar_lea.vmem %s7, 16
    %v501 = vld [vmem:[%s500] sm:$0xf]
    %v502 = vld [vmem:[%s500 + $0x4] sm:$0xf]
    %v503 = vld [vmem:[%s500 + $0x8] sm:$0xf]
    %v504 = vld [vmem:[%s500 + $0xc] sm:$0xf]
    %s505 = scalar_lea.vmem %s8, 1
    %v506 = vld [vmem:[%s505] sm:$0x1]
    %v508 = vlaneseq
    %v509 = vshrl.u32 %v508, 7
    %v510 = vsub.s32 0, %v509
    %v511 = vrot.slane %v506, %v510
    %v517 = vunpack.c.l.b16 %v501
    %v518 = vunpack.c.l.b16 %v502
    %v519 = vunpack.c.l.b16 %v503
    %v520 = vunpack.c.l.b16 %v504
    %v521 = vpack.c.b16 %v518, %v517
    %v522 = vpack.c.b16 %v520, %v519
    %525 = vmatprep.subr.bf16.mxu0 0
    %526 = vmatpush1.bf16.msra.mxu0 0
    %527 = vmatprep.subr.bf16.mxu0 0
    %528 = vmatpush1.bf16.msra.mxu0 0
    %529 = vmatprep.subr.bf16.mxu0 0
    %530 = vmatpush1.bf16.msra.mxu0 0
    %531 = vmatprep.subr.bf16.mxu0 0
    %532 = vmatpush1.bf16.msra.mxu0 0
    %533 = vmatprep.subr.bf16.mxu0 0
    %534 = vmatpush1.bf16.msra.mxu0 0
    %535 = vmatprep.subr.bf16.mxu0 0
    %536 = vmatpush1.bf16.msra.mxu0 0
    %537 = vmatprep.subr.bf16.mxu0 0
    %538 = vmatpush1.bf16.msra.mxu0 %v522
    %539 = vmatprep.subr.bf16.mxu0 0
    %540 = vmatpush1.bf16.msra.mxu0 %v521
    %541 = vmatprep.subr.bf16.mxu0 0
    %542 = vmatpush2.bf16.msra.mxu0 0
    %543 = vmatprep.subr.bf16.mxu0 0
    %544 = vmatpush2.bf16.msra.mxu0 0
    %545 = vmatprep.subr.bf16.mxu0 0
    %546 = vmatpush2.bf16.msra.mxu0 0
    %547 = vmatprep.subr.bf16.mxu0 0
    %548 = vmatpush2.bf16.msra.mxu0 0
    %549 = vmatprep.subr.bf16.mxu0 0
    %550 = vmatpush2.bf16.msra.mxu0 0
    %551 = vmatprep.subr.bf16.mxu0 0
    %552 = vmatpush2.bf16.msra.mxu0 0
    %553 = vmatprep.subr.bf16.mxu0 0
    %554 = vmatpush2.bf16.msra.mxu0 0
    %555 = vmatprep.subr.bf16.mxu0 0
    %556 = vmatpush2.bf16.msra.mxu0 0
    %557 = vmatprep.mubr.bf16.mxu0 0
    %558 = vmatmul.mubr.bf16.gmra.mxu0 %v195
    %v559 = vpop.f32.mrf.mxu0
    %v560 = vadd.f32 %v511, %v559
    %v561 = vpop.f32.mrf.mxu0
    %v562 = vpop.f32.mrf.mxu0
    %v563 = vadd.f32 %v511, %v562
    %v564 = vpop.f32.mrf.mxu0
    %565 = vdwg.mxu0
    %s566 = scalar_lea.vmem %s7, 32
    %v567 = vld [vmem:[%s566] sm:$0xf]
    %v568 = vld [vmem:[%s566 + $0x4] sm:$0xf]
    %v569 = vld [vmem:[%s566 + $0x8] sm:$0xf]
    %v570 = vld [vmem:[%s566 + $0xc] sm:$0xf]
    %s571 = scalar_lea.vmem %s8, 2
    %v572 = vld [vmem:[%s571] sm:$0x1]
    %v574 = vlaneseq
    %v575 = vshrl.u32 %v574, 7
    %v576 = vsub.s32 0, %v575
    %v577 = vrot.slane %v572, %v576
    %v583 = vunpack.c.l.b16 %v567
    %v584 = vunpack.c.l.b16 %v568
    %v585 = vunpack.c.l.b16 %v569
    %v586 = vunpack.c.l.b16 %v570
    %v587 = vpack.c.b16 %v584, %v583
    %v588 = vpack.c.b16 %v586, %v585
    %591 = vmatprep.subr.bf16.mxu0 0
    %592 = vmatpush1.bf16.msra.mxu0 0
    %593 = vmatprep.subr.bf16.mxu0 0
    %594 = vmatpush1.bf16.msra.mxu0 0
    %595 = vmatprep.subr.bf16.mxu0 0
    %596 = vmatpush1.bf16.msra.mxu0 0
    %597 = vmatprep.subr.bf16.mxu0 0
    %598 = vmatpush1.bf16.msra.mxu0 0
    %599 = vmatprep.subr.bf16.mxu0 0
    %600 = vmatpush1.bf16.msra.mxu0 0
    %601 = vmatprep.subr.bf16.mxu0 0
    %602 = vmatpush1.bf16.msra.mxu0 0
    %603 = vmatprep.subr.bf16.mxu0 0
    %604 = vmatpush1.bf16.msra.mxu0 %v588
    %605 = vmatprep.subr.bf16.mxu0 0
    %606 = vmatpush1.bf16.msra.mxu0 %v587
    %607 = vmatprep.subr.bf16.mxu0 0
    %608 = vmatpush2.bf16.msra.mxu0 0
    %609 = vmatprep.subr.bf16.mxu0 0
    %610 = vmatpush2.bf16.msra.mxu0 0
    %611 = vmatprep.subr.bf16.mxu0 0
    %612 = vmatpush2.bf16.msra.mxu0 0
    %613 = vmatprep.subr.bf16.mxu0 0
    %614 = vmatpush2.bf16.msra.mxu0 0
    %615 = vmatprep.subr.bf16.mxu0 0
    %616 = vmatpush2.bf16.msra.mxu0 0
    %617 = vmatprep.subr.bf16.mxu0 0
    %618 = vmatpush2.bf16.msra.mxu0 0
    %619 = vmatprep.subr.bf16.mxu0 0
    %620 = vmatpush2.bf16.msra.mxu0 0
    %621 = vmatprep.subr.bf16.mxu0 0
    %622 = vmatpush2.bf16.msra.mxu0 0
    %623 = vmatprep.mubr.bf16.mxu0 0
    %624 = vmatmul.mubr.bf16.gmra.mxu0 %v195
    %v625 = vpop.f32.mrf.mxu0
    %v626 = vadd.f32 %v577, %v625
    %v627 = vpop.f32.mrf.mxu0
    %v628 = vpop.f32.mrf.mxu0
    %v629 = vadd.f32 %v577, %v628
    %v630 = vpop.f32.mrf.mxu0
    %631 = vdwg.mxu0
    %s632 = scalar_lea.vmem %s7, 48
    %v633 = vld [vmem:[%s632] sm:$0xf]
    %v634 = vld [vmem:[%s632 + $0x4] sm:$0xf]
    %v635 = vld [vmem:[%s632 + $0x8] sm:$0xf]
    %v636 = vld [vmem:[%s632 + $0xc] sm:$0xf]
    %s637 = scalar_lea.vmem %s8, 3
    %v638 = vld [vmem:[%s637] sm:$0x1]
    %v640 = vlaneseq
    %v641 = vshrl.u32 %v640, 7
    %v642 = vsub.s32 0, %v641
    %v643 = vrot.slane %v638, %v642
    %v649 = vunpack.c.l.b16 %v633
    %v650 = vunpack.c.l.b16 %v634
    %v651 = vunpack.c.l.b16 %v635
    %v652 = vunpack.c.l.b16 %v636
    %v653 = vpack.c.b16 %v650, %v649
    %v654 = vpack.c.b16 %v652, %v651
    %657 = vmatprep.subr.bf16.mxu0 0
    %658 = vmatpush1.bf16.msra.mxu0 0
    %659 = vmatprep.subr.bf16.mxu0 0
    %660 = vmatpush1.bf16.msra.mxu0 0
    %661 = vmatprep.subr.bf16.mxu0 0
    %662 = vmatpush1.bf16.msra.mxu0 0
    %663 = vmatprep.subr.bf16.mxu0 0
    %664 = vmatpush1.bf16.msra.mxu0 0
    %665 = vmatprep.subr.bf16.mxu0 0
    %666 = vmatpush1.bf16.msra.mxu0 0
    %667 = vmatprep.subr.bf16.mxu0 0
    %668 = vmatpush1.bf16.msra.mxu0 0
    %669 = vmatprep.subr.bf16.mxu0 0
    %670 = vmatpush1.bf16.msra.mxu0 %v654
    %671 = vmatprep.subr.bf16.mxu0 0
    %672 = vmatpush1.bf16.msra.mxu0 %v653
    %673 = vmatprep.subr.bf16.mxu0 0
    %674 = vmatpush2.bf16.msra.mxu0 0
    %675 = vmatprep.subr.bf16.mxu0 0
    %676 = vmatpush2.bf16.msra.mxu0 0
    %677 = vmatprep.subr.bf16.mxu0 0
    %678 = vmatpush2.bf16.msra.mxu0 0
    %679 = vmatprep.subr.bf16.mxu0 0
    %680 = vmatpush2.bf16.msra.mxu0 0
    %681 = vmatprep.subr.bf16.mxu0 0
    %682 = vmatpush2.bf16.msra.mxu0 0
    %683 = vmatprep.subr.bf16.mxu0 0
    %684 = vmatpush2.bf16.msra.mxu0 0
    %685 = vmatprep.subr.bf16.mxu0 0
    %686 = vmatpush2.bf16.msra.mxu0 0
    %687 = vmatprep.subr.bf16.mxu0 0
    %688 = vmatpush2.bf16.msra.mxu0 0
    %689 = vmatprep.mubr.bf16.mxu0 0
    %690 = vmatmul.mubr.bf16.gmra.mxu0 %v195
    %v691 = vpop.f32.mrf.mxu0
    %v692 = vadd.f32 %v643, %v691
    %v693 = vpop.f32.mrf.mxu0
    %v694 = vpop.f32.mrf.mxu0
    %v695 = vadd.f32 %v643, %v694
    %v696 = vpop.f32.mrf.mxu0
    %697 = vdwg.mxu0
    %v698 = vld [vmem:[%s9] sm:$0xf]
    %v699 = vld [vmem:[%s9 + $0x4] sm:$0xf]
    %v700 = vld [vmem:[%s9 + $0x8] sm:$0xf]
    %v701 = vld [vmem:[%s9 + $0xc] sm:$0xf]
    %v702 = vld [vmem:[%s10] sm:$0x1]
    %v704 = vlaneseq
    %v705 = vshrl.u32 %v704, 7
    %v706 = vsub.s32 0, %v705
    %v707 = vrot.slane %v702, %v706
    %v713 = vunpack.c.l.b16 %v698
    %v714 = vunpack.c.l.b16 %v699
    %v715 = vunpack.c.l.b16 %v700
    %v716 = vunpack.c.l.b16 %v701
    %v717 = vpack.c.b16 %v714, %v713
    %v718 = vpack.c.b16 %v716, %v715
    %721 = vmatprep.subr.bf16.mxu0 0
    %722 = vmatpush1.bf16.msra.mxu0 0
    %723 = vmatprep.subr.bf16.mxu0 0
    %724 = vmatpush1.bf16.msra.mxu0 0
    %725 = vmatprep.subr.bf16.mxu0 0
    %726 = vmatpush1.bf16.msra.mxu0 0
    %727 = vmatprep.subr.bf16.mxu0 0
    %728 = vmatpush1.bf16.msra.mxu0 0
    %729 = vmatprep.subr.bf16.mxu0 0
    %730 = vmatpush1.bf16.msra.mxu0 0
    %731 = vmatprep.subr.bf16.mxu0 0
    %732 = vmatpush1.bf16.msra.mxu0 0
    %733 = vmatprep.subr.bf16.mxu0 0
    %734 = vmatpush1.bf16.msra.mxu0 %v718
    %735 = vmatprep.subr.bf16.mxu0 0
    %736 = vmatpush1.bf16.msra.mxu0 %v717
    %737 = vmatprep.subr.bf16.mxu0 0
    %738 = vmatpush2.bf16.msra.mxu0 0
    %739 = vmatprep.subr.bf16.mxu0 0
    %740 = vmatpush2.bf16.msra.mxu0 0
    %741 = vmatprep.subr.bf16.mxu0 0
    %742 = vmatpush2.bf16.msra.mxu0 0
    %743 = vmatprep.subr.bf16.mxu0 0
    %744 = vmatpush2.bf16.msra.mxu0 0
    %745 = vmatprep.subr.bf16.mxu0 0
    %746 = vmatpush2.bf16.msra.mxu0 0
    %747 = vmatprep.subr.bf16.mxu0 0
    %748 = vmatpush2.bf16.msra.mxu0 0
    %749 = vmatprep.subr.bf16.mxu0 0
    %750 = vmatpush2.bf16.msra.mxu0 0
    %751 = vmatprep.subr.bf16.mxu0 0
    %752 = vmatpush2.bf16.msra.mxu0 0
    %753 = vmatprep.mubr.bf16.mxu0 0
    %754 = vmatmul.mubr.bf16.gmra.mxu0 %v195
    %v755 = vpop.f32.mrf.mxu0
    %v756 = vadd.f32 %v707, %v755
    %v757 = vpop.f32.mrf.mxu0
    %v758 = vpop.f32.mrf.mxu0
    %v759 = vadd.f32 %v707, %v758
    %v760 = vpop.f32.mrf.mxu0
    %761 = vdwg.mxu0
    %s762 = scalar_lea.vmem %s9, 16
    %v763 = vld [vmem:[%s762] sm:$0xf]
    %v764 = vld [vmem:[%s762 + $0x4] sm:$0xf]
    %v765 = vld [vmem:[%s762 + $0x8] sm:$0xf]
    %v766 = vld [vmem:[%s762 + $0xc] sm:$0xf]
    %s767 = scalar_lea.vmem %s10, 1
    %v768 = vld [vmem:[%s767] sm:$0x1]
    %v770 = vlaneseq
    %v771 = vshrl.u32 %v770, 7
    %v772 = vsub.s32 0, %v771
    %v773 = vrot.slane %v768, %v772
    %v779 = vunpack.c.l.b16 %v763
    %v780 = vunpack.c.l.b16 %v764
    %v781 = vunpack.c.l.b16 %v765
    %v782 = vunpack.c.l.b16 %v766
    %v783 = vpack.c.b16 %v780, %v779
    %v784 = vpack.c.b16 %v782, %v781
    %787 = vmatprep.subr.bf16.mxu0 0
    %788 = vmatpush1.bf16.msra.mxu0 0
    %789 = vmatprep.subr.bf16.mxu0 0
    %790 = vmatpush1.bf16.msra.mxu0 0
    %791 = vmatprep.subr.bf16.mxu0 0
    %792 = vmatpush1.bf16.msra.mxu0 0
    %793 = vmatprep.subr.bf16.mxu0 0
    %794 = vmatpush1.bf16.msra.mxu0 0
    %795 = vmatprep.subr.bf16.mxu0 0
    %796 = vmatpush1.bf16.msra.mxu0 0
    %797 = vmatprep.subr.bf16.mxu0 0
    %798 = vmatpush1.bf16.msra.mxu0 0
    %799 = vmatprep.subr.bf16.mxu0 0
    %800 = vmatpush1.bf16.msra.mxu0 %v784
    %801 = vmatprep.subr.bf16.mxu0 0
    %802 = vmatpush1.bf16.msra.mxu0 %v783
    %803 = vmatprep.subr.bf16.mxu0 0
    %804 = vmatpush2.bf16.msra.mxu0 0
    %805 = vmatprep.subr.bf16.mxu0 0
    %806 = vmatpush2.bf16.msra.mxu0 0
    %807 = vmatprep.subr.bf16.mxu0 0
    %808 = vmatpush2.bf16.msra.mxu0 0
    %809 = vmatprep.subr.bf16.mxu0 0
    %810 = vmatpush2.bf16.msra.mxu0 0
    %811 = vmatprep.subr.bf16.mxu0 0
    %812 = vmatpush2.bf16.msra.mxu0 0
    %813 = vmatprep.subr.bf16.mxu0 0
    %814 = vmatpush2.bf16.msra.mxu0 0
    %815 = vmatprep.subr.bf16.mxu0 0
    %816 = vmatpush2.bf16.msra.mxu0 0
    %817 = vmatprep.subr.bf16.mxu0 0
    %818 = vmatpush2.bf16.msra.mxu0 0
    %819 = vmatprep.mubr.bf16.mxu0 0
    %820 = vmatmul.mubr.bf16.gmra.mxu0 %v195
    %v821 = vpop.f32.mrf.mxu0
    %v822 = vadd.f32 %v773, %v821
    %v823 = vpop.f32.mrf.mxu0
    %v824 = vpop.f32.mrf.mxu0
    %v825 = vadd.f32 %v773, %v824
    %v826 = vpop.f32.mrf.mxu0
    %827 = vdwg.mxu0
    %s828 = scalar_lea.vmem %s9, 32
    %v829 = vld [vmem:[%s828] sm:$0xf]
    %v830 = vld [vmem:[%s828 + $0x4] sm:$0xf]
    %v831 = vld [vmem:[%s828 + $0x8] sm:$0xf]
    %v832 = vld [vmem:[%s828 + $0xc] sm:$0xf]
    %s833 = scalar_lea.vmem %s10, 2
    %v834 = vld [vmem:[%s833] sm:$0x1]
    %v836 = vlaneseq
    %v837 = vshrl.u32 %v836, 7
    %v838 = vsub.s32 0, %v837
    %v839 = vrot.slane %v834, %v838
    %v845 = vunpack.c.l.b16 %v829
    %v846 = vunpack.c.l.b16 %v830
    %v847 = vunpack.c.l.b16 %v831
    %v848 = vunpack.c.l.b16 %v832
    %v849 = vpack.c.b16 %v846, %v845
    %v850 = vpack.c.b16 %v848, %v847
    %853 = vmatprep.subr.bf16.mxu0 0
    %854 = vmatpush1.bf16.msra.mxu0 0
    %855 = vmatprep.subr.bf16.mxu0 0
    %856 = vmatpush1.bf16.msra.mxu0 0
    %857 = vmatprep.subr.bf16.mxu0 0
    %858 = vmatpush1.bf16.msra.mxu0 0
    %859 = vmatprep.subr.bf16.mxu0 0
    %860 = vmatpush1.bf16.msra.mxu0 0
    %861 = vmatprep.subr.bf16.mxu0 0
    %862 = vmatpush1.bf16.msra.mxu0 0
    %863 = vmatprep.subr.bf16.mxu0 0
    %864 = vmatpush1.bf16.msra.mxu0 0
    %865 = vmatprep.subr.bf16.mxu0 0
    %866 = vmatpush1.bf16.msra.mxu0 %v850
    %867 = vmatprep.subr.bf16.mxu0 0
    %868 = vmatpush1.bf16.msra.mxu0 %v849
    %869 = vmatprep.subr.bf16.mxu0 0
    %870 = vmatpush2.bf16.msra.mxu0 0
    %871 = vmatprep.subr.bf16.mxu0 0
    %872 = vmatpush2.bf16.msra.mxu0 0
    %873 = vmatprep.subr.bf16.mxu0 0
    %874 = vmatpush2.bf16.msra.mxu0 0
    %875 = vmatprep.subr.bf16.mxu0 0
    %876 = vmatpush2.bf16.msra.mxu0 0
    %877 = vmatprep.subr.bf16.mxu0 0
    %878 = vmatpush2.bf16.msra.mxu0 0
    %879 = vmatprep.subr.bf16.mxu0 0
    %880 = vmatpush2.bf16.msra.mxu0 0
    %881 = vmatprep.subr.bf16.mxu0 0
    %882 = vmatpush2.bf16.msra.mxu0 0
    %883 = vmatprep.subr.bf16.mxu0 0
    %884 = vmatpush2.bf16.msra.mxu0 0
    %885 = vmatprep.mubr.bf16.mxu0 0
    %886 = vmatmul.mubr.bf16.gmra.mxu0 %v195
    %v887 = vpop.f32.mrf.mxu0
    %v888 = vadd.f32 %v839, %v887
    %v889 = vpop.f32.mrf.mxu0
    %v890 = vpop.f32.mrf.mxu0
    %v891 = vadd.f32 %v839, %v890
    %v892 = vpop.f32.mrf.mxu0
    %893 = vdwg.mxu0
    %s894 = scalar_lea.vmem %s9, 48
    %v895 = vld [vmem:[%s894] sm:$0xf]
    %v896 = vld [vmem:[%s894 + $0x4] sm:$0xf]
    %v897 = vld [vmem:[%s894 + $0x8] sm:$0xf]
    %v898 = vld [vmem:[%s894 + $0xc] sm:$0xf]
    %s899 = scalar_lea.vmem %s10, 3
    %v900 = vld [vmem:[%s899] sm:$0x1]
    %v902 = vlaneseq
    %v903 = vshrl.u32 %v902, 7
    %v904 = vsub.s32 0, %v903
    %v905 = vrot.slane %v900, %v904
    %v911 = vunpack.c.l.b16 %v895
    %v912 = vunpack.c.l.b16 %v896
    %v913 = vunpack.c.l.b16 %v897
    %v914 = vunpack.c.l.b16 %v898
    %v915 = vpack.c.b16 %v912, %v911
    %v916 = vpack.c.b16 %v914, %v913
    %919 = vmatprep.subr.bf16.mxu0 0
    %920 = vmatpush1.bf16.msra.mxu0 0
    %921 = vmatprep.subr.bf16.mxu0 0
    %922 = vmatpush1.bf16.msra.mxu0 0
    %923 = vmatprep.subr.bf16.mxu0 0
    %924 = vmatpush1.bf16.msra.mxu0 0
    %925 = vmatprep.subr.bf16.mxu0 0
    %926 = vmatpush1.bf16.msra.mxu0 0
    %927 = vmatprep.subr.bf16.mxu0 0
    %928 = vmatpush1.bf16.msra.mxu0 0
    %929 = vmatprep.subr.bf16.mxu0 0
    %930 = vmatpush1.bf16.msra.mxu0 0
    %931 = vmatprep.subr.bf16.mxu0 0
    %932 = vmatpush1.bf16.msra.mxu0 %v916
    %933 = vmatprep.subr.bf16.mxu0 0
    %934 = vmatpush1.bf16.msra.mxu0 %v915
    %935 = vmatprep.subr.bf16.mxu0 0
    %936 = vmatpush2.bf16.msra.mxu0 0
    %937 = vmatprep.subr.bf16.mxu0 0
    %938 = vmatpush2.bf16.msra.mxu0 0
    %939 = vmatprep.subr.bf16.mxu0 0
    %940 = vmatpush2.bf16.msra.mxu0 0
    %941 = vmatprep.subr.bf16.mxu0 0
    %942 = vmatpush2.bf16.msra.mxu0 0
    %943 = vmatprep.subr.bf16.mxu0 0
    %944 = vmatpush2.bf16.msra.mxu0 0
    %945 = vmatprep.subr.bf16.mxu0 0
    %946 = vmatpush2.bf16.msra.mxu0 0
    %947 = vmatprep.subr.bf16.mxu0 0
    %948 = vmatpush2.bf16.msra.mxu0 0
    %949 = vmatprep.subr.bf16.mxu0 0
    %950 = vmatpush2.bf16.msra.mxu0 0
    %951 = vmatprep.mubr.bf16.mxu0 0
    %952 = vmatmul.mubr.bf16.gmra.mxu0 %v195
    %v953 = vpop.f32.mrf.mxu0
    %v954 = vadd.f32 %v905, %v953
    %v955 = vpop.f32.mrf.mxu0
    %v956 = vpop.f32.mrf.mxu0
    %v957 = vadd.f32 %v905, %v956
    %v958 = vpop.f32.mrf.mxu0
    %959 = vdwg.mxu0
    %vm960 = vcmask 64512
    %v962 = vsel %vm960, %v232, 0
    %v965 = vsel %vm960, %v235, 0
    %v968 = vsel %vm960, %v494, 0
    %v971 = vsel %vm960, %v497, 0
    %973 = vmatprep.subr.mxu0 0.0
    %974 = vmatpush1.xpose.msra.mxu0 0.0
    %975 = vmatprep.subr.mxu0 0.0
    %976 = vmatpush1.xpose.msra.mxu0 0.0
    %977 = vmatprep.subr.mxu0 0.0
    %978 = vmatpush1.xpose.msra.mxu0 0.0
    %979 = vmatprep.subr.mxu0 0.0
    %980 = vmatpush1.xpose.msra.mxu0 0.0
    %981 = vmatprep.subr.mxu0 0.0
    %982 = vmatpush1.xpose.msra.mxu0 0.0
    %983 = vmatprep.subr.mxu0 0.0
    %984 = vmatpush1.xpose.msra.mxu0 0.0
    %985 = vmatprep.subr.mxu0 0.0
    %986 = vmatpush1.xpose.msra.mxu0 0.0
    %987 = vmatprep.subr.mxu0 0.0
    %988 = vmatpush1.xpose.msra.mxu0 0.0
    %989 = vmatprep.subr.mxu0 0.0
    %990 = vmatpush1.xpose.msra.mxu0 0.0
    %991 = vmatprep.subr.mxu0 0.0
    %992 = vmatpush1.xpose.msra.mxu0 0.0
    %993 = vmatprep.subr.mxu0 0.0
    %994 = vmatpush1.xpose.msra.mxu0 0.0
    %995 = vmatprep.subr.mxu0 0.0
    %996 = vmatpush1.xpose.msra.mxu0 0.0
    %997 = vmatprep.subr.mxu0 0.0
    %998 = vmatpush1.xpose.msra.mxu0 0.0
    %999 = vmatprep.subr.mxu0 0.0
    %1000 = vmatpush1.xpose.msra.mxu0 0.0
    %1001 = vmatprep.subr.mxu0 0.0
    %1002 = vmatpush1.xpose.msra.mxu0 %v971
    %1003 = vmatprep.subr.mxu0 0.0
    %1004 = vmatpush1.xpose.msra.mxu0 %v968
    %1005 = vmatprep.subr.mxu0 0.0
    %1006 = vmatpush2.xpose.msra.mxu0 0.0
    %1007 = vmatprep.subr.mxu0 0.0
    %1008 = vmatpush2.xpose.msra.mxu0 0.0
    %1009 = vmatprep.subr.mxu0 0.0
    %1010 = vmatpush2.xpose.msra.mxu0 0.0
    %1011 = vmatprep.subr.mxu0 0.0
    %1012 = vmatpush2.xpose.msra.mxu0 0.0
    %1013 = vmatprep.subr.mxu0 0.0
    %1014 = vmatpush2.xpose.msra.mxu0 0.0
    %1015 = vmatprep.subr.mxu0 0.0
    %1016 = vmatpush2.xpose.msra.mxu0 0.0
    %1017 = vmatprep.subr.mxu0 0.0
    %1018 = vmatpush2.xpose.msra.mxu0 0.0
    %1019 = vmatprep.subr.mxu0 0.0
    %1020 = vmatpush2.xpose.msra.mxu0 0.0
    %1021 = vmatprep.subr.mxu0 0.0
    %1022 = vmatpush2.xpose.msra.mxu0 0.0
    %1023 = vmatprep.subr.mxu0 0.0
    %1024 = vmatpush2.xpose.msra.mxu0 0.0
    %1025 = vmatprep.subr.mxu0 0.0
    %1026 = vmatpush2.xpose.msra.mxu0 0.0
    %1027 = vmatprep.subr.mxu0 0.0
    %1028 = vmatpush2.xpose.msra.mxu0 0.0
    %1029 = vmatprep.subr.mxu0 0.0
    %1030 = vmatpush2.xpose.msra.mxu0 0.0
    %1031 = vmatprep.subr.mxu0 0.0
    %1032 = vmatpush2.xpose.msra.mxu0 0.0
    %1033 = vmatprep.subr.mxu0 0.0
    %1034 = vmatpush2.xpose.msra.mxu0 0.0
    %1035 = vmatprep.subr.mxu0 0.0
    %1036 = vmatpush2.xpose.msra.mxu0 0.0
    %1037 = vmatprep.mubr.f32.mxu0 0.0
    %1038 = vmatmul.mubr.f32.gmra.mxu0 %v962
    %v1039 = vpop.f32.mrf.mxu0
    %v1040 = vadd.f32 0.0, %v1039
    %v1041 = vpop.f32.mrf.mxu0
    %1042 = vmatprep.mubr.f32.mxu0 0.0
    %1043 = vmatmul.mubr.f32.gmra.mxu0 %v965
    %v1044 = vpop.f32.mrf.mxu0
    %v1045 = vadd.f32 0.0, %v1044
    %v1046 = vpop.f32.mrf.mxu0
    %1047 = vdwg.mxu0
    %v1049 = vsel %vm960, %v298, 0
    %v1052 = vsel %vm960, %v301, 0
    %v1055 = vsel %vm960, %v560, 0
    %v1058 = vsel %vm960, %v563, 0
    %1060 = vmatprep.subr.mxu0 0.0
    %1061 = vmatpush1.xpose.msra.mxu0 0.0
    %1062 = vmatprep.subr.mxu0 0.0
    %1063 = vmatpush1.xpose.msra.mxu0 0.0
    %1064 = vmatprep.subr.mxu0 0.0
    %1065 = vmatpush1.xpose.msra.mxu0 0.0
    %1066 = vmatprep.subr.mxu0 0.0
    %1067 = vmatpush1.xpose.msra.mxu0 0.0
    %1068 = vmatprep.subr.mxu0 0.0
    %1069 = vmatpush1.xpose.msra.mxu0 0.0
    %1070 = vmatprep.subr.mxu0 0.0
    %1071 = vmatpush1.xpose.msra.mxu0 0.0
    %1072 = vmatprep.subr.mxu0 0.0
    %1073 = vmatpush1.xpose.msra.mxu0 0.0
    %1074 = vmatprep.subr.mxu0 0.0
    %1075 = vmatpush1.xpose.msra.mxu0 0.0
    %1076 = vmatprep.subr.mxu0 0.0
    %1077 = vmatpush1.xpose.msra.mxu0 0.0
    %1078 = vmatprep.subr.mxu0 0.0
    %1079 = vmatpush1.xpose.msra.mxu0 0.0
    %1080 = vmatprep.subr.mxu0 0.0
    %1081 = vmatpush1.xpose.msra.mxu0 0.0
    %1082 = vmatprep.subr.mxu0 0.0
    %1083 = vmatpush1.xpose.msra.mxu0 0.0
    %1084 = vmatprep.subr.mxu0 0.0
    %1085 = vmatpush1.xpose.msra.mxu0 0.0
    %1086 = vmatprep.subr.mxu0 0.0
    %1087 = vmatpush1.xpose.msra.mxu0 0.0
    %1088 = vmatprep.subr.mxu0 0.0
    %1089 = vmatpush1.xpose.msra.mxu0 %v1058
    %1090 = vmatprep.subr.mxu0 0.0
    %1091 = vmatpush1.xpose.msra.mxu0 %v1055
    %1092 = vmatprep.subr.mxu0 0.0
    %1093 = vmatpush2.xpose.msra.mxu0 0.0
    %1094 = vmatprep.subr.mxu0 0.0
    %1095 = vmatpush2.xpose.msra.mxu0 0.0
    %1096 = vmatprep.subr.mxu0 0.0
    %1097 = vmatpush2.xpose.msra.mxu0 0.0
    %1098 = vmatprep.subr.mxu0 0.0
    %1099 = vmatpush2.xpose.msra.mxu0 0.0
    %1100 = vmatprep.subr.mxu0 0.0
    %1101 = vmatpush2.xpose.msra.mxu0 0.0
    %1102 = vmatprep.subr.mxu0 0.0
    %1103 = vmatpush2.xpose.msra.mxu0 0.0
    %1104 = vmatprep.subr.mxu0 0.0
    %1105 = vmatpush2.xpose.msra.mxu0 0.0
    %1106 = vmatprep.subr.mxu0 0.0
    %1107 = vmatpush2.xpose.msra.mxu0 0.0
    %1108 = vmatprep.subr.mxu0 0.0
    %1109 = vmatpush2.xpose.msra.mxu0 0.0
    %1110 = vmatprep.subr.mxu0 0.0
    %1111 = vmatpush2.xpose.msra.mxu0 0.0
    %1112 = vmatprep.subr.mxu0 0.0
    %1113 = vmatpush2.xpose.msra.mxu0 0.0
    %1114 = vmatprep.subr.mxu0 0.0
    %1115 = vmatpush2.xpose.msra.mxu0 0.0
    %1116 = vmatprep.subr.mxu0 0.0
    %1117 = vmatpush2.xpose.msra.mxu0 0.0
    %1118 = vmatprep.subr.mxu0 0.0
    %1119 = vmatpush2.xpose.msra.mxu0 0.0
    %1120 = vmatprep.subr.mxu0 0.0
    %1121 = vmatpush2.xpose.msra.mxu0 0.0
    %1122 = vmatprep.subr.mxu0 0.0
    %1123 = vmatpush2.xpose.msra.mxu0 0.0
    %1124 = vmatprep.mubr.f32.mxu0 0.0
    %1125 = vmatmul.mubr.f32.gmra.mxu0 %v1049
    %v1126 = vpop.f32.mrf.mxu0
    %v1127 = vadd.f32 0.0, %v1126
    %v1128 = vpop.f32.mrf.mxu0
    %1129 = vmatprep.mubr.f32.mxu0 0.0
    %1130 = vmatmul.mubr.f32.gmra.mxu0 %v1052
    %v1131 = vpop.f32.mrf.mxu0
    %v1132 = vadd.f32 0.0, %v1131
    %v1133 = vpop.f32.mrf.mxu0
    %1134 = vdwg.mxu0
    %v1136 = vsel %vm960, %v364, 0
    %v1139 = vsel %vm960, %v367, 0
    %v1142 = vsel %vm960, %v626, 0
    %v1145 = vsel %vm960, %v629, 0
    %1147 = vmatprep.subr.mxu0 0.0
    %1148 = vmatpush1.xpose.msra.mxu0 0.0
    %1149 = vmatprep.subr.mxu0 0.0
    %1150 = vmatpush1.xpose.msra.mxu0 0.0
    %1151 = vmatprep.subr.mxu0 0.0
    %1152 = vmatpush1.xpose.msra.mxu0 0.0
    %1153 = vmatprep.subr.mxu0 0.0
    %1154 = vmatpush1.xpose.msra.mxu0 0.0
    %1155 = vmatprep.subr.mxu0 0.0
    %1156 = vmatpush1.xpose.msra.mxu0 0.0
    %1157 = vmatprep.subr.mxu0 0.0
    %1158 = vmatpush1.xpose.msra.mxu0 0.0
    %1159 = vmatprep.subr.mxu0 0.0
    %1160 = vmatpush1.xpose.msra.mxu0 0.0
    %1161 = vmatprep.subr.mxu0 0.0
    %1162 = vmatpush1.xpose.msra.mxu0 0.0
    %1163 = vmatprep.subr.mxu0 0.0
    %1164 = vmatpush1.xpose.msra.mxu0 0.0
    %1165 = vmatprep.subr.mxu0 0.0
    %1166 = vmatpush1.xpose.msra.mxu0 0.0
    %1167 = vmatprep.subr.mxu0 0.0
    %1168 = vmatpush1.xpose.msra.mxu0 0.0
    %1169 = vmatprep.subr.mxu0 0.0
    %1170 = vmatpush1.xpose.msra.mxu0 0.0
    %1171 = vmatprep.subr.mxu0 0.0
    %1172 = vmatpush1.xpose.msra.mxu0 0.0
    %1173 = vmatprep.subr.mxu0 0.0
    %1174 = vmatpush1.xpose.msra.mxu0 0.0
    %1175 = vmatprep.subr.mxu0 0.0
    %1176 = vmatpush1.xpose.msra.mxu0 %v1145
    %1177 = vmatprep.subr.mxu0 0.0
    %1178 = vmatpush1.xpose.msra.mxu0 %v1142
    %1179 = vmatprep.subr.mxu0 0.0
    %1180 = vmatpush2.xpose.msra.mxu0 0.0
    %1181 = vmatprep.subr.mxu0 0.0
    %1182 = vmatpush2.xpose.msra.mxu0 0.0
    %1183 = vmatprep.subr.mxu0 0.0
    %1184 = vmatpush2.xpose.msra.mxu0 0.0
    %1185 = vmatprep.subr.mxu0 0.0
    %1186 = vmatpush2.xpose.msra.mxu0 0.0
    %1187 = vmatprep.subr.mxu0 0.0
    %1188 = vmatpush2.xpose.msra.mxu0 0.0
    %1189 = vmatprep.subr.mxu0 0.0
    %1190 = vmatpush2.xpose.msra.mxu0 0.0
    %1191 = vmatprep.subr.mxu0 0.0
    %1192 = vmatpush2.xpose.msra.mxu0 0.0
    %1193 = vmatprep.subr.mxu0 0.0
    %1194 = vmatpush2.xpose.msra.mxu0 0.0
    %1195 = vmatprep.subr.mxu0 0.0
    %1196 = vmatpush2.xpose.msra.mxu0 0.0
    %1197 = vmatprep.subr.mxu0 0.0
    %1198 = vmatpush2.xpose.msra.mxu0 0.0
    %1199 = vmatprep.subr.mxu0 0.0
    %1200 = vmatpush2.xpose.msra.mxu0 0.0
    %1201 = vmatprep.subr.mxu0 0.0
    %1202 = vmatpush2.xpose.msra.mxu0 0.0
    %1203 = vmatprep.subr.mxu0 0.0
    %1204 = vmatpush2.xpose.msra.mxu0 0.0
    %1205 = vmatprep.subr.mxu0 0.0
    %1206 = vmatpush2.xpose.msra.mxu0 0.0
    %1207 = vmatprep.subr.mxu0 0.0
    %1208 = vmatpush2.xpose.msra.mxu0 0.0
    %1209 = vmatprep.subr.mxu0 0.0
    %1210 = vmatpush2.xpose.msra.mxu0 0.0
    %1211 = vmatprep.mubr.f32.mxu0 0.0
    %1212 = vmatmul.mubr.f32.gmra.mxu0 %v1136
    %v1213 = vpop.f32.mrf.mxu0
    %v1214 = vadd.f32 0.0, %v1213
    %v1215 = vpop.f32.mrf.mxu0
    %1216 = vmatprep.mubr.f32.mxu0 0.0
    %1217 = vmatmul.mubr.f32.gmra.mxu0 %v1139
    %v1218 = vpop.f32.mrf.mxu0
    %v1219 = vadd.f32 0.0, %v1218
    %v1220 = vpop.f32.mrf.mxu0
    %1221 = vdwg.mxu0
    %v1223 = vsel %vm960, %v430, 0
    %v1226 = vsel %vm960, %v433, 0
    %v1229 = vsel %vm960, %v692, 0
    %v1232 = vsel %vm960, %v695, 0
    %1234 = vmatprep.subr.mxu0 0.0
    %1235 = vmatpush1.xpose.msra.mxu0 0.0
    %1236 = vmatprep.subr.mxu0 0.0
    %1237 = vmatpush1.xpose.msra.mxu0 0.0
    %1238 = vmatprep.subr.mxu0 0.0
    %1239 = vmatpush1.xpose.msra.mxu0 0.0
    %1240 = vmatprep.subr.mxu0 0.0
    %1241 = vmatpush1.xpose.msra.mxu0 0.0
    %1242 = vmatprep.subr.mxu0 0.0
    %1243 = vmatpush1.xpose.msra.mxu0 0.0
    %1244 = vmatprep.subr.mxu0 0.0
    %1245 = vmatpush1.xpose.msra.mxu0 0.0
    %1246 = vmatprep.subr.mxu0 0.0
    %1247 = vmatpush1.xpose.msra.mxu0 0.0
    %1248 = vmatprep.subr.mxu0 0.0
    %1249 = vmatpush1.xpose.msra.mxu0 0.0
    %1250 = vmatprep.subr.mxu0 0.0
    %1251 = vmatpush1.xpose.msra.mxu0 0.0
    %1252 = vmatprep.subr.mxu0 0.0
    %1253 = vmatpush1.xpose.msra.mxu0 0.0
    %1254 = vmatprep.subr.mxu0 0.0
    %1255 = vmatpush1.xpose.msra.mxu0 0.0
    %1256 = vmatprep.subr.mxu0 0.0
    %1257 = vmatpush1.xpose.msra.mxu0 0.0
    %1258 = vmatprep.subr.mxu0 0.0
    %1259 = vmatpush1.xpose.msra.mxu0 0.0
    %1260 = vmatprep.subr.mxu0 0.0
    %1261 = vmatpush1.xpose.msra.mxu0 0.0
    %1262 = vmatprep.subr.mxu0 0.0
    %1263 = vmatpush1.xpose.msra.mxu0 %v1232
    %1264 = vmatprep.subr.mxu0 0.0
    %1265 = vmatpush1.xpose.msra.mxu0 %v1229
    %1266 = vmatprep.subr.mxu0 0.0
    %1267 = vmatpush2.xpose.msra.mxu0 0.0
    %1268 = vmatprep.subr.mxu0 0.0
    %1269 = vmatpush2.xpose.msra.mxu0 0.0
    %1270 = vmatprep.subr.mxu0 0.0
    %1271 = vmatpush2.xpose.msra.mxu0 0.0
    %1272 = vmatprep.subr.mxu0 0.0
    %1273 = vmatpush2.xpose.msra.mxu0 0.0
    %1274 = vmatprep.subr.mxu0 0.0
    %1275 = vmatpush2.xpose.msra.mxu0 0.0
    %1276 = vmatprep.subr.mxu0 0.0
    %1277 = vmatpush2.xpose.msra.mxu0 0.0
    %1278 = vmatprep.subr.mxu0 0.0
    %1279 = vmatpush2.xpose.msra.mxu0 0.0
    %1280 = vmatprep.subr.mxu0 0.0
    %1281 = vmatpush2.xpose.msra.mxu0 0.0
    %1282 = vmatprep.subr.mxu0 0.0
    %1283 = vmatpush2.xpose.msra.mxu0 0.0
    %1284 = vmatprep.subr.mxu0 0.0
    %1285 = vmatpush2.xpose.msra.mxu0 0.0
    %1286 = vmatprep.subr.mxu0 0.0
    %1287 = vmatpush2.xpose.msra.mxu0 0.0
    %1288 = vmatprep.subr.mxu0 0.0
    %1289 = vmatpush2.xpose.msra.mxu0 0.0
    %1290 = vmatprep.subr.mxu0 0.0
    %1291 = vmatpush2.xpose.msra.mxu0 0.0
    %1292 = vmatprep.subr.mxu0 0.0
    %1293 = vmatpush2.xpose.msra.mxu0 0.0
    %1294 = vmatprep.subr.mxu0 0.0
    %1295 = vmatpush2.xpose.msra.mxu0 0.0
    %1296 = vmatprep.subr.mxu0 0.0
    %1297 = vmatpush2.xpose.msra.mxu0 0.0
    %1298 = vmatprep.mubr.f32.mxu0 0.0
    %1299 = vmatmul.mubr.f32.gmra.mxu0 %v1223
    %v1300 = vpop.f32.mrf.mxu0
    %v1301 = vadd.f32 0.0, %v1300
    %v1302 = vpop.f32.mrf.mxu0
    %1303 = vmatprep.mubr.f32.mxu0 0.0
    %1304 = vmatmul.mubr.f32.gmra.mxu0 %v1226
    %v1305 = vpop.f32.mrf.mxu0
    %v1306 = vadd.f32 0.0, %v1305
    %v1307 = vpop.f32.mrf.mxu0
    %1308 = vdwg.mxu0
    %v1309 = vmul.f32 %v1040, 0.35355338
    %v1310 = vmul.f32 %v1045, 0.35355338
    %v1311 = vmul.f32 %v1127, 0.35355338
    %v1312 = vmul.f32 %v1132, 0.35355338
    %v1313 = vmul.f32 %v1214, 0.35355338
    %v1314 = vmul.f32 %v1219, 0.35355338
    %v1315 = vmul.f32 %v1301, 0.35355338
    %v1316 = vmul.f32 %v1306, 0.35355338
    %v1317 = vadd.f32 %v1309, %v141
    %v1318 = vadd.f32 %v1310, %v142
    %v1319 = vadd.f32 %v1311, %v141
    %v1320 = vadd.f32 %v1312, %v142
    %v1321 = vadd.f32 %v1313, %v141
    %v1322 = vadd.f32 %v1314, %v142
    %v1323 = vadd.f32 %v1315, %v141
    %v1324 = vadd.f32 %v1316, %v142
    %vm1325 = vcmask 130048
    %v1326 = vsel %vm1325, %v1317, -inf
    %1327 = vmax.xlane.f32.xlu0 %v1326
    %v1328 = vpop.xlane.xlu0 %1327
    %v1329 = vsel %vm1325, %v1318, -inf
    %1330 = vmax.xlane.f32.xlu0 %v1329
    %v1331 = vpop.xlane.xlu0 %1330
    %v1332 = vsel %vm1325, %v1319, -inf
    %1333 = vmax.xlane.f32.xlu0 %v1332
    %v1334 = vpop.xlane.xlu0 %1333
    %v1335 = vsel %vm1325, %v1320, -inf
    %1336 = vmax.xlane.f32.xlu0 %v1335
    %v1337 = vpop.xlane.xlu0 %1336
    %v1338 = vsel %vm1325, %v1321, -inf
    %1339 = vmax.xlane.f32.xlu0 %v1338
    %v1340 = vpop.xlane.xlu0 %1339
    %v1341 = vsel %vm1325, %v1322, -inf
    %1342 = vmax.xlane.f32.xlu0 %v1341
    %v1343 = vpop.xlane.xlu0 %1342
    %v1344 = vsel %vm1325, %v1323, -inf
    %1345 = vmax.xlane.f32.xlu0 %v1344
    %v1346 = vpop.xlane.xlu0 %1345
    %v1347 = vsel %vm1325, %v1324, -inf
    %1348 = vmax.xlane.f32.xlu0 %v1347
    %v1349 = vpop.xlane.xlu0 %1348
    %v1350 = vsub.f32 %v1317, %v1328
    %v1351 = vsub.f32 %v1318, %v1331
    %v1352 = vsub.f32 %v1319, %v1334
    %v1353 = vsub.f32 %v1320, %v1337
    %v1354 = vsub.f32 %v1321, %v1340
    %v1355 = vsub.f32 %v1322, %v1343
    %v1356 = vsub.f32 %v1323, %v1346
    %v1357 = vsub.f32 %v1324, %v1349
    %v1358 = vmul.f32 %v1350, 1.442695
    %v1359 = vpow.pop %v1358
    %v1360 = vmul.f32 %v1351, 1.442695
    %v1361 = vpow.pop %v1360
    %v1362 = vmul.f32 %v1352, 1.442695
    %v1363 = vpow.pop %v1362
    %v1364 = vmul.f32 %v1353, 1.442695
    %v1365 = vpow.pop %v1364
    %v1366 = vmul.f32 %v1354, 1.442695
    %v1367 = vpow.pop %v1366
    %v1368 = vmul.f32 %v1355, 1.442695
    %v1369 = vpow.pop %v1368
    %v1370 = vmul.f32 %v1356, 1.442695
    %v1371 = vpow.pop %v1370
    %v1372 = vmul.f32 %v1357, 1.442695
    %v1373 = vpow.pop %v1372
    %v1374 = vsel %vm1325, %v1359, 0.0
    %1375 = vadd.xlane.f32.xlu0 %v1374
    %v1376 = vpop.xlane.xlu0 %1375
    %v1377 = vsel %vm1325, %v1361, 0.0
    %1378 = vadd.xlane.f32.xlu0 %v1377
    %v1379 = vpop.xlane.xlu0 %1378
    %v1380 = vsel %vm1325, %v1363, 0.0
    %1381 = vadd.xlane.f32.xlu0 %v1380
    %v1382 = vpop.xlane.xlu0 %1381
    %v1383 = vsel %vm1325, %v1365, 0.0
    %1384 = vadd.xlane.f32.xlu0 %v1383
    %v1385 = vpop.xlane.xlu0 %1384
    %v1386 = vsel %vm1325, %v1367, 0.0
    %1387 = vadd.xlane.f32.xlu0 %v1386
    %v1388 = vpop.xlane.xlu0 %1387
    %v1389 = vsel %vm1325, %v1369, 0.0
    %1390 = vadd.xlane.f32.xlu0 %v1389
    %v1391 = vpop.xlane.xlu0 %1390
    %v1392 = vsel %vm1325, %v1371, 0.0
    %1393 = vadd.xlane.f32.xlu0 %v1392
    %v1394 = vpop.xlane.xlu0 %1393
    %v1395 = vsel %vm1325, %v1373, 0.0
    %1396 = vadd.xlane.f32.xlu0 %v1395
    %v1397 = vpop.xlane.xlu0 %1396
    %v1398 = vrcp.pop %v1376
    %v1399 = vrcp.pop %v1379
    %v1400 = vrcp.pop %v1382
    %v1401 = vrcp.pop %v1385
    %v1402 = vrcp.pop %v1388
    %v1403 = vrcp.pop %v1391
    %v1404 = vrcp.pop %v1394
    %v1405 = vrcp.pop %v1397
    %v1406 = vmul.f32 %v1359, %v1398
    %v1407 = vmul.f32 %v1361, %v1399
    %v1408 = vmul.f32 %v1363, %v1400
    %v1409 = vmul.f32 %v1365, %v1401
    %v1410 = vmul.f32 %v1367, %v1402
    %v1411 = vmul.f32 %v1369, %v1403
    %v1412 = vmul.f32 %v1371, %v1404
    %v1413 = vmul.f32 %v1373, %v1405
    %v1415 = vsel %vm1325, %v1406, 0
    %v1418 = vsel %vm1325, %v1407, 0
    %1420 = vmatprep.subr.mxu0 0.0
    %1421 = vmatpush1.msra.mxu0 0.0
    %1422 = vmatprep.subr.mxu0 0.0
    %1423 = vmatpush1.msra.mxu0 0.0
    %1424 = vmatprep.subr.mxu0 0.0
    %1425 = vmatpush1.msra.mxu0 0.0
    %1426 = vmatprep.subr.mxu0 0.0
    %1427 = vmatpush1.msra.mxu0 0.0
    %1428 = vmatprep.subr.mxu0 0.0
    %1429 = vmatpush1.msra.mxu0 0.0
    %1430 = vmatprep.subr.mxu0 0.0
    %1431 = vmatpush1.msra.mxu0 0.0
    %1432 = vmatprep.subr.mxu0 0.0
    %1433 = vmatpush1.msra.mxu0 0.0
    %1434 = vmatprep.subr.mxu0 0.0
    %1435 = vmatpush1.msra.mxu0 0.0
    %1436 = vmatprep.subr.mxu0 0.0
    %1437 = vmatpush1.msra.mxu0 0.0
    %1438 = vmatprep.subr.mxu0 0.0
    %1439 = vmatpush1.msra.mxu0 0.0
    %1440 = vmatprep.subr.mxu0 0.0
    %1441 = vmatpush1.msra.mxu0 0.0
    %1442 = vmatprep.subr.mxu0 0.0
    %1443 = vmatpush1.msra.mxu0 0.0
    %1444 = vmatprep.subr.mxu0 0.0
    %1445 = vmatpush1.msra.mxu0 0.0
    %1446 = vmatprep.subr.mxu0 0.0
    %1447 = vmatpush1.msra.mxu0 0.0
    %1448 = vmatprep.subr.mxu0 0.0
    %1449 = vmatpush1.msra.mxu0 %v759
    %1450 = vmatprep.subr.mxu0 0.0
    %1451 = vmatpush1.msra.mxu0 %v756
    %1452 = vmatprep.subr.mxu0 0.0
    %1453 = vmatpush2.msra.mxu0 0.0
    %1454 = vmatprep.subr.mxu0 0.0
    %1455 = vmatpush2.msra.mxu0 0.0
    %1456 = vmatprep.subr.mxu0 0.0
    %1457 = vmatpush2.msra.mxu0 0.0
    %1458 = vmatprep.subr.mxu0 0.0
    %1459 = vmatpush2.msra.mxu0 0.0
    %1460 = vmatprep.subr.mxu0 0.0
    %1461 = vmatpush2.msra.mxu0 0.0
    %1462 = vmatprep.subr.mxu0 0.0
    %1463 = vmatpush2.msra.mxu0 0.0
    %1464 = vmatprep.subr.mxu0 0.0
    %1465 = vmatpush2.msra.mxu0 0.0
    %1466 = vmatprep.subr.mxu0 0.0
    %1467 = vmatpush2.msra.mxu0 0.0
    %1468 = vmatprep.subr.mxu0 0.0
    %1469 = vmatpush2.msra.mxu0 0.0
    %1470 = vmatprep.subr.mxu0 0.0
    %1471 = vmatpush2.msra.mxu0 0.0
    %1472 = vmatprep.subr.mxu0 0.0
    %1473 = vmatpush2.msra.mxu0 0.0
    %1474 = vmatprep.subr.mxu0 0.0
    %1475 = vmatpush2.msra.mxu0 0.0
    %1476 = vmatprep.subr.mxu0 0.0
    %1477 = vmatpush2.msra.mxu0 0.0
    %1478 = vmatprep.subr.mxu0 0.0
    %1479 = vmatpush2.msra.mxu0 0.0
    %1480 = vmatprep.subr.mxu0 0.0
    %1481 = vmatpush2.msra.mxu0 0.0
    %1482 = vmatprep.subr.mxu0 0.0
    %1483 = vmatpush2.msra.mxu0 0.0
    %1484 = vmatprep.mubr.f32.mxu0 0.0
    %1485 = vmatmul.mubr.f32.gmra.mxu0 %v1415
    %v1486 = vpop.f32.mrf.mxu0
    %v1487 = vadd.f32 0.0, %v1486
    %v1488 = vpop.f32.mrf.mxu0
    %1489 = vmatprep.mubr.f32.mxu0 0.0
    %1490 = vmatmul.mubr.f32.gmra.mxu0 %v1418
    %v1491 = vpop.f32.mrf.mxu0
    %v1492 = vadd.f32 0.0, %v1491
    %v1493 = vpop.f32.mrf.mxu0
    %1494 = vdwg.mxu0
    %v1496 = vsel %vm1325, %v1408, 0
    %v1499 = vsel %vm1325, %v1409, 0
    %1501 = vmatprep.subr.mxu0 0.0
    %1502 = vmatpush1.msra.mxu0 0.0
    %1503 = vmatprep.subr.mxu0 0.0
    %1504 = vmatpush1.msra.mxu0 0.0
    %1505 = vmatprep.subr.mxu0 0.0
    %1506 = vmatpush1.msra.mxu0 0.0
    %1507 = vmatprep.subr.mxu0 0.0
    %1508 = vmatpush1.msra.mxu0 0.0
    %1509 = vmatprep.subr.mxu0 0.0
    %1510 = vmatpush1.msra.mxu0 0.0
    %1511 = vmatprep.subr.mxu0 0.0
    %1512 = vmatpush1.msra.mxu0 0.0
    %1513 = vmatprep.subr.mxu0 0.0
    %1514 = vmatpush1.msra.mxu0 0.0
    %1515 = vmatprep.subr.mxu0 0.0
    %1516 = vmatpush1.msra.mxu0 0.0
    %1517 = vmatprep.subr.mxu0 0.0
    %1518 = vmatpush1.msra.mxu0 0.0
    %1519 = vmatprep.subr.mxu0 0.0
    %1520 = vmatpush1.msra.mxu0 0.0
    %1521 = vmatprep.subr.mxu0 0.0
    %1522 = vmatpush1.msra.mxu0 0.0
    %1523 = vmatprep.subr.mxu0 0.0
    %1524 = vmatpush1.msra.mxu0 0.0
    %1525 = vmatprep.subr.mxu0 0.0
    %1526 = vmatpush1.msra.mxu0 0.0
    %1527 = vmatprep.subr.mxu0 0.0
    %1528 = vmatpush1.msra.mxu0 0.0
    %1529 = vmatprep.subr.mxu0 0.0
    %1530 = vmatpush1.msra.mxu0 %v825
    %1531 = vmatprep.subr.mxu0 0.0
    %1532 = vmatpush1.msra.mxu0 %v822
    %1533 = vmatprep.subr.mxu0 0.0
    %1534 = vmatpush2.msra.mxu0 0.0
    %1535 = vmatprep.subr.mxu0 0.0
    %1536 = vmatpush2.msra.mxu0 0.0
    %1537 = vmatprep.subr.mxu0 0.0
    %1538 = vmatpush2.msra.mxu0 0.0
    %1539 = vmatprep.subr.mxu0 0.0
    %1540 = vmatpush2.msra.mxu0 0.0
    %1541 = vmatprep.subr.mxu0 0.0
    %1542 = vmatpush2.msra.mxu0 0.0
    %1543 = vmatprep.subr.mxu0 0.0
    %1544 = vmatpush2.msra.mxu0 0.0
    %1545 = vmatprep.subr.mxu0 0.0
    %1546 = vmatpush2.msra.mxu0 0.0
    %1547 = vmatprep.subr.mxu0 0.0
    %1548 = vmatpush2.msra.mxu0 0.0
    %1549 = vmatprep.subr.mxu0 0.0
    %1550 = vmatpush2.msra.mxu0 0.0
    %1551 = vmatprep.subr.mxu0 0.0
    %1552 = vmatpush2.msra.mxu0 0.0
    %1553 = vmatprep.subr.mxu0 0.0
    %1554 = vmatpush2.msra.mxu0 0.0
    %1555 = vmatprep.subr.mxu0 0.0
    %1556 = vmatpush2.msra.mxu0 0.0
    %1557 = vmatprep.subr.mxu0 0.0
    %1558 = vmatpush2.msra.mxu0 0.0
    %1559 = vmatprep.subr.mxu0 0.0
    %1560 = vmatpush2.msra.mxu0 0.0
    %1561 = vmatprep.subr.mxu0 0.0
    %1562 = vmatpush2.msra.mxu0 0.0
    %1563 = vmatprep.subr.mxu0 0.0
    %1564 = vmatpush2.msra.mxu0 0.0
    %1565 = vmatprep.mubr.f32.mxu0 0.0
    %1566 = vmatmul.mubr.f32.gmra.mxu0 %v1496
    %v1567 = vpop.f32.mrf.mxu0
    %v1568 = vadd.f32 0.0, %v1567
    %v1569 = vpop.f32.mrf.mxu0
    %1570 = vmatprep.mubr.f32.mxu0 0.0
    %1571 = vmatmul.mubr.f32.gmra.mxu0 %v1499
    %v1572 = vpop.f32.mrf.mxu0
    %v1573 = vadd.f32 0.0, %v1572
    %v1574 = vpop.f32.mrf.mxu0
    %1575 = vdwg.mxu0
    %v1577 = vsel %vm1325, %v1410, 0
    %v1580 = vsel %vm1325, %v1411, 0
    %1582 = vmatprep.subr.mxu0 0.0
    %1583 = vmatpush1.msra.mxu0 0.0
    %1584 = vmatprep.subr.mxu0 0.0
    %1585 = vmatpush1.msra.mxu0 0.0
    %1586 = vmatprep.subr.mxu0 0.0
    %1587 = vmatpush1.msra.mxu0 0.0
    %1588 = vmatprep.subr.mxu0 0.0
    %1589 = vmatpush1.msra.mxu0 0.0
    %1590 = vmatprep.subr.mxu0 0.0
    %1591 = vmatpush1.msra.mxu0 0.0
    %1592 = vmatprep.subr.mxu0 0.0
    %1593 = vmatpush1.msra.mxu0 0.0
    %1594 = vmatprep.subr.mxu0 0.0
    %1595 = vmatpush1.msra.mxu0 0.0
    %1596 = vmatprep.subr.mxu0 0.0
    %1597 = vmatpush1.msra.mxu0 0.0
    %1598 = vmatprep.subr.mxu0 0.0
    %1599 = vmatpush1.msra.mxu0 0.0
    %1600 = vmatprep.subr.mxu0 0.0
    %1601 = vmatpush1.msra.mxu0 0.0
    %1602 = vmatprep.subr.mxu0 0.0
    %1603 = vmatpush1.msra.mxu0 0.0
    %1604 = vmatprep.subr.mxu0 0.0
    %1605 = vmatpush1.msra.mxu0 0.0
    %1606 = vmatprep.subr.mxu0 0.0
    %1607 = vmatpush1.msra.mxu0 0.0
    %1608 = vmatprep.subr.mxu0 0.0
    %1609 = vmatpush1.msra.mxu0 0.0
    %1610 = vmatprep.subr.mxu0 0.0
    %1611 = vmatpush1.msra.mxu0 %v891
    %1612 = vmatprep.subr.mxu0 0.0
    %1613 = vmatpush1.msra.mxu0 %v888
    %1614 = vmatprep.subr.mxu0 0.0
    %1615 = vmatpush2.msra.mxu0 0.0
    %1616 = vmatprep.subr.mxu0 0.0
    %1617 = vmatpush2.msra.mxu0 0.0
    %1618 = vmatprep.subr.mxu0 0.0
    %1619 = vmatpush2.msra.mxu0 0.0
    %1620 = vmatprep.subr.mxu0 0.0
    %1621 = vmatpush2.msra.mxu0 0.0
    %1622 = vmatprep.subr.mxu0 0.0
    %1623 = vmatpush2.msra.mxu0 0.0
    %1624 = vmatprep.subr.mxu0 0.0
    %1625 = vmatpush2.msra.mxu0 0.0
    %1626 = vmatprep.subr.mxu0 0.0
    %1627 = vmatpush2.msra.mxu0 0.0
    %1628 = vmatprep.subr.mxu0 0.0
    %1629 = vmatpush2.msra.mxu0 0.0
    %1630 = vmatprep.subr.mxu0 0.0
    %1631 = vmatpush2.msra.mxu0 0.0
    %1632 = vmatprep.subr.mxu0 0.0
    %1633 = vmatpush2.msra.mxu0 0.0
    %1634 = vmatprep.subr.mxu0 0.0
    %1635 = vmatpush2.msra.mxu0 0.0
    %1636 = vmatprep.subr.mxu0 0.0
    %1637 = vmatpush2.msra.mxu0 0.0
    %1638 = vmatprep.subr.mxu0 0.0
    %1639 = vmatpush2.msra.mxu0 0.0
    %1640 = vmatprep.subr.mxu0 0.0
    %1641 = vmatpush2.msra.mxu0 0.0
    %1642 = vmatprep.subr.mxu0 0.0
    %1643 = vmatpush2.msra.mxu0 0.0
    %1644 = vmatprep.subr.mxu0 0.0
    %1645 = vmatpush2.msra.mxu0 0.0
    %1646 = vmatprep.mubr.f32.mxu0 0.0
    %1647 = vmatmul.mubr.f32.gmra.mxu0 %v1577
    %v1648 = vpop.f32.mrf.mxu0
    %v1649 = vadd.f32 0.0, %v1648
    %v1650 = vpop.f32.mrf.mxu0
    %1651 = vmatprep.mubr.f32.mxu0 0.0
    %1652 = vmatmul.mubr.f32.gmra.mxu0 %v1580
    %v1653 = vpop.f32.mrf.mxu0
    %v1654 = vadd.f32 0.0, %v1653
    %v1655 = vpop.f32.mrf.mxu0
    %1656 = vdwg.mxu0
    %v1658 = vsel %vm1325, %v1412, 0
    %v1661 = vsel %vm1325, %v1413, 0
    %1663 = vmatprep.subr.mxu0 0.0
    %1664 = vmatpush1.msra.mxu0 0.0
    %1665 = vmatprep.subr.mxu0 0.0
    %1666 = vmatpush1.msra.mxu0 0.0
    %1667 = vmatprep.subr.mxu0 0.0
    %1668 = vmatpush1.msra.mxu0 0.0
    %1669 = vmatprep.subr.mxu0 0.0
    %1670 = vmatpush1.msra.mxu0 0.0
    %1671 = vmatprep.subr.mxu0 0.0
    %1672 = vmatpush1.msra.mxu0 0.0
    %1673 = vmatprep.subr.mxu0 0.0
    %1674 = vmatpush1.msra.mxu0 0.0
    %1675 = vmatprep.subr.mxu0 0.0
    %1676 = vmatpush1.msra.mxu0 0.0
    %1677 = vmatprep.subr.mxu0 0.0
    %1678 = vmatpush1.msra.mxu0 0.0
    %1679 = vmatprep.subr.mxu0 0.0
    %1680 = vmatpush1.msra.mxu0 0.0
    %1681 = vmatprep.subr.mxu0 0.0
    %1682 = vmatpush1.msra.mxu0 0.0
    %1683 = vmatprep.subr.mxu0 0.0
    %1684 = vmatpush1.msra.mxu0 0.0
    %1685 = vmatprep.subr.mxu0 0.0
    %1686 = vmatpush1.msra.mxu0 0.0
    %1687 = vmatprep.subr.mxu0 0.0
    %1688 = vmatpush1.msra.mxu0 0.0
    %1689 = vmatprep.subr.mxu0 0.0
    %1690 = vmatpush1.msra.mxu0 0.0
    %1691 = vmatprep.subr.mxu0 0.0
    %1692 = vmatpush1.msra.mxu0 %v957
    %1693 = vmatprep.subr.mxu0 0.0
    %1694 = vmatpush1.msra.mxu0 %v954
    %1695 = vmatprep.subr.mxu0 0.0
    %1696 = vmatpush2.msra.mxu0 0.0
    %1697 = vmatprep.subr.mxu0 0.0
    %1698 = vmatpush2.msra.mxu0 0.0
    %1699 = vmatprep.subr.mxu0 0.0
    %1700 = vmatpush2.msra.mxu0 0.0
    %1701 = vmatprep.subr.mxu0 0.0
    %1702 = vmatpush2.msra.mxu0 0.0
    %1703 = vmatprep.subr.mxu0 0.0
    %1704 = vmatpush2.msra.mxu0 0.0
    %1705 = vmatprep.subr.mxu0 0.0
    %1706 = vmatpush2.msra.mxu0 0.0
    %1707 = vmatprep.subr.mxu0 0.0
    %1708 = vmatpush2.msra.mxu0 0.0
    %1709 = vmatprep.subr.mxu0 0.0
    %1710 = vmatpush2.msra.mxu0 0.0
    %1711 = vmatprep.subr.mxu0 0.0
    %1712 = vmatpush2.msra.mxu0 0.0
    %1713 = vmatprep.subr.mxu0 0.0
    %1714 = vmatpush2.msra.mxu0 0.0
    %1715 = vmatprep.subr.mxu0 0.0
    %1716 = vmatpush2.msra.mxu0 0.0
    %1717 = vmatprep.subr.mxu0 0.0
    %1718 = vmatpush2.msra.mxu0 0.0
    %1719 = vmatprep.subr.mxu0 0.0
    %1720 = vmatpush2.msra.mxu0 0.0
    %1721 = vmatprep.subr.mxu0 0.0
    %1722 = vmatpush2.msra.mxu0 0.0
    %1723 = vmatprep.subr.mxu0 0.0
    %1724 = vmatpush2.msra.mxu0 0.0
    %1725 = vmatprep.subr.mxu0 0.0
    %1726 = vmatpush2.msra.mxu0 0.0
    %1727 = vmatprep.mubr.f32.mxu0 0.0
    %1728 = vmatmul.mubr.f32.gmra.mxu0 %v1658
    %v1729 = vpop.f32.mrf.mxu0
    %v1730 = vadd.f32 0.0, %v1729
    %v1731 = vpop.f32.mrf.mxu0
    %1732 = vmatprep.mubr.f32.mxu0 0.0
    %1733 = vmatmul.mubr.f32.gmra.mxu0 %v1661
    %v1734 = vpop.f32.mrf.mxu0
    %v1735 = vadd.f32 0.0, %v1734
    %v1736 = vpop.f32.mrf.mxu0
    %1737 = vdwg.mxu0
    %v1738 = vld [vmem:[%s12] sm:$0x1]
    %v1739 = vpack.c.bf16 %v1492, %v1487
    %v1740 = vld [vmem:[%s11] sm:$0xf]
    %v1742 = vsel %vm960, %v1739, 0
    %v1745 = vsel %vm96, %v1740, 0
    %1747 = vmatprep.subr.bf16.mxu0 0
    %1748 = vmatpush1.bf16.msra.mxu0 0
    %1749 = vmatprep.subr.bf16.mxu0 0
    %1750 = vmatpush1.bf16.msra.mxu0 0
    %1751 = vmatprep.subr.bf16.mxu0 0
    %1752 = vmatpush1.bf16.msra.mxu0 0
    %1753 = vmatprep.subr.bf16.mxu0 0
    %1754 = vmatpush1.bf16.msra.mxu0 0
    %1755 = vmatprep.subr.bf16.mxu0 0
    %1756 = vmatpush1.bf16.msra.mxu0 0
    %1757 = vmatprep.subr.bf16.mxu0 0
    %1758 = vmatpush1.bf16.msra.mxu0 0
    %1759 = vmatprep.subr.bf16.mxu0 0
    %1760 = vmatpush1.bf16.msra.mxu0 0
    %1761 = vmatprep.subr.bf16.mxu0 0
    %1762 = vmatpush1.bf16.msra.mxu0 %v1745
    %1763 = vmatprep.subr.bf16.mxu0 0
    %1764 = vmatpush2.bf16.msra.mxu0 0
    %1765 = vmatprep.subr.bf16.mxu0 0
    %1766 = vmatpush2.bf16.msra.mxu0 0
    %1767 = vmatprep.subr.bf16.mxu0 0
    %1768 = vmatpush2.bf16.msra.mxu0 0
    %1769 = vmatprep.subr.bf16.mxu0 0
    %1770 = vmatpush2.bf16.msra.mxu0 0
    %1771 = vmatprep.subr.bf16.mxu0 0
    %1772 = vmatpush2.bf16.msra.mxu0 0
    %1773 = vmatprep.subr.bf16.mxu0 0
    %1774 = vmatpush2.bf16.msra.mxu0 0
    %1775 = vmatprep.subr.bf16.mxu0 0
    %1776 = vmatpush2.bf16.msra.mxu0 0
    %1777 = vmatprep.subr.bf16.mxu0 0
    %1778 = vmatpush2.bf16.msra.mxu0 0
    %1779 = vmatprep.mubr.bf16.mxu0 0
    %1780 = vmatmul.mubr.bf16.gmra.mxu0 %v1742
    %v1781 = vpop.f32.mrf.mxu0
    %v1782 = vadd.f32 0.0, %v1781
    %v1783 = vpop.f32.mrf.mxu0
    %v1784 = vpop.f32.mrf.mxu0
    %v1785 = vadd.f32 0.0, %v1784
    %v1786 = vpop.f32.mrf.mxu0
    %1787 = vdwg.mxu0
    %v1789 = vlaneseq
    %v1790 = vshrl.u32 %v1789, 7
    %v1791 = vsub.s32 0, %v1790
    %v1792 = vrot.slane %v1738, %v1791
    %v1794 = vadd.f32 %v1792, %v1782
    %v1795 = vadd.f32 %v1792, %v1785
    %v1796 = vpack.c.bf16 %v1573, %v1568
    %s1797 = scalar_lea.vmem %s11, 4
    %v1798 = vld [vmem:[%s1797] sm:$0xf]
    %v1800 = vsel %vm960, %v1796, 0
    %v1803 = vsel %vm96, %v1798, 0
    %1805 = vmatprep.subr.bf16.mxu0 0
    %1806 = vmatpush1.bf16.msra.mxu0 0
    %1807 = vmatprep.subr.bf16.mxu0 0
    %1808 = vmatpush1.bf16.msra.mxu0 0
    %1809 = vmatprep.subr.bf16.mxu0 0
    %1810 = vmatpush1.bf16.msra.mxu0 0
    %1811 = vmatprep.subr.bf16.mxu0 0
    %1812 = vmatpush1.bf16.msra.mxu0 0
    %1813 = vmatprep.subr.bf16.mxu0 0
    %1814 = vmatpush1.bf16.msra.mxu0 0
    %1815 = vmatprep.subr.bf16.mxu0 0
    %1816 = vmatpush1.bf16.msra.mxu0 0
    %1817 = vmatprep.subr.bf16.mxu0 0
    %1818 = vmatpush1.bf16.msra.mxu0 0
    %1819 = vmatprep.subr.bf16.mxu0 0
    %1820 = vmatpush1.bf16.msra.mxu0 %v1803
    %1821 = vmatprep.subr.bf16.mxu0 0
    %1822 = vmatpush2.bf16.msra.mxu0 0
    %1823 = vmatprep.subr.bf16.mxu0 0
    %1824 = vmatpush2.bf16.msra.mxu0 0
    %1825 = vmatprep.subr.bf16.mxu0 0
    %1826 = vmatpush2.bf16.msra.mxu0 0
    %1827 = vmatprep.subr.bf16.mxu0 0
    %1828 = vmatpush2.bf16.msra.mxu0 0
    %1829 = vmatprep.subr.bf16.mxu0 0
    %1830 = vmatpush2.bf16.msra.mxu0 0
    %1831 = vmatprep.subr.bf16.mxu0 0
    %1832 = vmatpush2.bf16.msra.mxu0 0
    %1833 = vmatprep.subr.bf16.mxu0 0
    %1834 = vmatpush2.bf16.msra.mxu0 0
    %1835 = vmatprep.subr.bf16.mxu0 0
    %1836 = vmatpush2.bf16.msra.mxu0 0
    %1837 = vmatprep.mubr.bf16.mxu0 0
    %1838 = vmatmul.mubr.bf16.gmra.mxu0 %v1800
    %v1839 = vpop.f32.mrf.mxu0
    %v1840 = vadd.f32 0.0, %v1839
    %v1841 = vpop.f32.mrf.mxu0
    %v1842 = vpop.f32.mrf.mxu0
    %v1843 = vadd.f32 0.0, %v1842
    %v1844 = vpop.f32.mrf.mxu0
    %1845 = vdwg.mxu0
    %v1846 = vadd.f32 %v1794, %v1840
    %v1847 = vadd.f32 %v1795, %v1843
    %v1848 = vpack.c.bf16 %v1654, %v1649
    %s1849 = scalar_lea.vmem %s11, 8
    %v1850 = vld [vmem:[%s1849] sm:$0xf]
    %v1852 = vsel %vm960, %v1848, 0
    %v1855 = vsel %vm96, %v1850, 0
    %1857 = vmatprep.subr.bf16.mxu0 0
    %1858 = vmatpush1.bf16.msra.mxu0 0
    %1859 = vmatprep.subr.bf16.mxu0 0
    %1860 = vmatpush1.bf16.msra.mxu0 0
    %1861 = vmatprep.subr.bf16.mxu0 0
    %1862 = vmatpush1.bf16.msra.mxu0 0
    %1863 = vmatprep.subr.bf16.mxu0 0
    %1864 = vmatpush1.bf16.msra.mxu0 0
    %1865 = vmatprep.subr.bf16.mxu0 0
    %1866 = vmatpush1.bf16.msra.mxu0 0
    %1867 = vmatprep.subr.bf16.mxu0 0
    %1868 = vmatpush1.bf16.msra.mxu0 0
    %1869 = vmatprep.subr.bf16.mxu0 0
    %1870 = vmatpush1.bf16.msra.mxu0 0
    %1871 = vmatprep.subr.bf16.mxu0 0
    %1872 = vmatpush1.bf16.msra.mxu0 %v1855
    %1873 = vmatprep.subr.bf16.mxu0 0
    %1874 = vmatpush2.bf16.msra.mxu0 0
    %1875 = vmatprep.subr.bf16.mxu0 0
    %1876 = vmatpush2.bf16.msra.mxu0 0
    %1877 = vmatprep.subr.bf16.mxu0 0
    %1878 = vmatpush2.bf16.msra.mxu0 0
    %1879 = vmatprep.subr.bf16.mxu0 0
    %1880 = vmatpush2.bf16.msra.mxu0 0
    %1881 = vmatprep.subr.bf16.mxu0 0
    %1882 = vmatpush2.bf16.msra.mxu0 0
    %1883 = vmatprep.subr.bf16.mxu0 0
    %1884 = vmatpush2.bf16.msra.mxu0 0
    %1885 = vmatprep.subr.bf16.mxu0 0
    %1886 = vmatpush2.bf16.msra.mxu0 0
    %1887 = vmatprep.subr.bf16.mxu0 0
    %1888 = vmatpush2.bf16.msra.mxu0 0
    %1889 = vmatprep.mubr.bf16.mxu0 0
    %1890 = vmatmul.mubr.bf16.gmra.mxu0 %v1852
    %v1891 = vpop.f32.mrf.mxu0
    %v1892 = vadd.f32 0.0, %v1891
    %v1893 = vpop.f32.mrf.mxu0
    %v1894 = vpop.f32.mrf.mxu0
    %v1895 = vadd.f32 0.0, %v1894
    %v1896 = vpop.f32.mrf.mxu0
    %1897 = vdwg.mxu0
    %v1898 = vadd.f32 %v1846, %v1892
    %v1899 = vadd.f32 %v1847, %v1895
    %v1900 = vpack.c.bf16 %v1735, %v1730
    %s1901 = scalar_lea.vmem %s11, 12
    %v1902 = vld [vmem:[%s1901] sm:$0xf]
    %v1904 = vsel %vm960, %v1900, 0
    %v1907 = vsel %vm96, %v1902, 0
    %1909 = vmatprep.subr.bf16.mxu0 0
    %1910 = vmatpush1.bf16.msra.mxu0 0
    %1911 = vmatprep.subr.bf16.mxu0 0
    %1912 = vmatpush1.bf16.msra.mxu0 0
    %1913 = vmatprep.subr.bf16.mxu0 0
    %1914 = vmatpush1.bf16.msra.mxu0 0
    %1915 = vmatprep.subr.bf16.mxu0 0
    %1916 = vmatpush1.bf16.msra.mxu0 0
    %1917 = vmatprep.subr.bf16.mxu0 0
    %1918 = vmatpush1.bf16.msra.mxu0 0
    %1919 = vmatprep.subr.bf16.mxu0 0
    %1920 = vmatpush1.bf16.msra.mxu0 0
    %1921 = vmatprep.subr.bf16.mxu0 0
    %1922 = vmatpush1.bf16.msra.mxu0 0
    %1923 = vmatprep.subr.bf16.mxu0 0
    %1924 = vmatpush1.bf16.msra.mxu0 %v1907
    %1925 = vmatprep.subr.bf16.mxu0 0
    %1926 = vmatpush2.bf16.msra.mxu0 0
    %1927 = vmatprep.subr.bf16.mxu0 0
    %1928 = vmatpush2.bf16.msra.mxu0 0
    %1929 = vmatprep.subr.bf16.mxu0 0
    %1930 = vmatpush2.bf16.msra.mxu0 0
    %1931 = vmatprep.subr.bf16.mxu0 0
    %1932 = vmatpush2.bf16.msra.mxu0 0
    %1933 = vmatprep.subr.bf16.mxu0 0
    %1934 = vmatpush2.bf16.msra.mxu0 0
    %1935 = vmatprep.subr.bf16.mxu0 0
    %1936 = vmatpush2.bf16.msra.mxu0 0
    %1937 = vmatprep.subr.bf16.mxu0 0
    %1938 = vmatpush2.bf16.msra.mxu0 0
    %1939 = vmatprep.subr.bf16.mxu0 0
    %1940 = vmatpush2.bf16.msra.mxu0 0
    %1941 = vmatprep.mubr.bf16.mxu0 0
    %1942 = vmatmul.mubr.bf16.gmra.mxu0 %v1904
    %v1943 = vpop.f32.mrf.mxu0
    %v1944 = vadd.f32 0.0, %v1943
    %v1945 = vpop.f32.mrf.mxu0
    %v1946 = vpop.f32.mrf.mxu0
    %v1947 = vadd.f32 0.0, %v1946
    %v1948 = vpop.f32.mrf.mxu0
    %1949 = vdwg.mxu0
    %v1950 = vadd.f32 %v1898, %v1944
    %v1951 = vadd.f32 %v1899, %v1947
    %v1952 = vadd.f32 %v135, %v1950
    %v1953 = vadd.f32 %v138, %v1951
    %v1954 = vld [vmem:[%s13] sm:$0x1]
    %v1955 = vmul.f32 %v1952, %v1952
    %v1956 = vmul.f32 %v1953, %v1953
    %v1957 = vsel %vm146, %v1955, 0.0
    %1958 = vadd.xlane.f32.xlu0 %v1957
    %v1959 = vpop.xlane.xlu0 %1958
    %v1960 = vsel %vm146, %v1956, 0.0
    %1961 = vadd.xlane.f32.xlu0 %v1960
    %v1962 = vpop.xlane.xlu0 %1961
    %v1963 = vmul.f32 %v1959, %v153
    %v1964 = vmul.f32 %v1962, %v153
    %v1965 = vadd.f32 %v1963, 1e-05
    %v1966 = vadd.f32 %v1964, 1e-05
    %v1967 = vrsqrt.pop %v1965
    %v1968 = vrsqrt.pop %v1966
    %v1969 = vmul.f32 %v1952, %v1967
    %v1970 = vmul.f32 %v1953, %v1968
    %v1972 = vlaneseq
    %v1973 = vshrl.u32 %v1972, 7
    %v1974 = vsub.s32 0, %v1973
    %v1975 = vrot.slane %v1954, %v1974
    %v1977 = vmul.f32 %v1969, %v1975
    %v1978 = vmul.f32 %v1970, %v1975
    %v1979 = vpack.c.bf16 %v1978, %v1977
    %v1980 = vld [vmem:[%s14] sm:$0xf]
    %v1981 = vld [vmem:[%s14 + $0x4] sm:$0xf]
    %v1982 = vld [vmem:[%s14 + $0x8] sm:$0xf]
    %v1983 = vld [vmem:[%s14 + $0xc] sm:$0xf]
    %v1984 = vld [vmem:[%s15] sm:$0x1]
    %v1986 = vlaneseq
    %v1987 = vshrl.u32 %v1986, 7
    %v1988 = vsub.s32 0, %v1987
    %v1989 = vrot.slane %v1984, %v1988
    %v1995 = vunpack.c.l.b16 %v1980
    %v1996 = vunpack.c.l.b16 %v1981
    %v1997 = vunpack.c.l.b16 %v1982
    %v1998 = vunpack.c.l.b16 %v1983
    %v1999 = vpack.c.b16 %v1996, %v1995
    %v2000 = vpack.c.b16 %v1998, %v1997
    %v2004 = vsel %vm146, %v1979, 0
    %2006 = vmatprep.subr.bf16.mxu0 0
    %2007 = vmatpush1.bf16.msra.mxu0 0
    %2008 = vmatprep.subr.bf16.mxu0 0
    %2009 = vmatpush1.bf16.msra.mxu0 0
    %2010 = vmatprep.subr.bf16.mxu0 0
    %2011 = vmatpush1.bf16.msra.mxu0 0
    %2012 = vmatprep.subr.bf16.mxu0 0
    %2013 = vmatpush1.bf16.msra.mxu0 0
    %2014 = vmatprep.subr.bf16.mxu0 0
    %2015 = vmatpush1.bf16.msra.mxu0 0
    %2016 = vmatprep.subr.bf16.mxu0 0
    %2017 = vmatpush1.bf16.msra.mxu0 0
    %2018 = vmatprep.subr.bf16.mxu0 0
    %2019 = vmatpush1.bf16.msra.mxu0 %v2000
    %2020 = vmatprep.subr.bf16.mxu0 0
    %2021 = vmatpush1.bf16.msra.mxu0 %v1999
    %2022 = vmatprep.subr.bf16.mxu0 0
    %2023 = vmatpush2.bf16.msra.mxu0 0
    %2024 = vmatprep.subr.bf16.mxu0 0
    %2025 = vmatpush2.bf16.msra.mxu0 0
    %2026 = vmatprep.subr.bf16.mxu0 0
    %2027 = vmatpush2.bf16.msra.mxu0 0
    %2028 = vmatprep.subr.bf16.mxu0 0
    %2029 = vmatpush2.bf16.msra.mxu0 0
    %2030 = vmatprep.subr.bf16.mxu0 0
    %2031 = vmatpush2.bf16.msra.mxu0 0
    %2032 = vmatprep.subr.bf16.mxu0 0
    %2033 = vmatpush2.bf16.msra.mxu0 0
    %2034 = vmatprep.subr.bf16.mxu0 0
    %2035 = vmatpush2.bf16.msra.mxu0 0
    %2036 = vmatprep.subr.bf16.mxu0 0
    %2037 = vmatpush2.bf16.msra.mxu0 0
    %2038 = vmatprep.mubr.bf16.mxu0 0
    %2039 = vmatmul.mubr.bf16.gmra.mxu0 %v2004
    %v2040 = vpop.f32.mrf.mxu0
    %v2041 = vadd.f32 %v1989, %v2040
    %v2042 = vpop.f32.mrf.mxu0
    %v2043 = vpop.f32.mrf.mxu0
    %v2044 = vadd.f32 %v1989, %v2043
    %v2045 = vpop.f32.mrf.mxu0
    %2046 = vdwg.mxu0
    %v2047 = vmul.f32 %v2041, %v2041
    %v2048 = vmul.f32 %v2044, %v2044
    %v2049 = vmul.f32 %v2041, %v2047
    %v2050 = vmul.f32 %v2044, %v2048
    %v2051 = vmul.f32 %v2049, 0.044715
    %v2052 = vmul.f32 %v2050, 0.044715
    %v2053 = vadd.f32 %v2041, %v2051
    %v2054 = vadd.f32 %v2044, %v2052
    %v2055 = vmul.f32 %v2053, 0.7978846
    %v2056 = vmul.f32 %v2054, 0.7978846
    %v2057 = vtanh.pop %v2055
    %v2058 = vtanh.pop %v2056
    %v2059 = vadd.f32 %v2057, 1.0
    %v2060 = vadd.f32 %v2058, 1.0
    %v2061 = vmul.f32 %v2059, 0.5
    %v2062 = vmul.f32 %v2060, 0.5
    %v2063 = vmul.f32 %v2041, %v2061
    %v2064 = vmul.f32 %v2044, %v2062
    %v2065 = vpack.c.bf16 %v2064, %v2063
    %v2066 = vld [vmem:[%s16] sm:$0xf]
    %v2067 = vld [vmem:[%s16 + $0x4] sm:$0xf]
    %v2068 = vld [vmem:[%s16 + $0x8] sm:$0xf]
    %v2069 = vld [vmem:[%s16 + $0xc] sm:$0xf]
    %v2070 = vld [vmem:[%s16 + $0x10] sm:$0xf]
    %v2071 = vld [vmem:[%s16 + $0x14] sm:$0xf]
    %v2072 = vld [vmem:[%s16 + $0x18] sm:$0xf]
    %v2073 = vld [vmem:[%s16 + $0x1c] sm:$0xf]
    %v2074 = vld [vmem:[%s17] sm:$0x1]
    %v2076 = vlaneseq
    %v2077 = vshrl.u32 %v2076, 7
    %v2078 = vsub.s32 0, %v2077
    %v2079 = vrot.slane %v2074, %v2078
    %v2089 = vunpack.c.l.b16 %v2066
    %v2090 = vunpack.c.l.b16 %v2067
    %v2091 = vunpack.c.l.b16 %v2068
    %v2092 = vunpack.c.l.b16 %v2069
    %v2093 = vunpack.c.l.b16 %v2070
    %v2094 = vunpack.c.l.b16 %v2071
    %v2095 = vunpack.c.l.b16 %v2072
    %v2096 = vunpack.c.l.b16 %v2073
    %v2097 = vpack.c.b16 %v2090, %v2089
    %v2098 = vpack.c.b16 %v2092, %v2091
    %v2099 = vpack.c.b16 %v2094, %v2093
    %v2100 = vpack.c.b16 %v2096, %v2095
    %vm2105 = vcmask 523264
    %v2107 = vsel %vm2105, %v2065, 0
    %2109 = vmatprep.subr.bf16.mxu0 0
    %2110 = vmatpush1.bf16.msra.mxu0 0
    %2111 = vmatprep.subr.bf16.mxu0 0
    %2112 = vmatpush1.bf16.msra.mxu0 0
    %2113 = vmatprep.subr.bf16.mxu0 0
    %2114 = vmatpush1.bf16.msra.mxu0 0
    %2115 = vmatprep.subr.bf16.mxu0 0
    %2116 = vmatpush1.bf16.msra.mxu0 0
    %2117 = vmatprep.subr.bf16.mxu0 0
    %2118 = vmatpush1.bf16.msra.mxu0 %v2100
    %2119 = vmatprep.subr.bf16.mxu0 0
    %2120 = vmatpush1.bf16.msra.mxu0 %v2099
    %2121 = vmatprep.subr.bf16.mxu0 0
    %2122 = vmatpush1.bf16.msra.mxu0 %v2098
    %2123 = vmatprep.subr.bf16.mxu0 0
    %2124 = vmatpush1.bf16.msra.mxu0 %v2097
    %2125 = vmatprep.subr.bf16.mxu0 0
    %2126 = vmatpush2.bf16.msra.mxu0 0
    %2127 = vmatprep.subr.bf16.mxu0 0
    %2128 = vmatpush2.bf16.msra.mxu0 0
    %2129 = vmatprep.subr.bf16.mxu0 0
    %2130 = vmatpush2.bf16.msra.mxu0 0
    %2131 = vmatprep.subr.bf16.mxu0 0
    %2132 = vmatpush2.bf16.msra.mxu0 0
    %2133 = vmatprep.subr.bf16.mxu0 0
    %2134 = vmatpush2.bf16.msra.mxu0 0
    %2135 = vmatprep.subr.bf16.mxu0 0
    %2136 = vmatpush2.bf16.msra.mxu0 0
    %2137 = vmatprep.subr.bf16.mxu0 0
    %2138 = vmatpush2.bf16.msra.mxu0 0
    %2139 = vmatprep.subr.bf16.mxu0 0
    %2140 = vmatpush2.bf16.msra.mxu0 0
    %2141 = vmatprep.mubr.bf16.mxu0 0
    %2142 = vmatmul.mubr.bf16.gmra.mxu0 %v2107
    %v2143 = vpop.f32.mrf.mxu0
    %v2144 = vadd.f32 %v2079, %v2143
    %v2145 = vpop.f32.mrf.mxu0
    %v2146 = vpop.f32.mrf.mxu0
    %v2147 = vadd.f32 %v2079, %v2146
    %v2148 = vpop.f32.mrf.mxu0
    %2149 = vdwg.mxu0
    %v2150 = vadd.f32 %v1952, %v2144
    %v2151 = vadd.f32 %v1953, %v2147
    %s2152 = scalar_lea.vmem %s4, 1
    %v2153 = vld [vmem:[%s2152] sm:$0x1]
    %v2154 = vmul.f32 %v2150, %v2150
    %v2155 = vmul.f32 %v2151, %v2151
    %v2156 = vsel %vm146, %v2154, 0.0
    %2157 = vadd.xlane.f32.xlu0 %v2156
    %v2158 = vpop.xlane.xlu0 %2157
    %v2159 = vsel %vm146, %v2155, 0.0
    %2160 = vadd.xlane.f32.xlu0 %v2159
    %v2161 = vpop.xlane.xlu0 %2160
    %v2162 = vmul.f32 %v2158, %v153
    %v2163 = vmul.f32 %v2161, %v153
    %v2164 = vadd.f32 %v2162, 1e-05
    %v2165 = vadd.f32 %v2163, 1e-05
    %v2166 = vrsqrt.pop %v2164
    %v2167 = vrsqrt.pop %v2165
    %v2168 = vmul.f32 %v2150, %v2166
    %v2169 = vmul.f32 %v2151, %v2167
    %v2171 = vlaneseq
    %v2172 = vshrl.u32 %v2171, 7
    %v2173 = vsub.s32 0, %v2172
    %v2174 = vrot.slane %v2153, %v2173
    %v2176 = vmul.f32 %v2168, %v2174
    %v2177 = vmul.f32 %v2169, %v2174
    %v2178 = vpack.c.bf16 %v2177, %v2176
    %s2179 = scalar_lea.vmem %s5, 64
    %v2180 = vld [vmem:[%s2179] sm:$0xf]
    %v2181 = vld [vmem:[%s2179 + $0x4] sm:$0xf]
    %v2182 = vld [vmem:[%s2179 + $0x8] sm:$0xf]
    %v2183 = vld [vmem:[%s2179 + $0xc] sm:$0xf]
    %s2184 = scalar_lea.vmem %s6, 4
    %v2185 = vld [vmem:[%s2184] sm:$0x1]
    %v2187 = vlaneseq
    %v2188 = vshrl.u32 %v2187, 7
    %v2189 = vsub.s32 0, %v2188
    %v2190 = vrot.slane %v2185, %v2189
    %v2196 = vunpack.c.l.b16 %v2180
    %v2197 = vunpack.c.l.b16 %v2181
    %v2198 = vunpack.c.l.b16 %v2182
    %v2199 = vunpack.c.l.b16 %v2183
    %v2200 = vpack.c.b16 %v2197, %v2196
    %v2201 = vpack.c.b16 %v2199, %v2198
    %v2205 = vsel %vm146, %v2178, 0
    %2207 = vmatprep.subr.bf16.mxu0 0
    %2208 = vmatpush1.bf16.msra.mxu0 0
    %2209 = vmatprep.subr.bf16.mxu0 0
    %2210 = vmatpush1.bf16.msra.mxu0 0
    %2211 = vmatprep.subr.bf16.mxu0 0
    %2212 = vmatpush1.bf16.msra.mxu0 0
    %2213 = vmatprep.subr.bf16.mxu0 0
    %2214 = vmatpush1.bf16.msra.mxu0 0
    %2215 = vmatprep.subr.bf16.mxu0 0
    %2216 = vmatpush1.bf16.msra.mxu0 0
    %2217 = vmatprep.subr.bf16.mxu0 0
    %2218 = vmatpush1.bf16.msra.mxu0 0
    %2219 = vmatprep.subr.bf16.mxu0 0
    %2220 = vmatpush1.bf16.msra.mxu0 %v2201
    %2221 = vmatprep.subr.bf16.mxu0 0
    %2222 = vmatpush1.bf16.msra.mxu0 %v2200
    %2223 = vmatprep.subr.bf16.mxu0 0
    %2224 = vmatpush2.bf16.msra.mxu0 0
    %2225 = vmatprep.subr.bf16.mxu0 0
    %2226 = vmatpush2.bf16.msra.mxu0 0
    %2227 = vmatprep.subr.bf16.mxu0 0
    %2228 = vmatpush2.bf16.msra.mxu0 0
    %2229 = vmatprep.subr.bf16.mxu0 0
    %2230 = vmatpush2.bf16.msra.mxu0 0
    %2231 = vmatprep.subr.bf16.mxu0 0
    %2232 = vmatpush2.bf16.msra.mxu0 0
    %2233 = vmatprep.subr.bf16.mxu0 0
    %2234 = vmatpush2.bf16.msra.mxu0 0
    %2235 = vmatprep.subr.bf16.mxu0 0
    %2236 = vmatpush2.bf16.msra.mxu0 0
    %2237 = vmatprep.subr.bf16.mxu0 0
    %2238 = vmatpush2.bf16.msra.mxu0 0
    %2239 = vmatprep.mubr.bf16.mxu0 0
    %2240 = vmatmul.mubr.bf16.gmra.mxu0 %v2205
    %v2241 = vpop.f32.mrf.mxu0
    %v2242 = vadd.f32 %v2190, %v2241
    %v2243 = vpop.f32.mrf.mxu0
    %v2244 = vpop.f32.mrf.mxu0
    %v2245 = vadd.f32 %v2190, %v2244
    %v2246 = vpop.f32.mrf.mxu0
    %2247 = vdwg.mxu0
    %s2248 = scalar_lea.vmem %s5, 80
    %v2249 = vld [vmem:[%s2248] sm:$0xf]
    %v2250 = vld [vmem:[%s2248 + $0x4] sm:$0xf]
    %v2251 = vld [vmem:[%s2248 + $0x8] sm:$0xf]
    %v2252 = vld [vmem:[%s2248 + $0xc] sm:$0xf]
    %s2253 = scalar_lea.vmem %s6, 5
    %v2254 = vld [vmem:[%s2253] sm:$0x1]
    %v2256 = vlaneseq
    %v2257 = vshrl.u32 %v2256, 7
    %v2258 = vsub.s32 0, %v2257
    %v2259 = vrot.slane %v2254, %v2258
    %v2265 = vunpack.c.l.b16 %v2249
    %v2266 = vunpack.c.l.b16 %v2250
    %v2267 = vunpack.c.l.b16 %v2251
    %v2268 = vunpack.c.l.b16 %v2252
    %v2269 = vpack.c.b16 %v2266, %v2265
    %v2270 = vpack.c.b16 %v2268, %v2267
    %2273 = vmatprep.subr.bf16.mxu0 0
    %2274 = vmatpush1.bf16.msra.mxu0 0
    %2275 = vmatprep.subr.bf16.mxu0 0
    %2276 = vmatpush1.bf16.msra.mxu0 0
    %2277 = vmatprep.subr.bf16.mxu0 0
    %2278 = vmatpush1.bf16.msra.mxu0 0
    %2279 = vmatprep.subr.bf16.mxu0 0
    %2280 = vmatpush1.bf16.msra.mxu0 0
    %2281 = vmatprep.subr.bf16.mxu0 0
    %2282 = vmatpush1.bf16.msra.mxu0 0
    %2283 = vmatprep.subr.bf16.mxu0 0
    %2284 = vmatpush1.bf16.msra.mxu0 0
    %2285 = vmatprep.subr.bf16.mxu0 0
    %2286 = vmatpush1.bf16.msra.mxu0 %v2270
    %2287 = vmatprep.subr.bf16.mxu0 0
    %2288 = vmatpush1.bf16.msra.mxu0 %v2269
    %2289 = vmatprep.subr.bf16.mxu0 0
    %2290 = vmatpush2.bf16.msra.mxu0 0
    %2291 = vmatprep.subr.bf16.mxu0 0
    %2292 = vmatpush2.bf16.msra.mxu0 0
    %2293 = vmatprep.subr.bf16.mxu0 0
    %2294 = vmatpush2.bf16.msra.mxu0 0
    %2295 = vmatprep.subr.bf16.mxu0 0
    %2296 = vmatpush2.bf16.msra.mxu0 0
    %2297 = vmatprep.subr.bf16.mxu0 0
    %2298 = vmatpush2.bf16.msra.mxu0 0
    %2299 = vmatprep.subr.bf16.mxu0 0
    %2300 = vmatpush2.bf16.msra.mxu0 0
    %2301 = vmatprep.subr.bf16.mxu0 0
    %2302 = vmatpush2.bf16.msra.mxu0 0
    %2303 = vmatprep.subr.bf16.mxu0 0
    %2304 = vmatpush2.bf16.msra.mxu0 0
    %2305 = vmatprep.mubr.bf16.mxu0 0
    %2306 = vmatmul.mubr.bf16.gmra.mxu0 %v2205
    %v2307 = vpop.f32.mrf.mxu0
    %v2308 = vadd.f32 %v2259, %v2307
    %v2309 = vpop.f32.mrf.mxu0
    %v2310 = vpop.f32.mrf.mxu0
    %v2311 = vadd.f32 %v2259, %v2310
    %v2312 = vpop.f32.mrf.mxu0
    %2313 = vdwg.mxu0
    %s2314 = scalar_lea.vmem %s5, 96
    %v2315 = vld [vmem:[%s2314] sm:$0xf]
    %v2316 = vld [vmem:[%s2314 + $0x4] sm:$0xf]
    %v2317 = vld [vmem:[%s2314 + $0x8] sm:$0xf]
    %v2318 = vld [vmem:[%s2314 + $0xc] sm:$0xf]
    %s2319 = scalar_lea.vmem %s6, 6
    %v2320 = vld [vmem:[%s2319] sm:$0x1]
    %v2322 = vlaneseq
    %v2323 = vshrl.u32 %v2322, 7
    %v2324 = vsub.s32 0, %v2323
    %v2325 = vrot.slane %v2320, %v2324
    %v2331 = vunpack.c.l.b16 %v2315
    %v2332 = vunpack.c.l.b16 %v2316
    %v2333 = vunpack.c.l.b16 %v2317
    %v2334 = vunpack.c.l.b16 %v2318
    %v2335 = vpack.c.b16 %v2332, %v2331
    %v2336 = vpack.c.b16 %v2334, %v2333
    %2339 = vmatprep.subr.bf16.mxu0 0
    %2340 = vmatpush1.bf16.msra.mxu0 0
    %2341 = vmatprep.subr.bf16.mxu0 0
    %2342 = vmatpush1.bf16.msra.mxu0 0
    %2343 = vmatprep.subr.bf16.mxu0 0
    %2344 = vmatpush1.bf16.msra.mxu0 0
    %2345 = vmatprep.subr.bf16.mxu0 0
    %2346 = vmatpush1.bf16.msra.mxu0 0
    %2347 = vmatprep.subr.bf16.mxu0 0
    %2348 = vmatpush1.bf16.msra.mxu0 0
    %2349 = vmatprep.subr.bf16.mxu0 0
    %2350 = vmatpush1.bf16.msra.mxu0 0
    %2351 = vmatprep.subr.bf16.mxu0 0
    %2352 = vmatpush1.bf16.msra.mxu0 %v2336
    %2353 = vmatprep.subr.bf16.mxu0 0
    %2354 = vmatpush1.bf16.msra.mxu0 %v2335
    %2355 = vmatprep.subr.bf16.mxu0 0
    %2356 = vmatpush2.bf16.msra.mxu0 0
    %2357 = vmatprep.subr.bf16.mxu0 0
    %2358 = vmatpush2.bf16.msra.mxu0 0
    %2359 = vmatprep.subr.bf16.mxu0 0
    %2360 = vmatpush2.bf16.msra.mxu0 0
    %2361 = vmatprep.subr.bf16.mxu0 0
    %2362 = vmatpush2.bf16.msra.mxu0 0
    %2363 = vmatprep.subr.bf16.mxu0 0
    %2364 = vmatpush2.bf16.msra.mxu0 0
    %2365 = vmatprep.subr.bf16.mxu0 0
    %2366 = vmatpush2.bf16.msra.mxu0 0
    %2367 = vmatprep.subr.bf16.mxu0 0
    %2368 = vmatpush2.bf16.msra.mxu0 0
    %2369 = vmatprep.subr.bf16.mxu0 0
    %2370 = vmatpush2.bf16.msra.mxu0 0
    %2371 = vmatprep.mubr.bf16.mxu0 0
    %2372 = vmatmul.mubr.bf16.gmra.mxu0 %v2205
    %v2373 = vpop.f32.mrf.mxu0
    %v2374 = vadd.f32 %v2325, %v2373
    %v2375 = vpop.f32.mrf.mxu0
    %v2376 = vpop.f32.mrf.mxu0
    %v2377 = vadd.f32 %v2325, %v2376
    %v2378 = vpop.f32.mrf.mxu0
    %2379 = vdwg.mxu0
    %s2380 = scalar_lea.vmem %s5, 112
    %v2381 = vld [vmem:[%s2380] sm:$0xf]
    %v2382 = vld [vmem:[%s2380 + $0x4] sm:$0xf]
    %v2383 = vld [vmem:[%s2380 + $0x8] sm:$0xf]
    %v2384 = vld [vmem:[%s2380 + $0xc] sm:$0xf]
    %s2385 = scalar_lea.vmem %s6, 7
    %v2386 = vld [vmem:[%s2385] sm:$0x1]
    %v2388 = vlaneseq
    %v2389 = vshrl.u32 %v2388, 7
    %v2390 = vsub.s32 0, %v2389
    %v2391 = vrot.slane %v2386, %v2390
    %v2397 = vunpack.c.l.b16 %v2381
    %v2398 = vunpack.c.l.b16 %v2382
    %v2399 = vunpack.c.l.b16 %v2383
    %v2400 = vunpack.c.l.b16 %v2384
    %v2401 = vpack.c.b16 %v2398, %v2397
    %v2402 = vpack.c.b16 %v2400, %v2399
    %2405 = vmatprep.subr.bf16.mxu0 0
    %2406 = vmatpush1.bf16.msra.mxu0 0
    %2407 = vmatprep.subr.bf16.mxu0 0
    %2408 = vmatpush1.bf16.msra.mxu0 0
    %2409 = vmatprep.subr.bf16.mxu0 0
    %2410 = vmatpush1.bf16.msra.mxu0 0
    %2411 = vmatprep.subr.bf16.mxu0 0
    %2412 = vmatpush1.bf16.msra.mxu0 0
    %2413 = vmatprep.subr.bf16.mxu0 0
    %2414 = vmatpush1.bf16.msra.mxu0 0
    %2415 = vmatprep.subr.bf16.mxu0 0
    %2416 = vmatpush1.bf16.msra.mxu0 0
    %2417 = vmatprep.subr.bf16.mxu0 0
    %2418 = vmatpush1.bf16.msra.mxu0 %v2402
    %2419 = vmatprep.subr.bf16.mxu0 0
    %2420 = vmatpush1.bf16.msra.mxu0 %v2401
    %2421 = vmatprep.subr.bf16.mxu0 0
    %2422 = vmatpush2.bf16.msra.mxu0 0
    %2423 = vmatprep.subr.bf16.mxu0 0
    %2424 = vmatpush2.bf16.msra.mxu0 0
    %2425 = vmatprep.subr.bf16.mxu0 0
    %2426 = vmatpush2.bf16.msra.mxu0 0
    %2427 = vmatprep.subr.bf16.mxu0 0
    %2428 = vmatpush2.bf16.msra.mxu0 0
    %2429 = vmatprep.subr.bf16.mxu0 0
    %2430 = vmatpush2.bf16.msra.mxu0 0
    %2431 = vmatprep.subr.bf16.mxu0 0
    %2432 = vmatpush2.bf16.msra.mxu0 0
    %2433 = vmatprep.subr.bf16.mxu0 0
    %2434 = vmatpush2.bf16.msra.mxu0 0
    %2435 = vmatprep.subr.bf16.mxu0 0
    %2436 = vmatpush2.bf16.msra.mxu0 0
    %2437 = vmatprep.mubr.bf16.mxu0 0
    %2438 = vmatmul.mubr.bf16.gmra.mxu0 %v2205
    %v2439 = vpop.f32.mrf.mxu0
    %v2440 = vadd.f32 %v2391, %v2439
    %v2441 = vpop.f32.mrf.mxu0
    %v2442 = vpop.f32.mrf.mxu0
    %v2443 = vadd.f32 %v2391, %v2442
    %v2444 = vpop.f32.mrf.mxu0
    %2445 = vdwg.mxu0
    %s2446 = scalar_lea.vmem %s7, 64
    %v2447 = vld [vmem:[%s2446] sm:$0xf]
    %v2448 = vld [vmem:[%s2446 + $0x4] sm:$0xf]
    %v2449 = vld [vmem:[%s2446 + $0x8] sm:$0xf]
    %v2450 = vld [vmem:[%s2446 + $0xc] sm:$0xf]
    %s2451 = scalar_lea.vmem %s8, 4
    %v2452 = vld [vmem:[%s2451] sm:$0x1]
    %v2454 = vlaneseq
    %v2455 = vshrl.u32 %v2454, 7
    %v2456 = vsub.s32 0, %v2455
    %v2457 = vrot.slane %v2452, %v2456
    %v2463 = vunpack.c.l.b16 %v2447
    %v2464 = vunpack.c.l.b16 %v2448
    %v2465 = vunpack.c.l.b16 %v2449
    %v2466 = vunpack.c.l.b16 %v2450
    %v2467 = vpack.c.b16 %v2464, %v2463
    %v2468 = vpack.c.b16 %v2466, %v2465
    %2471 = vmatprep.subr.bf16.mxu0 0
    %2472 = vmatpush1.bf16.msra.mxu0 0
    %2473 = vmatprep.subr.bf16.mxu0 0
    %2474 = vmatpush1.bf16.msra.mxu0 0
    %2475 = vmatprep.subr.bf16.mxu0 0
    %2476 = vmatpush1.bf16.msra.mxu0 0
    %2477 = vmatprep.subr.bf16.mxu0 0
    %2478 = vmatpush1.bf16.msra.mxu0 0
    %2479 = vmatprep.subr.bf16.mxu0 0
    %2480 = vmatpush1.bf16.msra.mxu0 0
    %2481 = vmatprep.subr.bf16.mxu0 0
    %2482 = vmatpush1.bf16.msra.mxu0 0
    %2483 = vmatprep.subr.bf16.mxu0 0
    %2484 = vmatpush1.bf16.msra.mxu0 %v2468
    %2485 = vmatprep.subr.bf16.mxu0 0
    %2486 = vmatpush1.bf16.msra.mxu0 %v2467
    %2487 = vmatprep.subr.bf16.mxu0 0
    %2488 = vmatpush2.bf16.msra.mxu0 0
    %2489 = vmatprep.subr.bf16.mxu0 0
    %2490 = vmatpush2.bf16.msra.mxu0 0
    %2491 = vmatprep.subr.bf16.mxu0 0
    %2492 = vmatpush2.bf16.msra.mxu0 0
    %2493 = vmatprep.subr.bf16.mxu0 0
    %2494 = vmatpush2.bf16.msra.mxu0 0
    %2495 = vmatprep.subr.bf16.mxu0 0
    %2496 = vmatpush2.bf16.msra.mxu0 0
    %2497 = vmatprep.subr.bf16.mxu0 0
    %2498 = vmatpush2.bf16.msra.mxu0 0
    %2499 = vmatprep.subr.bf16.mxu0 0
    %2500 = vmatpush2.bf16.msra.mxu0 0
    %2501 = vmatprep.subr.bf16.mxu0 0
    %2502 = vmatpush2.bf16.msra.mxu0 0
    %2503 = vmatprep.mubr.bf16.mxu0 0
    %2504 = vmatmul.mubr.bf16.gmra.mxu0 %v2205
    %v2505 = vpop.f32.mrf.mxu0
    %v2506 = vadd.f32 %v2457, %v2505
    %v2507 = vpop.f32.mrf.mxu0
    %v2508 = vpop.f32.mrf.mxu0
    %v2509 = vadd.f32 %v2457, %v2508
    %v2510 = vpop.f32.mrf.mxu0
    %2511 = vdwg.mxu0
    %s2512 = scalar_lea.vmem %s7, 80
    %v2513 = vld [vmem:[%s2512] sm:$0xf]
    %v2514 = vld [vmem:[%s2512 + $0x4] sm:$0xf]
    %v2515 = vld [vmem:[%s2512 + $0x8] sm:$0xf]
    %v2516 = vld [vmem:[%s2512 + $0xc] sm:$0xf]
    %s2517 = scalar_lea.vmem %s8, 5
    %v2518 = vld [vmem:[%s2517] sm:$0x1]
    %v2520 = vlaneseq
    %v2521 = vshrl.u32 %v2520, 7
    %v2522 = vsub.s32 0, %v2521
    %v2523 = vrot.slane %v2518, %v2522
    %v2529 = vunpack.c.l.b16 %v2513
    %v2530 = vunpack.c.l.b16 %v2514
    %v2531 = vunpack.c.l.b16 %v2515
    %v2532 = vunpack.c.l.b16 %v2516
    %v2533 = vpack.c.b16 %v2530, %v2529
    %v2534 = vpack.c.b16 %v2532, %v2531
    %2537 = vmatprep.subr.bf16.mxu0 0
    %2538 = vmatpush1.bf16.msra.mxu0 0
    %2539 = vmatprep.subr.bf16.mxu0 0
    %2540 = vmatpush1.bf16.msra.mxu0 0
    %2541 = vmatprep.subr.bf16.mxu0 0
    %2542 = vmatpush1.bf16.msra.mxu0 0
    %2543 = vmatprep.subr.bf16.mxu0 0
    %2544 = vmatpush1.bf16.msra.mxu0 0
    %2545 = vmatprep.subr.bf16.mxu0 0
    %2546 = vmatpush1.bf16.msra.mxu0 0
    %2547 = vmatprep.subr.bf16.mxu0 0
    %2548 = vmatpush1.bf16.msra.mxu0 0
    %2549 = vmatprep.subr.bf16.mxu0 0
    %2550 = vmatpush1.bf16.msra.mxu0 %v2534
    %2551 = vmatprep.subr.bf16.mxu0 0
    %2552 = vmatpush1.bf16.msra.mxu0 %v2533
    %2553 = vmatprep.subr.bf16.mxu0 0
    %2554 = vmatpush2.bf16.msra.mxu0 0
    %2555 = vmatprep.subr.bf16.mxu0 0
    %2556 = vmatpush2.bf16.msra.mxu0 0
    %2557 = vmatprep.subr.bf16.mxu0 0
    %2558 = vmatpush2.bf16.msra.mxu0 0
    %2559 = vmatprep.subr.bf16.mxu0 0
    %2560 = vmatpush2.bf16.msra.mxu0 0
    %2561 = vmatprep.subr.bf16.mxu0 0
    %2562 = vmatpush2.bf16.msra.mxu0 0
    %2563 = vmatprep.subr.bf16.mxu0 0
    %2564 = vmatpush2.bf16.msra.mxu0 0
    %2565 = vmatprep.subr.bf16.mxu0 0
    %2566 = vmatpush2.bf16.msra.mxu0 0
    %2567 = vmatprep.subr.bf16.mxu0 0
    %2568 = vmatpush2.bf16.msra.mxu0 0
    %2569 = vmatprep.mubr.bf16.mxu0 0
    %2570 = vmatmul.mubr.bf16.gmra.mxu0 %v2205
    %v2571 = vpop.f32.mrf.mxu0
    %v2572 = vadd.f32 %v2523, %v2571
    %v2573 = vpop.f32.mrf.mxu0
    %v2574 = vpop.f32.mrf.mxu0
    %v2575 = vadd.f32 %v2523, %v2574
    %v2576 = vpop.f32.mrf.mxu0
    %2577 = vdwg.mxu0
    %s2578 = scalar_lea.vmem %s7, 96
    %v2579 = vld [vmem:[%s2578] sm:$0xf]
    %v2580 = vld [vmem:[%s2578 + $0x4] sm:$0xf]
    %v2581 = vld [vmem:[%s2578 + $0x8] sm:$0xf]
    %v2582 = vld [vmem:[%s2578 + $0xc] sm:$0xf]
    %s2583 = scalar_lea.vmem %s8, 6
    %v2584 = vld [vmem:[%s2583] sm:$0x1]
    %v2586 = vlaneseq
    %v2587 = vshrl.u32 %v2586, 7
    %v2588 = vsub.s32 0, %v2587
    %v2589 = vrot.slane %v2584, %v2588
    %v2595 = vunpack.c.l.b16 %v2579
    %v2596 = vunpack.c.l.b16 %v2580
    %v2597 = vunpack.c.l.b16 %v2581
    %v2598 = vunpack.c.l.b16 %v2582
    %v2599 = vpack.c.b16 %v2596, %v2595
    %v2600 = vpack.c.b16 %v2598, %v2597
    %2603 = vmatprep.subr.bf16.mxu0 0
    %2604 = vmatpush1.bf16.msra.mxu0 0
    %2605 = vmatprep.subr.bf16.mxu0 0
    %2606 = vmatpush1.bf16.msra.mxu0 0
    %2607 = vmatprep.subr.bf16.mxu0 0
    %2608 = vmatpush1.bf16.msra.mxu0 0
    %2609 = vmatprep.subr.bf16.mxu0 0
    %2610 = vmatpush1.bf16.msra.mxu0 0
    %2611 = vmatprep.subr.bf16.mxu0 0
    %2612 = vmatpush1.bf16.msra.mxu0 0
    %2613 = vmatprep.subr.bf16.mxu0 0
    %2614 = vmatpush1.bf16.msra.mxu0 0
    %2615 = vmatprep.subr.bf16.mxu0 0
    %2616 = vmatpush1.bf16.msra.mxu0 %v2600
    %2617 = vmatprep.subr.bf16.mxu0 0
    %2618 = vmatpush1.bf16.msra.mxu0 %v2599
    %2619 = vmatprep.subr.bf16.mxu0 0
    %2620 = vmatpush2.bf16.msra.mxu0 0
    %2621 = vmatprep.subr.bf16.mxu0 0
    %2622 = vmatpush2.bf16.msra.mxu0 0
    %2623 = vmatprep.subr.bf16.mxu0 0
    %2624 = vmatpush2.bf16.msra.mxu0 0
    %2625 = vmatprep.subr.bf16.mxu0 0
    %2626 = vmatpush2.bf16.msra.mxu0 0
    %2627 = vmatprep.subr.bf16.mxu0 0
    %2628 = vmatpush2.bf16.msra.mxu0 0
    %2629 = vmatprep.subr.bf16.mxu0 0
    %2630 = vmatpush2.bf16.msra.mxu0 0
    %2631 = vmatprep.subr.bf16.mxu0 0
    %2632 = vmatpush2.bf16.msra.mxu0 0
    %2633 = vmatprep.subr.bf16.mxu0 0
    %2634 = vmatpush2.bf16.msra.mxu0 0
    %2635 = vmatprep.mubr.bf16.mxu0 0
    %2636 = vmatmul.mubr.bf16.gmra.mxu0 %v2205
    %v2637 = vpop.f32.mrf.mxu0
    %v2638 = vadd.f32 %v2589, %v2637
    %v2639 = vpop.f32.mrf.mxu0
    %v2640 = vpop.f32.mrf.mxu0
    %v2641 = vadd.f32 %v2589, %v2640
    %v2642 = vpop.f32.mrf.mxu0
    %2643 = vdwg.mxu0
    %s2644 = scalar_lea.vmem %s7, 112
    %v2645 = vld [vmem:[%s2644] sm:$0xf]
    %v2646 = vld [vmem:[%s2644 + $0x4] sm:$0xf]
    %v2647 = vld [vmem:[%s2644 + $0x8] sm:$0xf]
    %v2648 = vld [vmem:[%s2644 + $0xc] sm:$0xf]
    %s2649 = scalar_lea.vmem %s8, 7
    %v2650 = vld [vmem:[%s2649] sm:$0x1]
    %v2652 = vlaneseq
    %v2653 = vshrl.u32 %v2652, 7
    %v2654 = vsub.s32 0, %v2653
    %v2655 = vrot.slane %v2650, %v2654
    %v2661 = vunpack.c.l.b16 %v2645
    %v2662 = vunpack.c.l.b16 %v2646
    %v2663 = vunpack.c.l.b16 %v2647
    %v2664 = vunpack.c.l.b16 %v2648
    %v2665 = vpack.c.b16 %v2662, %v2661
    %v2666 = vpack.c.b16 %v2664, %v2663
    %2669 = vmatprep.subr.bf16.mxu0 0
    %2670 = vmatpush1.bf16.msra.mxu0 0
    %2671 = vmatprep.subr.bf16.mxu0 0
    %2672 = vmatpush1.bf16.msra.mxu0 0
    %2673 = vmatprep.subr.bf16.mxu0 0
    %2674 = vmatpush1.bf16.msra.mxu0 0
    %2675 = vmatprep.subr.bf16.mxu0 0
    %2676 = vmatpush1.bf16.msra.mxu0 0
    %2677 = vmatprep.subr.bf16.mxu0 0
    %2678 = vmatpush1.bf16.msra.mxu0 0
    %2679 = vmatprep.subr.bf16.mxu0 0
    %2680 = vmatpush1.bf16.msra.mxu0 0
    %2681 = vmatprep.subr.bf16.mxu0 0
    %2682 = vmatpush1.bf16.msra.mxu0 %v2666
    %2683 = vmatprep.subr.bf16.mxu0 0
    %2684 = vmatpush1.bf16.msra.mxu0 %v2665
    %2685 = vmatprep.subr.bf16.mxu0 0
    %2686 = vmatpush2.bf16.msra.mxu0 0
    %2687 = vmatprep.subr.bf16.mxu0 0
    %2688 = vmatpush2.bf16.msra.mxu0 0
    %2689 = vmatprep.subr.bf16.mxu0 0
    %2690 = vmatpush2.bf16.msra.mxu0 0
    %2691 = vmatprep.subr.bf16.mxu0 0
    %2692 = vmatpush2.bf16.msra.mxu0 0
    %2693 = vmatprep.subr.bf16.mxu0 0
    %2694 = vmatpush2.bf16.msra.mxu0 0
    %2695 = vmatprep.subr.bf16.mxu0 0
    %2696 = vmatpush2.bf16.msra.mxu0 0
    %2697 = vmatprep.subr.bf16.mxu0 0
    %2698 = vmatpush2.bf16.msra.mxu0 0
    %2699 = vmatprep.subr.bf16.mxu0 0
    %2700 = vmatpush2.bf16.msra.mxu0 0
    %2701 = vmatprep.mubr.bf16.mxu0 0
    %2702 = vmatmul.mubr.bf16.gmra.mxu0 %v2205
    %v2703 = vpop.f32.mrf.mxu0
    %v2704 = vadd.f32 %v2655, %v2703
    %v2705 = vpop.f32.mrf.mxu0
    %v2706 = vpop.f32.mrf.mxu0
    %v2707 = vadd.f32 %v2655, %v2706
    %v2708 = vpop.f32.mrf.mxu0
    %2709 = vdwg.mxu0
    %s2710 = scalar_lea.vmem %s9, 64
    %v2711 = vld [vmem:[%s2710] sm:$0xf]
    %v2712 = vld [vmem:[%s2710 + $0x4] sm:$0xf]
    %v2713 = vld [vmem:[%s2710 + $0x8] sm:$0xf]
    %v2714 = vld [vmem:[%s2710 + $0xc] sm:$0xf]
    %s2715 = scalar_lea.vmem %s10, 4
    %v2716 = vld [vmem:[%s2715] sm:$0x1]
    %v2718 = vlaneseq
    %v2719 = vshrl.u32 %v2718, 7
    %v2720 = vsub.s32 0, %v2719
    %v2721 = vrot.slane %v2716, %v2720
    %v2727 = vunpack.c.l.b16 %v2711
    %v2728 = vunpack.c.l.b16 %v2712
    %v2729 = vunpack.c.l.b16 %v2713
    %v2730 = vunpack.c.l.b16 %v2714
    %v2731 = vpack.c.b16 %v2728, %v2727
    %v2732 = vpack.c.b16 %v2730, %v2729
    %2735 = vmatprep.subr.bf16.mxu0 0
    %2736 = vmatpush1.bf16.msra.mxu0 0
    %2737 = vmatprep.subr.bf16.mxu0 0
    %2738 = vmatpush1.bf16.msra.mxu0 0
    %2739 = vmatprep.subr.bf16.mxu0 0
    %2740 = vmatpush1.bf16.msra.mxu0 0
    %2741 = vmatprep.subr.bf16.mxu0 0
    %2742 = vmatpush1.bf16.msra.mxu0 0
    %2743 = vmatprep.subr.bf16.mxu0 0
    %2744 = vmatpush1.bf16.msra.mxu0 0
    %2745 = vmatprep.subr.bf16.mxu0 0
    %2746 = vmatpush1.bf16.msra.mxu0 0
    %2747 = vmatprep.subr.bf16.mxu0 0
    %2748 = vmatpush1.bf16.msra.mxu0 %v2732
    %2749 = vmatprep.subr.bf16.mxu0 0
    %2750 = vmatpush1.bf16.msra.mxu0 %v2731
    %2751 = vmatprep.subr.bf16.mxu0 0
    %2752 = vmatpush2.bf16.msra.mxu0 0
    %2753 = vmatprep.subr.bf16.mxu0 0
    %2754 = vmatpush2.bf16.msra.mxu0 0
    %2755 = vmatprep.subr.bf16.mxu0 0
    %2756 = vmatpush2.bf16.msra.mxu0 0
    %2757 = vmatprep.subr.bf16.mxu0 0
    %2758 = vmatpush2.bf16.msra.mxu0 0
    %2759 = vmatprep.subr.bf16.mxu0 0
    %2760 = vmatpush2.bf16.msra.mxu0 0
    %2761 = vmatprep.subr.bf16.mxu0 0
    %2762 = vmatpush2.bf16.msra.mxu0 0
    %2763 = vmatprep.subr.bf16.mxu0 0
    %2764 = vmatpush2.bf16.msra.mxu0 0
    %2765 = vmatprep.subr.bf16.mxu0 0
    %2766 = vmatpush2.bf16.msra.mxu0 0
    %2767 = vmatprep.mubr.bf16.mxu0 0
    %2768 = vmatmul.mubr.bf16.gmra.mxu0 %v2205
    %v2769 = vpop.f32.mrf.mxu0
    %v2770 = vadd.f32 %v2721, %v2769
    %v2771 = vpop.f32.mrf.mxu0
    %v2772 = vpop.f32.mrf.mxu0
    %v2773 = vadd.f32 %v2721, %v2772
    %v2774 = vpop.f32.mrf.mxu0
    %2775 = vdwg.mxu0
    %s2776 = scalar_lea.vmem %s9, 80
    %v2777 = vld [vmem:[%s2776] sm:$0xf]
    %v2778 = vld [vmem:[%s2776 + $0x4] sm:$0xf]
    %v2779 = vld [vmem:[%s2776 + $0x8] sm:$0xf]
    %v2780 = vld [vmem:[%s2776 + $0xc] sm:$0xf]
    %s2781 = scalar_lea.vmem %s10, 5
    %v2782 = vld [vmem:[%s2781] sm:$0x1]
    %v2784 = vlaneseq
    %v2785 = vshrl.u32 %v2784, 7
    %v2786 = vsub.s32 0, %v2785
    %v2787 = vrot.slane %v2782, %v2786
    %v2793 = vunpack.c.l.b16 %v2777
    %v2794 = vunpack.c.l.b16 %v2778
    %v2795 = vunpack.c.l.b16 %v2779
    %v2796 = vunpack.c.l.b16 %v2780
    %v2797 = vpack.c.b16 %v2794, %v2793
    %v2798 = vpack.c.b16 %v2796, %v2795
    %2801 = vmatprep.subr.bf16.mxu0 0
    %2802 = vmatpush1.bf16.msra.mxu0 0
    %2803 = vmatprep.subr.bf16.mxu0 0
    %2804 = vmatpush1.bf16.msra.mxu0 0
    %2805 = vmatprep.subr.bf16.mxu0 0
    %2806 = vmatpush1.bf16.msra.mxu0 0
    %2807 = vmatprep.subr.bf16.mxu0 0
    %2808 = vmatpush1.bf16.msra.mxu0 0
    %2809 = vmatprep.subr.bf16.mxu0 0
    %2810 = vmatpush1.bf16.msra.mxu0 0
    %2811 = vmatprep.subr.bf16.mxu0 0
    %2812 = vmatpush1.bf16.msra.mxu0 0
    %2813 = vmatprep.subr.bf16.mxu0 0
    %2814 = vmatpush1.bf16.msra.mxu0 %v2798
    %2815 = vmatprep.subr.bf16.mxu0 0
    %2816 = vmatpush1.bf16.msra.mxu0 %v2797
    %2817 = vmatprep.subr.bf16.mxu0 0
    %2818 = vmatpush2.bf16.msra.mxu0 0
    %2819 = vmatprep.subr.bf16.mxu0 0
    %2820 = vmatpush2.bf16.msra.mxu0 0
    %2821 = vmatprep.subr.bf16.mxu0 0
    %2822 = vmatpush2.bf16.msra.mxu0 0
    %2823 = vmatprep.subr.bf16.mxu0 0
    %2824 = vmatpush2.bf16.msra.mxu0 0
    %2825 = vmatprep.subr.bf16.mxu0 0
    %2826 = vmatpush2.bf16.msra.mxu0 0
    %2827 = vmatprep.subr.bf16.mxu0 0
    %2828 = vmatpush2.bf16.msra.mxu0 0
    %2829 = vmatprep.subr.bf16.mxu0 0
    %2830 = vmatpush2.bf16.msra.mxu0 0
    %2831 = vmatprep.subr.bf16.mxu0 0
    %2832 = vmatpush2.bf16.msra.mxu0 0
    %2833 = vmatprep.mubr.bf16.mxu0 0
    %2834 = vmatmul.mubr.bf16.gmra.mxu0 %v2205
    %v2835 = vpop.f32.mrf.mxu0
    %v2836 = vadd.f32 %v2787, %v2835
    %v2837 = vpop.f32.mrf.mxu0
    %v2838 = vpop.f32.mrf.mxu0
    %v2839 = vadd.f32 %v2787, %v2838
    %v2840 = vpop.f32.mrf.mxu0
    %2841 = vdwg.mxu0
    %s2842 = scalar_lea.vmem %s9, 96
    %v2843 = vld [vmem:[%s2842] sm:$0xf]
    %v2844 = vld [vmem:[%s2842 + $0x4] sm:$0xf]
    %v2845 = vld [vmem:[%s2842 + $0x8] sm:$0xf]
    %v2846 = vld [vmem:[%s2842 + $0xc] sm:$0xf]
    %s2847 = scalar_lea.vmem %s10, 6
    %v2848 = vld [vmem:[%s2847] sm:$0x1]
    %v2850 = vlaneseq
    %v2851 = vshrl.u32 %v2850, 7
    %v2852 = vsub.s32 0, %v2851
    %v2853 = vrot.slane %v2848, %v2852
    %v2859 = vunpack.c.l.b16 %v2843
    %v2860 = vunpack.c.l.b16 %v2844
    %v2861 = vunpack.c.l.b16 %v2845
    %v2862 = vunpack.c.l.b16 %v2846
    %v2863 = vpack.c.b16 %v2860, %v2859
    %v2864 = vpack.c.b16 %v2862, %v2861
    %2867 = vmatprep.subr.bf16.mxu0 0
    %2868 = vmatpush1.bf16.msra.mxu0 0
    %2869 = vmatprep.subr.bf16.mxu0 0
    %2870 = vmatpush1.bf16.msra.mxu0 0
    %2871 = vmatprep.subr.bf16.mxu0 0
    %2872 = vmatpush1.bf16.msra.mxu0 0
    %2873 = vmatprep.subr.bf16.mxu0 0
    %2874 = vmatpush1.bf16.msra.mxu0 0
    %2875 = vmatprep.subr.bf16.mxu0 0
    %2876 = vmatpush1.bf16.msra.mxu0 0
    %2877 = vmatprep.subr.bf16.mxu0 0
    %2878 = vmatpush1.bf16.msra.mxu0 0
    %2879 = vmatprep.subr.bf16.mxu0 0
    %2880 = vmatpush1.bf16.msra.mxu0 %v2864
    %2881 = vmatprep.subr.bf16.mxu0 0
    %2882 = vmatpush1.bf16.msra.mxu0 %v2863
    %2883 = vmatprep.subr.bf16.mxu0 0
    %2884 = vmatpush2.bf16.msra.mxu0 0
    %2885 = vmatprep.subr.bf16.mxu0 0
    %2886 = vmatpush2.bf16.msra.mxu0 0
    %2887 = vmatprep.subr.bf16.mxu0 0
    %2888 = vmatpush2.bf16.msra.mxu0 0
    %2889 = vmatprep.subr.bf16.mxu0 0
    %2890 = vmatpush2.bf16.msra.mxu0 0
    %2891 = vmatprep.subr.bf16.mxu0 0
    %2892 = vmatpush2.bf16.msra.mxu0 0
    %2893 = vmatprep.subr.bf16.mxu0 0
    %2894 = vmatpush2.bf16.msra.mxu0 0
    %2895 = vmatprep.subr.bf16.mxu0 0
    %2896 = vmatpush2.bf16.msra.mxu0 0
    %2897 = vmatprep.subr.bf16.mxu0 0
    %2898 = vmatpush2.bf16.msra.mxu0 0
    %2899 = vmatprep.mubr.bf16.mxu0 0
    %2900 = vmatmul.mubr.bf16.gmra.mxu0 %v2205
    %v2901 = vpop.f32.mrf.mxu0
    %v2902 = vadd.f32 %v2853, %v2901
    %v2903 = vpop.f32.mrf.mxu0
    %v2904 = vpop.f32.mrf.mxu0
    %v2905 = vadd.f32 %v2853, %v2904
    %v2906 = vpop.f32.mrf.mxu0
    %2907 = vdwg.mxu0
    %s2908 = scalar_lea.vmem %s9, 112
    %v2909 = vld [vmem:[%s2908] sm:$0xf]
    %v2910 = vld [vmem:[%s2908 + $0x4] sm:$0xf]
    %v2911 = vld [vmem:[%s2908 + $0x8] sm:$0xf]
    %v2912 = vld [vmem:[%s2908 + $0xc] sm:$0xf]
    %s2913 = scalar_lea.vmem %s10, 7
    %v2914 = vld [vmem:[%s2913] sm:$0x1]
    %v2916 = vlaneseq
    %v2917 = vshrl.u32 %v2916, 7
    %v2918 = vsub.s32 0, %v2917
    %v2919 = vrot.slane %v2914, %v2918
    %v2925 = vunpack.c.l.b16 %v2909
    %v2926 = vunpack.c.l.b16 %v2910
    %v2927 = vunpack.c.l.b16 %v2911
    %v2928 = vunpack.c.l.b16 %v2912
    %v2929 = vpack.c.b16 %v2926, %v2925
    %v2930 = vpack.c.b16 %v2928, %v2927
    %2933 = vmatprep.subr.bf16.mxu0 0
    %2934 = vmatpush1.bf16.msra.mxu0 0
    %2935 = vmatprep.subr.bf16.mxu0 0
    %2936 = vmatpush1.bf16.msra.mxu0 0
    %2937 = vmatprep.subr.bf16.mxu0 0
    %2938 = vmatpush1.bf16.msra.mxu0 0
    %2939 = vmatprep.subr.bf16.mxu0 0
    %2940 = vmatpush1.bf16.msra.mxu0 0
    %2941 = vmatprep.subr.bf16.mxu0 0
    %2942 = vmatpush1.bf16.msra.mxu0 0
    %2943 = vmatprep.subr.bf16.mxu0 0
    %2944 = vmatpush1.bf16.msra.mxu0 0
    %2945 = vmatprep.subr.bf16.mxu0 0
    %2946 = vmatpush1.bf16.msra.mxu0 %v2930
    %2947 = vmatprep.subr.bf16.mxu0 0
    %2948 = vmatpush1.bf16.msra.mxu0 %v2929
    %2949 = vmatprep.subr.bf16.mxu0 0
    %2950 = vmatpush2.bf16.msra.mxu0 0
    %2951 = vmatprep.subr.bf16.mxu0 0
    %2952 = vmatpush2.bf16.msra.mxu0 0
    %2953 = vmatprep.subr.bf16.mxu0 0
    %2954 = vmatpush2.bf16.msra.mxu0 0
    %2955 = vmatprep.subr.bf16.mxu0 0
    %2956 = vmatpush2.bf16.msra.mxu0 0
    %2957 = vmatprep.subr.bf16.mxu0 0
    %2958 = vmatpush2.bf16.msra.mxu0 0
    %2959 = vmatprep.subr.bf16.mxu0 0
    %2960 = vmatpush2.bf16.msra.mxu0 0
    %2961 = vmatprep.subr.bf16.mxu0 0
    %2962 = vmatpush2.bf16.msra.mxu0 0
    %2963 = vmatprep.subr.bf16.mxu0 0
    %2964 = vmatpush2.bf16.msra.mxu0 0
    %2965 = vmatprep.mubr.bf16.mxu0 0
    %2966 = vmatmul.mubr.bf16.gmra.mxu0 %v2205
    %v2967 = vpop.f32.mrf.mxu0
    %v2968 = vadd.f32 %v2919, %v2967
    %v2969 = vpop.f32.mrf.mxu0
    %v2970 = vpop.f32.mrf.mxu0
    %v2971 = vadd.f32 %v2919, %v2970
    %v2972 = vpop.f32.mrf.mxu0
    %2973 = vdwg.mxu0
    %v2975 = vsel %vm960, %v2242, 0
    %v2978 = vsel %vm960, %v2245, 0
    %v2981 = vsel %vm960, %v2506, 0
    %v2984 = vsel %vm960, %v2509, 0
    %2986 = vmatprep.subr.mxu0 0.0
    %2987 = vmatpush1.xpose.msra.mxu0 0.0
    %2988 = vmatprep.subr.mxu0 0.0
    %2989 = vmatpush1.xpose.msra.mxu0 0.0
    %2990 = vmatprep.subr.mxu0 0.0
    %2991 = vmatpush1.xpose.msra.mxu0 0.0
    %2992 = vmatprep.subr.mxu0 0.0
    %2993 = vmatpush1.xpose.msra.mxu0 0.0
    %2994 = vmatprep.subr.mxu0 0.0
    %2995 = vmatpush1.xpose.msra.mxu0 0.0
    %2996 = vmatprep.subr.mxu0 0.0
    %2997 = vmatpush1.xpose.msra.mxu0 0.0
    %2998 = vmatprep.subr.mxu0 0.0
    %2999 = vmatpush1.xpose.msra.mxu0 0.0
    %3000 = vmatprep.subr.mxu0 0.0
    %3001 = vmatpush1.xpose.msra.mxu0 0.0
    %3002 = vmatprep.subr.mxu0 0.0
    %3003 = vmatpush1.xpose.msra.mxu0 0.0
    %3004 = vmatprep.subr.mxu0 0.0
    %3005 = vmatpush1.xpose.msra.mxu0 0.0
    %3006 = vmatprep.subr.mxu0 0.0
    %3007 = vmatpush1.xpose.msra.mxu0 0.0
    %3008 = vmatprep.subr.mxu0 0.0
    %3009 = vmatpush1.xpose.msra.mxu0 0.0
    %3010 = vmatprep.subr.mxu0 0.0
    %3011 = vmatpush1.xpose.msra.mxu0 0.0
    %3012 = vmatprep.subr.mxu0 0.0
    %3013 = vmatpush1.xpose.msra.mxu0 0.0
    %3014 = vmatprep.subr.mxu0 0.0
    %3015 = vmatpush1.xpose.msra.mxu0 %v2984
    %3016 = vmatprep.subr.mxu0 0.0
    %3017 = vmatpush1.xpose.msra.mxu0 %v2981
    %3018 = vmatprep.subr.mxu0 0.0
    %3019 = vmatpush2.xpose.msra.mxu0 0.0
    %3020 = vmatprep.subr.mxu0 0.0
    %3021 = vmatpush2.xpose.msra.mxu0 0.0
    %3022 = vmatprep.subr.mxu0 0.0
    %3023 = vmatpush2.xpose.msra.mxu0 0.0
    %3024 = vmatprep.subr.mxu0 0.0
    %3025 = vmatpush2.xpose.msra.mxu0 0.0
    %3026 = vmatprep.subr.mxu0 0.0
    %3027 = vmatpush2.xpose.msra.mxu0 0.0
    %3028 = vmatprep.subr.mxu0 0.0
    %3029 = vmatpush2.xpose.msra.mxu0 0.0
    %3030 = vmatprep.subr.mxu0 0.0
    %3031 = vmatpush2.xpose.msra.mxu0 0.0
    %3032 = vmatprep.subr.mxu0 0.0
    %3033 = vmatpush2.xpose.msra.mxu0 0.0
    %3034 = vmatprep.subr.mxu0 0.0
    %3035 = vmatpush2.xpose.msra.mxu0 0.0
    %3036 = vmatprep.subr.mxu0 0.0
    %3037 = vmatpush2.xpose.msra.mxu0 0.0
    %3038 = vmatprep.subr.mxu0 0.0
    %3039 = vmatpush2.xpose.msra.mxu0 0.0
    %3040 = vmatprep.subr.mxu0 0.0
    %3041 = vmatpush2.xpose.msra.mxu0 0.0
    %3042 = vmatprep.subr.mxu0 0.0
    %3043 = vmatpush2.xpose.msra.mxu0 0.0
    %3044 = vmatprep.subr.mxu0 0.0
    %3045 = vmatpush2.xpose.msra.mxu0 0.0
    %3046 = vmatprep.subr.mxu0 0.0
    %3047 = vmatpush2.xpose.msra.mxu0 0.0
    %3048 = vmatprep.subr.mxu0 0.0
    %3049 = vmatpush2.xpose.msra.mxu0 0.0
    %3050 = vmatprep.mubr.f32.mxu0 0.0
    %3051 = vmatmul.mubr.f32.gmra.mxu0 %v2975
    %v3052 = vpop.f32.mrf.mxu0
    %v3053 = vadd.f32 0.0, %v3052
    %v3054 = vpop.f32.mrf.mxu0
    %3055 = vmatprep.mubr.f32.mxu0 0.0
    %3056 = vmatmul.mubr.f32.gmra.mxu0 %v2978
    %v3057 = vpop.f32.mrf.mxu0
    %v3058 = vadd.f32 0.0, %v3057
    %v3059 = vpop.f32.mrf.mxu0
    %3060 = vdwg.mxu0
    %v3062 = vsel %vm960, %v2308, 0
    %v3065 = vsel %vm960, %v2311, 0
    %v3068 = vsel %vm960, %v2572, 0
    %v3071 = vsel %vm960, %v2575, 0
    %3073 = vmatprep.subr.mxu0 0.0
    %3074 = vmatpush1.xpose.msra.mxu0 0.0
    %3075 = vmatprep.subr.mxu0 0.0
    %3076 = vmatpush1.xpose.msra.mxu0 0.0
    %3077 = vmatprep.subr.mxu0 0.0
    %3078 = vmatpush1.xpose.msra.mxu0 0.0
    %3079 = vmatprep.subr.mxu0 0.0
    %3080 = vmatpush1.xpose.msra.mxu0 0.0
    %3081 = vmatprep.subr.mxu0 0.0
    %3082 = vmatpush1.xpose.msra.mxu0 0.0
    %3083 = vmatprep.subr.mxu0 0.0
    %3084 = vmatpush1.xpose.msra.mxu0 0.0
    %3085 = vmatprep.subr.mxu0 0.0
    %3086 = vmatpush1.xpose.msra.mxu0 0.0
    %3087 = vmatprep.subr.mxu0 0.0
    %3088 = vmatpush1.xpose.msra.mxu0 0.0
    %3089 = vmatprep.subr.mxu0 0.0
    %3090 = vmatpush1.xpose.msra.mxu0 0.0
    %3091 = vmatprep.subr.mxu0 0.0
    %3092 = vmatpush1.xpose.msra.mxu0 0.0
    %3093 = vmatprep.subr.mxu0 0.0
    %3094 = vmatpush1.xpose.msra.mxu0 0.0
    %3095 = vmatprep.subr.mxu0 0.0
    %3096 = vmatpush1.xpose.msra.mxu0 0.0
    %3097 = vmatprep.subr.mxu0 0.0
    %3098 = vmatpush1.xpose.msra.mxu0 0.0
    %3099 = vmatprep.subr.mxu0 0.0
    %3100 = vmatpush1.xpose.msra.mxu0 0.0
    %3101 = vmatprep.subr.mxu0 0.0
    %3102 = vmatpush1.xpose.msra.mxu0 %v3071
    %3103 = vmatprep.subr.mxu0 0.0
    %3104 = vmatpush1.xpose.msra.mxu0 %v3068
    %3105 = vmatprep.subr.mxu0 0.0
    %3106 = vmatpush2.xpose.msra.mxu0 0.0
    %3107 = vmatprep.subr.mxu0 0.0
    %3108 = vmatpush2.xpose.msra.mxu0 0.0
    %3109 = vmatprep.subr.mxu0 0.0
    %3110 = vmatpush2.xpose.msra.mxu0 0.0
    %3111 = vmatprep.subr.mxu0 0.0
    %3112 = vmatpush2.xpose.msra.mxu0 0.0
    %3113 = vmatprep.subr.mxu0 0.0
    %3114 = vmatpush2.xpose.msra.mxu0 0.0
    %3115 = vmatprep.subr.mxu0 0.0
    %3116 = vmatpush2.xpose.msra.mxu0 0.0
    %3117 = vmatprep.subr.mxu0 0.0
    %3118 = vmatpush2.xpose.msra.mxu0 0.0
    %3119 = vmatprep.subr.mxu0 0.0
    %3120 = vmatpush2.xpose.msra.mxu0 0.0
    %3121 = vmatprep.subr.mxu0 0.0
    %3122 = vmatpush2.xpose.msra.mxu0 0.0
    %3123 = vmatprep.subr.mxu0 0.0
    %3124 = vmatpush2.xpose.msra.mxu0 0.0
    %3125 = vmatprep.subr.mxu0 0.0
    %3126 = vmatpush2.xpose.msra.mxu0 0.0
    %3127 = vmatprep.subr.mxu0 0.0
    %3128 = vmatpush2.xpose.msra.mxu0 0.0
    %3129 = vmatprep.subr.mxu0 0.0
    %3130 = vmatpush2.xpose.msra.mxu0 0.0
    %3131 = vmatprep.subr.mxu0 0.0
    %3132 = vmatpush2.xpose.msra.mxu0 0.0
    %3133 = vmatprep.subr.mxu0 0.0
    %3134 = vmatpush2.xpose.msra.mxu0 0.0
    %3135 = vmatprep.subr.mxu0 0.0
    %3136 = vmatpush2.xpose.msra.mxu0 0.0
    %3137 = vmatprep.mubr.f32.mxu0 0.0
    %3138 = vmatmul.mubr.f32.gmra.mxu0 %v3062
    %v3139 = vpop.f32.mrf.mxu0
    %v3140 = vadd.f32 0.0, %v3139
    %v3141 = vpop.f32.mrf.mxu0
    %3142 = vmatprep.mubr.f32.mxu0 0.0
    %3143 = vmatmul.mubr.f32.gmra.mxu0 %v3065
    %v3144 = vpop.f32.mrf.mxu0
    %v3145 = vadd.f32 0.0, %v3144
    %v3146 = vpop.f32.mrf.mxu0
    %3147 = vdwg.mxu0
    %v3149 = vsel %vm960, %v2374, 0
    %v3152 = vsel %vm960, %v2377, 0
    %v3155 = vsel %vm960, %v2638, 0
    %v3158 = vsel %vm960, %v2641, 0
    %3160 = vmatprep.subr.mxu0 0.0
    %3161 = vmatpush1.xpose.msra.mxu0 0.0
    %3162 = vmatprep.subr.mxu0 0.0
    %3163 = vmatpush1.xpose.msra.mxu0 0.0
    %3164 = vmatprep.subr.mxu0 0.0
    %3165 = vmatpush1.xpose.msra.mxu0 0.0
    %3166 = vmatprep.subr.mxu0 0.0
    %3167 = vmatpush1.xpose.msra.mxu0 0.0
    %3168 = vmatprep.subr.mxu0 0.0
    %3169 = vmatpush1.xpose.msra.mxu0 0.0
    %3170 = vmatprep.subr.mxu0 0.0
    %3171 = vmatpush1.xpose.msra.mxu0 0.0
    %3172 = vmatprep.subr.mxu0 0.0
    %3173 = vmatpush1.xpose.msra.mxu0 0.0
    %3174 = vmatprep.subr.mxu0 0.0
    %3175 = vmatpush1.xpose.msra.mxu0 0.0
    %3176 = vmatprep.subr.mxu0 0.0
    %3177 = vmatpush1.xpose.msra.mxu0 0.0
    %3178 = vmatprep.subr.mxu0 0.0
    %3179 = vmatpush1.xpose.msra.mxu0 0.0
    %3180 = vmatprep.subr.mxu0 0.0
    %3181 = vmatpush1.xpose.msra.mxu0 0.0
    %3182 = vmatprep.subr.mxu0 0.0
    %3183 = vmatpush1.xpose.msra.mxu0 0.0
    %3184 = vmatprep.subr.mxu0 0.0
    %3185 = vmatpush1.xpose.msra.mxu0 0.0
    %3186 = vmatprep.subr.mxu0 0.0
    %3187 = vmatpush1.xpose.msra.mxu0 0.0
    %3188 = vmatprep.subr.mxu0 0.0
    %3189 = vmatpush1.xpose.msra.mxu0 %v3158
    %3190 = vmatprep.subr.mxu0 0.0
    %3191 = vmatpush1.xpose.msra.mxu0 %v3155
    %3192 = vmatprep.subr.mxu0 0.0
    %3193 = vmatpush2.xpose.msra.mxu0 0.0
    %3194 = vmatprep.subr.mxu0 0.0
    %3195 = vmatpush2.xpose.msra.mxu0 0.0
    %3196 = vmatprep.subr.mxu0 0.0
    %3197 = vmatpush2.xpose.msra.mxu0 0.0
    %3198 = vmatprep.subr.mxu0 0.0
    %3199 = vmatpush2.xpose.msra.mxu0 0.0
    %3200 = vmatprep.subr.mxu0 0.0
    %3201 = vmatpush2.xpose.msra.mxu0 0.0
    %3202 = vmatprep.subr.mxu0 0.0
    %3203 = vmatpush2.xpose.msra.mxu0 0.0
    %3204 = vmatprep.subr.mxu0 0.0
    %3205 = vmatpush2.xpose.msra.mxu0 0.0
    %3206 = vmatprep.subr.mxu0 0.0
    %3207 = vmatpush2.xpose.msra.mxu0 0.0
    %3208 = vmatprep.subr.mxu0 0.0
    %3209 = vmatpush2.xpose.msra.mxu0 0.0
    %3210 = vmatprep.subr.mxu0 0.0
    %3211 = vmatpush2.xpose.msra.mxu0 0.0
    %3212 = vmatprep.subr.mxu0 0.0
    %3213 = vmatpush2.xpose.msra.mxu0 0.0
    %3214 = vmatprep.subr.mxu0 0.0
    %3215 = vmatpush2.xpose.msra.mxu0 0.0
    %3216 = vmatprep.subr.mxu0 0.0
    %3217 = vmatpush2.xpose.msra.mxu0 0.0
    %3218 = vmatprep.subr.mxu0 0.0
    %3219 = vmatpush2.xpose.msra.mxu0 0.0
    %3220 = vmatprep.subr.mxu0 0.0
    %3221 = vmatpush2.xpose.msra.mxu0 0.0
    %3222 = vmatprep.subr.mxu0 0.0
    %3223 = vmatpush2.xpose.msra.mxu0 0.0
    %3224 = vmatprep.mubr.f32.mxu0 0.0
    %3225 = vmatmul.mubr.f32.gmra.mxu0 %v3149
    %v3226 = vpop.f32.mrf.mxu0
    %v3227 = vadd.f32 0.0, %v3226
    %v3228 = vpop.f32.mrf.mxu0
    %3229 = vmatprep.mubr.f32.mxu0 0.0
    %3230 = vmatmul.mubr.f32.gmra.mxu0 %v3152
    %v3231 = vpop.f32.mrf.mxu0
    %v3232 = vadd.f32 0.0, %v3231
    %v3233 = vpop.f32.mrf.mxu0
    %3234 = vdwg.mxu0
    %v3236 = vsel %vm960, %v2440, 0
    %v3239 = vsel %vm960, %v2443, 0
    %v3242 = vsel %vm960, %v2704, 0
    %v3245 = vsel %vm960, %v2707, 0
    %3247 = vmatprep.subr.mxu0 0.0
    %3248 = vmatpush1.xpose.msra.mxu0 0.0
    %3249 = vmatprep.subr.mxu0 0.0
    %3250 = vmatpush1.xpose.msra.mxu0 0.0
    %3251 = vmatprep.subr.mxu0 0.0
    %3252 = vmatpush1.xpose.msra.mxu0 0.0
    %3253 = vmatprep.subr.mxu0 0.0
    %3254 = vmatpush1.xpose.msra.mxu0 0.0
    %3255 = vmatprep.subr.mxu0 0.0
    %3256 = vmatpush1.xpose.msra.mxu0 0.0
    %3257 = vmatprep.subr.mxu0 0.0
    %3258 = vmatpush1.xpose.msra.mxu0 0.0
    %3259 = vmatprep.subr.mxu0 0.0
    %3260 = vmatpush1.xpose.msra.mxu0 0.0
    %3261 = vmatprep.subr.mxu0 0.0
    %3262 = vmatpush1.xpose.msra.mxu0 0.0
    %3263 = vmatprep.subr.mxu0 0.0
    %3264 = vmatpush1.xpose.msra.mxu0 0.0
    %3265 = vmatprep.subr.mxu0 0.0
    %3266 = vmatpush1.xpose.msra.mxu0 0.0
    %3267 = vmatprep.subr.mxu0 0.0
    %3268 = vmatpush1.xpose.msra.mxu0 0.0
    %3269 = vmatprep.subr.mxu0 0.0
    %3270 = vmatpush1.xpose.msra.mxu0 0.0
    %3271 = vmatprep.subr.mxu0 0.0
    %3272 = vmatpush1.xpose.msra.mxu0 0.0
    %3273 = vmatprep.subr.mxu0 0.0
    %3274 = vmatpush1.xpose.msra.mxu0 0.0
    %3275 = vmatprep.subr.mxu0 0.0
    %3276 = vmatpush1.xpose.msra.mxu0 %v3245
    %3277 = vmatprep.subr.mxu0 0.0
    %3278 = vmatpush1.xpose.msra.mxu0 %v3242
    %3279 = vmatprep.subr.mxu0 0.0
    %3280 = vmatpush2.xpose.msra.mxu0 0.0
    %3281 = vmatprep.subr.mxu0 0.0
    %3282 = vmatpush2.xpose.msra.mxu0 0.0
    %3283 = vmatprep.subr.mxu0 0.0
    %3284 = vmatpush2.xpose.msra.mxu0 0.0
    %3285 = vmatprep.subr.mxu0 0.0
    %3286 = vmatpush2.xpose.msra.mxu0 0.0
    %3287 = vmatprep.subr.mxu0 0.0
    %3288 = vmatpush2.xpose.msra.mxu0 0.0
    %3289 = vmatprep.subr.mxu0 0.0
    %3290 = vmatpush2.xpose.msra.mxu0 0.0
    %3291 = vmatprep.subr.mxu0 0.0
    %3292 = vmatpush2.xpose.msra.mxu0 0.0
    %3293 = vmatprep.subr.mxu0 0.0
    %3294 = vmatpush2.xpose.msra.mxu0 0.0
    %3295 = vmatprep.subr.mxu0 0.0
    %3296 = vmatpush2.xpose.msra.mxu0 0.0
    %3297 = vmatprep.subr.mxu0 0.0
    %3298 = vmatpush2.xpose.msra.mxu0 0.0
    %3299 = vmatprep.subr.mxu0 0.0
    %3300 = vmatpush2.xpose.msra.mxu0 0.0
    %3301 = vmatprep.subr.mxu0 0.0
    %3302 = vmatpush2.xpose.msra.mxu0 0.0
    %3303 = vmatprep.subr.mxu0 0.0
    %3304 = vmatpush2.xpose.msra.mxu0 0.0
    %3305 = vmatprep.subr.mxu0 0.0
    %3306 = vmatpush2.xpose.msra.mxu0 0.0
    %3307 = vmatprep.subr.mxu0 0.0
    %3308 = vmatpush2.xpose.msra.mxu0 0.0
    %3309 = vmatprep.subr.mxu0 0.0
    %3310 = vmatpush2.xpose.msra.mxu0 0.0
    %3311 = vmatprep.mubr.f32.mxu0 0.0
    %3312 = vmatmul.mubr.f32.gmra.mxu0 %v3236
    %v3313 = vpop.f32.mrf.mxu0
    %v3314 = vadd.f32 0.0, %v3313
    %v3315 = vpop.f32.mrf.mxu0
    %3316 = vmatprep.mubr.f32.mxu0 0.0
    %3317 = vmatmul.mubr.f32.gmra.mxu0 %v3239
    %v3318 = vpop.f32.mrf.mxu0
    %v3319 = vadd.f32 0.0, %v3318
    %v3320 = vpop.f32.mrf.mxu0
    %3321 = vdwg.mxu0
    %v3322 = vmul.f32 %v3053, 0.35355338
    %v3323 = vmul.f32 %v3058, 0.35355338
    %v3324 = vmul.f32 %v3140, 0.35355338
    %v3325 = vmul.f32 %v3145, 0.35355338
    %v3326 = vmul.f32 %v3227, 0.35355338
    %v3327 = vmul.f32 %v3232, 0.35355338
    %v3328 = vmul.f32 %v3314, 0.35355338
    %v3329 = vmul.f32 %v3319, 0.35355338
    %v3330 = vadd.f32 %v3322, %v141
    %v3331 = vadd.f32 %v3323, %v142
    %v3332 = vadd.f32 %v3324, %v141
    %v3333 = vadd.f32 %v3325, %v142
    %v3334 = vadd.f32 %v3326, %v141
    %v3335 = vadd.f32 %v3327, %v142
    %v3336 = vadd.f32 %v3328, %v141
    %v3337 = vadd.f32 %v3329, %v142
    %v3338 = vsel %vm1325, %v3330, -inf
    %3339 = vmax.xlane.f32.xlu0 %v3338
    %v3340 = vpop.xlane.xlu0 %3339
    %v3341 = vsel %vm1325, %v3331, -inf
    %3342 = vmax.xlane.f32.xlu0 %v3341
    %v3343 = vpop.xlane.xlu0 %3342
    %v3344 = vsel %vm1325, %v3332, -inf
    %3345 = vmax.xlane.f32.xlu0 %v3344
    %v3346 = vpop.xlane.xlu0 %3345
    %v3347 = vsel %vm1325, %v3333, -inf
    %3348 = vmax.xlane.f32.xlu0 %v3347
    %v3349 = vpop.xlane.xlu0 %3348
    %v3350 = vsel %vm1325, %v3334, -inf
    %3351 = vmax.xlane.f32.xlu0 %v3350
    %v3352 = vpop.xlane.xlu0 %3351
    %v3353 = vsel %vm1325, %v3335, -inf
    %3354 = vmax.xlane.f32.xlu0 %v3353
    %v3355 = vpop.xlane.xlu0 %3354
    %v3356 = vsel %vm1325, %v3336, -inf
    %3357 = vmax.xlane.f32.xlu0 %v3356
    %v3358 = vpop.xlane.xlu0 %3357
    %v3359 = vsel %vm1325, %v3337, -inf
    %3360 = vmax.xlane.f32.xlu0 %v3359
    %v3361 = vpop.xlane.xlu0 %3360
    %v3362 = vsub.f32 %v3330, %v3340
    %v3363 = vsub.f32 %v3331, %v3343
    %v3364 = vsub.f32 %v3332, %v3346
    %v3365 = vsub.f32 %v3333, %v3349
    %v3366 = vsub.f32 %v3334, %v3352
    %v3367 = vsub.f32 %v3335, %v3355
    %v3368 = vsub.f32 %v3336, %v3358
    %v3369 = vsub.f32 %v3337, %v3361
    %v3370 = vmul.f32 %v3362, 1.442695
    %v3371 = vpow.pop %v3370
    %v3372 = vmul.f32 %v3363, 1.442695
    %v3373 = vpow.pop %v3372
    %v3374 = vmul.f32 %v3364, 1.442695
    %v3375 = vpow.pop %v3374
    %v3376 = vmul.f32 %v3365, 1.442695
    %v3377 = vpow.pop %v3376
    %v3378 = vmul.f32 %v3366, 1.442695
    %v3379 = vpow.pop %v3378
    %v3380 = vmul.f32 %v3367, 1.442695
    %v3381 = vpow.pop %v3380
    %v3382 = vmul.f32 %v3368, 1.442695
    %v3383 = vpow.pop %v3382
    %v3384 = vmul.f32 %v3369, 1.442695
    %v3385 = vpow.pop %v3384
    %v3386 = vsel %vm1325, %v3371, 0.0
    %3387 = vadd.xlane.f32.xlu0 %v3386
    %v3388 = vpop.xlane.xlu0 %3387
    %v3389 = vsel %vm1325, %v3373, 0.0
    %3390 = vadd.xlane.f32.xlu0 %v3389
    %v3391 = vpop.xlane.xlu0 %3390
    %v3392 = vsel %vm1325, %v3375, 0.0
    %3393 = vadd.xlane.f32.xlu0 %v3392
    %v3394 = vpop.xlane.xlu0 %3393
    %v3395 = vsel %vm1325, %v3377, 0.0
    %3396 = vadd.xlane.f32.xlu0 %v3395
    %v3397 = vpop.xlane.xlu0 %3396
    %v3398 = vsel %vm1325, %v3379, 0.0
    %3399 = vadd.xlane.f32.xlu0 %v3398
    %v3400 = vpop.xlane.xlu0 %3399
    %v3401 = vsel %vm1325, %v3381, 0.0
    %3402 = vadd.xlane.f32.xlu0 %v3401
    %v3403 = vpop.xlane.xlu0 %3402
    %v3404 = vsel %vm1325, %v3383, 0.0
    %3405 = vadd.xlane.f32.xlu0 %v3404
    %v3406 = vpop.xlane.xlu0 %3405
    %v3407 = vsel %vm1325, %v3385, 0.0
    %3408 = vadd.xlane.f32.xlu0 %v3407
    %v3409 = vpop.xlane.xlu0 %3408
    %v3410 = vrcp.pop %v3388
    %v3411 = vrcp.pop %v3391
    %v3412 = vrcp.pop %v3394
    %v3413 = vrcp.pop %v3397
    %v3414 = vrcp.pop %v3400
    %v3415 = vrcp.pop %v3403
    %v3416 = vrcp.pop %v3406
    %v3417 = vrcp.pop %v3409
    %v3418 = vmul.f32 %v3371, %v3410
    %v3419 = vmul.f32 %v3373, %v3411
    %v3420 = vmul.f32 %v3375, %v3412
    %v3421 = vmul.f32 %v3377, %v3413
    %v3422 = vmul.f32 %v3379, %v3414
    %v3423 = vmul.f32 %v3381, %v3415
    %v3424 = vmul.f32 %v3383, %v3416
    %v3425 = vmul.f32 %v3385, %v3417
    %v3427 = vsel %vm1325, %v3418, 0
    %v3430 = vsel %vm1325, %v3419, 0
    %3432 = vmatprep.subr.mxu0 0.0
    %3433 = vmatpush1.msra.mxu0 0.0
    %3434 = vmatprep.subr.mxu0 0.0
    %3435 = vmatpush1.msra.mxu0 0.0
    %3436 = vmatprep.subr.mxu0 0.0
    %3437 = vmatpush1.msra.mxu0 0.0
    %3438 = vmatprep.subr.mxu0 0.0
    %3439 = vmatpush1.msra.mxu0 0.0
    %3440 = vmatprep.subr.mxu0 0.0
    %3441 = vmatpush1.msra.mxu0 0.0
    %3442 = vmatprep.subr.mxu0 0.0
    %3443 = vmatpush1.msra.mxu0 0.0
    %3444 = vmatprep.subr.mxu0 0.0
    %3445 = vmatpush1.msra.mxu0 0.0
    %3446 = vmatprep.subr.mxu0 0.0
    %3447 = vmatpush1.msra.mxu0 0.0
    %3448 = vmatprep.subr.mxu0 0.0
    %3449 = vmatpush1.msra.mxu0 0.0
    %3450 = vmatprep.subr.mxu0 0.0
    %3451 = vmatpush1.msra.mxu0 0.0
    %3452 = vmatprep.subr.mxu0 0.0
    %3453 = vmatpush1.msra.mxu0 0.0
    %3454 = vmatprep.subr.mxu0 0.0
    %3455 = vmatpush1.msra.mxu0 0.0
    %3456 = vmatprep.subr.mxu0 0.0
    %3457 = vmatpush1.msra.mxu0 0.0
    %3458 = vmatprep.subr.mxu0 0.0
    %3459 = vmatpush1.msra.mxu0 0.0
    %3460 = vmatprep.subr.mxu0 0.0
    %3461 = vmatpush1.msra.mxu0 %v2773
    %3462 = vmatprep.subr.mxu0 0.0
    %3463 = vmatpush1.msra.mxu0 %v2770
    %3464 = vmatprep.subr.mxu0 0.0
    %3465 = vmatpush2.msra.mxu0 0.0
    %3466 = vmatprep.subr.mxu0 0.0
    %3467 = vmatpush2.msra.mxu0 0.0
    %3468 = vmatprep.subr.mxu0 0.0
    %3469 = vmatpush2.msra.mxu0 0.0
    %3470 = vmatprep.subr.mxu0 0.0
    %3471 = vmatpush2.msra.mxu0 0.0
    %3472 = vmatprep.subr.mxu0 0.0
    %3473 = vmatpush2.msra.mxu0 0.0
    %3474 = vmatprep.subr.mxu0 0.0
    %3475 = vmatpush2.msra.mxu0 0.0
    %3476 = vmatprep.subr.mxu0 0.0
    %3477 = vmatpush2.msra.mxu0 0.0
    %3478 = vmatprep.subr.mxu0 0.0
    %3479 = vmatpush2.msra.mxu0 0.0
    %3480 = vmatprep.subr.mxu0 0.0
    %3481 = vmatpush2.msra.mxu0 0.0
    %3482 = vmatprep.subr.mxu0 0.0
    %3483 = vmatpush2.msra.mxu0 0.0
    %3484 = vmatprep.subr.mxu0 0.0
    %3485 = vmatpush2.msra.mxu0 0.0
    %3486 = vmatprep.subr.mxu0 0.0
    %3487 = vmatpush2.msra.mxu0 0.0
    %3488 = vmatprep.subr.mxu0 0.0
    %3489 = vmatpush2.msra.mxu0 0.0
    %3490 = vmatprep.subr.mxu0 0.0
    %3491 = vmatpush2.msra.mxu0 0.0
    %3492 = vmatprep.subr.mxu0 0.0
    %3493 = vmatpush2.msra.mxu0 0.0
    %3494 = vmatprep.subr.mxu0 0.0
    %3495 = vmatpush2.msra.mxu0 0.0
    %3496 = vmatprep.mubr.f32.mxu0 0.0
    %3497 = vmatmul.mubr.f32.gmra.mxu0 %v3427
    %v3498 = vpop.f32.mrf.mxu0
    %v3499 = vadd.f32 0.0, %v3498
    %v3500 = vpop.f32.mrf.mxu0
    %3501 = vmatprep.mubr.f32.mxu0 0.0
    %3502 = vmatmul.mubr.f32.gmra.mxu0 %v3430
    %v3503 = vpop.f32.mrf.mxu0
    %v3504 = vadd.f32 0.0, %v3503
    %v3505 = vpop.f32.mrf.mxu0
    %3506 = vdwg.mxu0
    %v3508 = vsel %vm1325, %v3420, 0
    %v3511 = vsel %vm1325, %v3421, 0
    %3513 = vmatprep.subr.mxu0 0.0
    %3514 = vmatpush1.msra.mxu0 0.0
    %3515 = vmatprep.subr.mxu0 0.0
    %3516 = vmatpush1.msra.mxu0 0.0
    %3517 = vmatprep.subr.mxu0 0.0
    %3518 = vmatpush1.msra.mxu0 0.0
    %3519 = vmatprep.subr.mxu0 0.0
    %3520 = vmatpush1.msra.mxu0 0.0
    %3521 = vmatprep.subr.mxu0 0.0
    %3522 = vmatpush1.msra.mxu0 0.0
    %3523 = vmatprep.subr.mxu0 0.0
    %3524 = vmatpush1.msra.mxu0 0.0
    %3525 = vmatprep.subr.mxu0 0.0
    %3526 = vmatpush1.msra.mxu0 0.0
    %3527 = vmatprep.subr.mxu0 0.0
    %3528 = vmatpush1.msra.mxu0 0.0
    %3529 = vmatprep.subr.mxu0 0.0
    %3530 = vmatpush1.msra.mxu0 0.0
    %3531 = vmatprep.subr.mxu0 0.0
    %3532 = vmatpush1.msra.mxu0 0.0
    %3533 = vmatprep.subr.mxu0 0.0
    %3534 = vmatpush1.msra.mxu0 0.0
    %3535 = vmatprep.subr.mxu0 0.0
    %3536 = vmatpush1.msra.mxu0 0.0
    %3537 = vmatprep.subr.mxu0 0.0
    %3538 = vmatpush1.msra.mxu0 0.0
    %3539 = vmatprep.subr.mxu0 0.0
    %3540 = vmatpush1.msra.mxu0 0.0
    %3541 = vmatprep.subr.mxu0 0.0
    %3542 = vmatpush1.msra.mxu0 %v2839
    %3543 = vmatprep.subr.mxu0 0.0
    %3544 = vmatpush1.msra.mxu0 %v2836
    %3545 = vmatprep.subr.mxu0 0.0
    %3546 = vmatpush2.msra.mxu0 0.0
    %3547 = vmatprep.subr.mxu0 0.0
    %3548 = vmatpush2.msra.mxu0 0.0
    %3549 = vmatprep.subr.mxu0 0.0
    %3550 = vmatpush2.msra.mxu0 0.0
    %3551 = vmatprep.subr.mxu0 0.0
    %3552 = vmatpush2.msra.mxu0 0.0
    %3553 = vmatprep.subr.mxu0 0.0
    %3554 = vmatpush2.msra.mxu0 0.0
    %3555 = vmatprep.subr.mxu0 0.0
    %3556 = vmatpush2.msra.mxu0 0.0
    %3557 = vmatprep.subr.mxu0 0.0
    %3558 = vmatpush2.msra.mxu0 0.0
    %3559 = vmatprep.subr.mxu0 0.0
    %3560 = vmatpush2.msra.mxu0 0.0
    %3561 = vmatprep.subr.mxu0 0.0
    %3562 = vmatpush2.msra.mxu0 0.0
    %3563 = vmatprep.subr.mxu0 0.0
    %3564 = vmatpush2.msra.mxu0 0.0
    %3565 = vmatprep.subr.mxu0 0.0
    %3566 = vmatpush2.msra.mxu0 0.0
    %3567 = vmatprep.subr.mxu0 0.0
    %3568 = vmatpush2.msra.mxu0 0.0
    %3569 = vmatprep.subr.mxu0 0.0
    %3570 = vmatpush2.msra.mxu0 0.0
    %3571 = vmatprep.subr.mxu0 0.0
    %3572 = vmatpush2.msra.mxu0 0.0
    %3573 = vmatprep.subr.mxu0 0.0
    %3574 = vmatpush2.msra.mxu0 0.0
    %3575 = vmatprep.subr.mxu0 0.0
    %3576 = vmatpush2.msra.mxu0 0.0
    %3577 = vmatprep.mubr.f32.mxu0 0.0
    %3578 = vmatmul.mubr.f32.gmra.mxu0 %v3508
    %v3579 = vpop.f32.mrf.mxu0
    %v3580 = vadd.f32 0.0, %v3579
    %v3581 = vpop.f32.mrf.mxu0
    %3582 = vmatprep.mubr.f32.mxu0 0.0
    %3583 = vmatmul.mubr.f32.gmra.mxu0 %v3511
    %v3584 = vpop.f32.mrf.mxu0
    %v3585 = vadd.f32 0.0, %v3584
    %v3586 = vpop.f32.mrf.mxu0
    %3587 = vdwg.mxu0
    %v3589 = vsel %vm1325, %v3422, 0
    %v3592 = vsel %vm1325, %v3423, 0
    %3594 = vmatprep.subr.mxu0 0.0
    %3595 = vmatpush1.msra.mxu0 0.0
    %3596 = vmatprep.subr.mxu0 0.0
    %3597 = vmatpush1.msra.mxu0 0.0
    %3598 = vmatprep.subr.mxu0 0.0
    %3599 = vmatpush1.msra.mxu0 0.0
    %3600 = vmatprep.subr.mxu0 0.0
    %3601 = vmatpush1.msra.mxu0 0.0
    %3602 = vmatprep.subr.mxu0 0.0
    %3603 = vmatpush1.msra.mxu0 0.0
    %3604 = vmatprep.subr.mxu0 0.0
    %3605 = vmatpush1.msra.mxu0 0.0
    %3606 = vmatprep.subr.mxu0 0.0
    %3607 = vmatpush1.msra.mxu0 0.0
    %3608 = vmatprep.subr.mxu0 0.0
    %3609 = vmatpush1.msra.mxu0 0.0
    %3610 = vmatprep.subr.mxu0 0.0
    %3611 = vmatpush1.msra.mxu0 0.0
    %3612 = vmatprep.subr.mxu0 0.0
    %3613 = vmatpush1.msra.mxu0 0.0
    %3614 = vmatprep.subr.mxu0 0.0
    %3615 = vmatpush1.msra.mxu0 0.0
    %3616 = vmatprep.subr.mxu0 0.0
    %3617 = vmatpush1.msra.mxu0 0.0
    %3618 = vmatprep.subr.mxu0 0.0
    %3619 = vmatpush1.msra.mxu0 0.0
    %3620 = vmatprep.subr.mxu0 0.0
    %3621 = vmatpush1.msra.mxu0 0.0
    %3622 = vmatprep.subr.mxu0 0.0
    %3623 = vmatpush1.msra.mxu0 %v2905
    %3624 = vmatprep.subr.mxu0 0.0
    %3625 = vmatpush1.msra.mxu0 %v2902
    %3626 = vmatprep.subr.mxu0 0.0
    %3627 = vmatpush2.msra.mxu0 0.0
    %3628 = vmatprep.subr.mxu0 0.0
    %3629 = vmatpush2.msra.mxu0 0.0
    %3630 = vmatprep.subr.mxu0 0.0
    %3631 = vmatpush2.msra.mxu0 0.0
    %3632 = vmatprep.subr.mxu0 0.0
    %3633 = vmatpush2.msra.mxu0 0.0
    %3634 = vmatprep.subr.mxu0 0.0
    %3635 = vmatpush2.msra.mxu0 0.0
    %3636 = vmatprep.subr.mxu0 0.0
    %3637 = vmatpush2.msra.mxu0 0.0
    %3638 = vmatprep.subr.mxu0 0.0
    %3639 = vmatpush2.msra.mxu0 0.0
    %3640 = vmatprep.subr.mxu0 0.0
    %3641 = vmatpush2.msra.mxu0 0.0
    %3642 = vmatprep.subr.mxu0 0.0
    %3643 = vmatpush2.msra.mxu0 0.0
    %3644 = vmatprep.subr.mxu0 0.0
    %3645 = vmatpush2.msra.mxu0 0.0
    %3646 = vmatprep.subr.mxu0 0.0
    %3647 = vmatpush2.msra.mxu0 0.0
    %3648 = vmatprep.subr.mxu0 0.0
    %3649 = vmatpush2.msra.mxu0 0.0
    %3650 = vmatprep.subr.mxu0 0.0
    %3651 = vmatpush2.msra.mxu0 0.0
    %3652 = vmatprep.subr.mxu0 0.0
    %3653 = vmatpush2.msra.mxu0 0.0
    %3654 = vmatprep.subr.mxu0 0.0
    %3655 = vmatpush2.msra.mxu0 0.0
    %3656 = vmatprep.subr.mxu0 0.0
    %3657 = vmatpush2.msra.mxu0 0.0
    %3658 = vmatprep.mubr.f32.mxu0 0.0
    %3659 = vmatmul.mubr.f32.gmra.mxu0 %v3589
    %v3660 = vpop.f32.mrf.mxu0
    %v3661 = vadd.f32 0.0, %v3660
    %v3662 = vpop.f32.mrf.mxu0
    %3663 = vmatprep.mubr.f32.mxu0 0.0
    %3664 = vmatmul.mubr.f32.gmra.mxu0 %v3592
    %v3665 = vpop.f32.mrf.mxu0
    %v3666 = vadd.f32 0.0, %v3665
    %v3667 = vpop.f32.mrf.mxu0
    %3668 = vdwg.mxu0
    %v3670 = vsel %vm1325, %v3424, 0
    %v3673 = vsel %vm1325, %v3425, 0
    %3675 = vmatprep.subr.mxu0 0.0
    %3676 = vmatpush1.msra.mxu0 0.0
    %3677 = vmatprep.subr.mxu0 0.0
    %3678 = vmatpush1.msra.mxu0 0.0
    %3679 = vmatprep.subr.mxu0 0.0
    %3680 = vmatpush1.msra.mxu0 0.0
    %3681 = vmatprep.subr.mxu0 0.0
    %3682 = vmatpush1.msra.mxu0 0.0
    %3683 = vmatprep.subr.mxu0 0.0
    %3684 = vmatpush1.msra.mxu0 0.0
    %3685 = vmatprep.subr.mxu0 0.0
    %3686 = vmatpush1.msra.mxu0 0.0
    %3687 = vmatprep.subr.mxu0 0.0
    %3688 = vmatpush1.msra.mxu0 0.0
    %3689 = vmatprep.subr.mxu0 0.0
    %3690 = vmatpush1.msra.mxu0 0.0
    %3691 = vmatprep.subr.mxu0 0.0
    %3692 = vmatpush1.msra.mxu0 0.0
    %3693 = vmatprep.subr.mxu0 0.0
    %3694 = vmatpush1.msra.mxu0 0.0
    %3695 = vmatprep.subr.mxu0 0.0
    %3696 = vmatpush1.msra.mxu0 0.0
    %3697 = vmatprep.subr.mxu0 0.0
    %3698 = vmatpush1.msra.mxu0 0.0
    %3699 = vmatprep.subr.mxu0 0.0
    %3700 = vmatpush1.msra.mxu0 0.0
    %3701 = vmatprep.subr.mxu0 0.0
    %3702 = vmatpush1.msra.mxu0 0.0
    %3703 = vmatprep.subr.mxu0 0.0
    %3704 = vmatpush1.msra.mxu0 %v2971
    %3705 = vmatprep.subr.mxu0 0.0
    %3706 = vmatpush1.msra.mxu0 %v2968
    %3707 = vmatprep.subr.mxu0 0.0
    %3708 = vmatpush2.msra.mxu0 0.0
    %3709 = vmatprep.subr.mxu0 0.0
    %3710 = vmatpush2.msra.mxu0 0.0
    %3711 = vmatprep.subr.mxu0 0.0
    %3712 = vmatpush2.msra.mxu0 0.0
    %3713 = vmatprep.subr.mxu0 0.0
    %3714 = vmatpush2.msra.mxu0 0.0
    %3715 = vmatprep.subr.mxu0 0.0
    %3716 = vmatpush2.msra.mxu0 0.0
    %3717 = vmatprep.subr.mxu0 0.0
    %3718 = vmatpush2.msra.mxu0 0.0
    %3719 = vmatprep.subr.mxu0 0.0
    %3720 = vmatpush2.msra.mxu0 0.0
    %3721 = vmatprep.subr.mxu0 0.0
    %3722 = vmatpush2.msra.mxu0 0.0
    %3723 = vmatprep.subr.mxu0 0.0
    %3724 = vmatpush2.msra.mxu0 0.0
    %3725 = vmatprep.subr.mxu0 0.0
    %3726 = vmatpush2.msra.mxu0 0.0
    %3727 = vmatprep.subr.mxu0 0.0
    %3728 = vmatpush2.msra.mxu0 0.0
    %3729 = vmatprep.subr.mxu0 0.0
    %3730 = vmatpush2.msra.mxu0 0.0
    %3731 = vmatprep.subr.mxu0 0.0
    %3732 = vmatpush2.msra.mxu0 0.0
    %3733 = vmatprep.subr.mxu0 0.0
    %3734 = vmatpush2.msra.mxu0 0.0
    %3735 = vmatprep.subr.mxu0 0.0
    %3736 = vmatpush2.msra.mxu0 0.0
    %3737 = vmatprep.subr.mxu0 0.0
    %3738 = vmatpush2.msra.mxu0 0.0
    %3739 = vmatprep.mubr.f32.mxu0 0.0
    %3740 = vmatmul.mubr.f32.gmra.mxu0 %v3670
    %v3741 = vpop.f32.mrf.mxu0
    %v3742 = vadd.f32 0.0, %v3741
    %v3743 = vpop.f32.mrf.mxu0
    %3744 = vmatprep.mubr.f32.mxu0 0.0
    %3745 = vmatmul.mubr.f32.gmra.mxu0 %v3673
    %v3746 = vpop.f32.mrf.mxu0
    %v3747 = vadd.f32 0.0, %v3746
    %v3748 = vpop.f32.mrf.mxu0
    %3749 = vdwg.mxu0
    %s3750 = scalar_lea.vmem %s12, 1
    %v3751 = vld [vmem:[%s3750] sm:$0x1]
    %v3752 = vpack.c.bf16 %v3504, %v3499
    %s3753 = scalar_lea.vmem %s11, 16
    %v3754 = vld [vmem:[%s3753] sm:$0xf]
    %v3756 = vsel %vm960, %v3752, 0
    %v3759 = vsel %vm96, %v3754, 0
    %3761 = vmatprep.subr.bf16.mxu0 0
    %3762 = vmatpush1.bf16.msra.mxu0 0
    %3763 = vmatprep.subr.bf16.mxu0 0
    %3764 = vmatpush1.bf16.msra.mxu0 0
    %3765 = vmatprep.subr.bf16.mxu0 0
    %3766 = vmatpush1.bf16.msra.mxu0 0
    %3767 = vmatprep.subr.bf16.mxu0 0
    %3768 = vmatpush1.bf16.msra.mxu0 0
    %3769 = vmatprep.subr.bf16.mxu0 0
    %3770 = vmatpush1.bf16.msra.mxu0 0
    %3771 = vmatprep.subr.bf16.mxu0 0
    %3772 = vmatpush1.bf16.msra.mxu0 0
    %3773 = vmatprep.subr.bf16.mxu0 0
    %3774 = vmatpush1.bf16.msra.mxu0 0
    %3775 = vmatprep.subr.bf16.mxu0 0
    %3776 = vmatpush1.bf16.msra.mxu0 %v3759
    %3777 = vmatprep.subr.bf16.mxu0 0
    %3778 = vmatpush2.bf16.msra.mxu0 0
    %3779 = vmatprep.subr.bf16.mxu0 0
    %3780 = vmatpush2.bf16.msra.mxu0 0
    %3781 = vmatprep.subr.bf16.mxu0 0
    %3782 = vmatpush2.bf16.msra.mxu0 0
    %3783 = vmatprep.subr.bf16.mxu0 0
    %3784 = vmatpush2.bf16.msra.mxu0 0
    %3785 = vmatprep.subr.bf16.mxu0 0
    %3786 = vmatpush2.bf16.msra.mxu0 0
    %3787 = vmatprep.subr.bf16.mxu0 0
    %3788 = vmatpush2.bf16.msra.mxu0 0
    %3789 = vmatprep.subr.bf16.mxu0 0
    %3790 = vmatpush2.bf16.msra.mxu0 0
    %3791 = vmatprep.subr.bf16.mxu0 0
    %3792 = vmatpush2.bf16.msra.mxu0 0
    %3793 = vmatprep.mubr.bf16.mxu0 0
    %3794 = vmatmul.mubr.bf16.gmra.mxu0 %v3756
    %v3795 = vpop.f32.mrf.mxu0
    %v3796 = vadd.f32 0.0, %v3795
    %v3797 = vpop.f32.mrf.mxu0
    %v3798 = vpop.f32.mrf.mxu0
    %v3799 = vadd.f32 0.0, %v3798
    %v3800 = vpop.f32.mrf.mxu0
    %3801 = vdwg.mxu0
    %v3803 = vlaneseq
    %v3804 = vshrl.u32 %v3803, 7
    %v3805 = vsub.s32 0, %v3804
    %v3806 = vrot.slane %v3751, %v3805
    %v3808 = vadd.f32 %v3806, %v3796
    %v3809 = vadd.f32 %v3806, %v3799
    %v3810 = vpack.c.bf16 %v3585, %v3580
    %s3811 = scalar_lea.vmem %s11, 20
    %v3812 = vld [vmem:[%s3811] sm:$0xf]
    %v3814 = vsel %vm960, %v3810, 0
    %v3817 = vsel %vm96, %v3812, 0
    %3819 = vmatprep.subr.bf16.mxu0 0
    %3820 = vmatpush1.bf16.msra.mxu0 0
    %3821 = vmatprep.subr.bf16.mxu0 0
    %3822 = vmatpush1.bf16.msra.mxu0 0
    %3823 = vmatprep.subr.bf16.mxu0 0
    %3824 = vmatpush1.bf16.msra.mxu0 0
    %3825 = vmatprep.subr.bf16.mxu0 0
    %3826 = vmatpush1.bf16.msra.mxu0 0
    %3827 = vmatprep.subr.bf16.mxu0 0
    %3828 = vmatpush1.bf16.msra.mxu0 0
    %3829 = vmatprep.subr.bf16.mxu0 0
    %3830 = vmatpush1.bf16.msra.mxu0 0
    %3831 = vmatprep.subr.bf16.mxu0 0
    %3832 = vmatpush1.bf16.msra.mxu0 0
    %3833 = vmatprep.subr.bf16.mxu0 0
    %3834 = vmatpush1.bf16.msra.mxu0 %v3817
    %3835 = vmatprep.subr.bf16.mxu0 0
    %3836 = vmatpush2.bf16.msra.mxu0 0
    %3837 = vmatprep.subr.bf16.mxu0 0
    %3838 = vmatpush2.bf16.msra.mxu0 0
    %3839 = vmatprep.subr.bf16.mxu0 0
    %3840 = vmatpush2.bf16.msra.mxu0 0
    %3841 = vmatprep.subr.bf16.mxu0 0
    %3842 = vmatpush2.bf16.msra.mxu0 0
    %3843 = vmatprep.subr.bf16.mxu0 0
    %3844 = vmatpush2.bf16.msra.mxu0 0
    %3845 = vmatprep.subr.bf16.mxu0 0
    %3846 = vmatpush2.bf16.msra.mxu0 0
    %3847 = vmatprep.subr.bf16.mxu0 0
    %3848 = vmatpush2.bf16.msra.mxu0 0
    %3849 = vmatprep.subr.bf16.mxu0 0
    %3850 = vmatpush2.bf16.msra.mxu0 0
    %3851 = vmatprep.mubr.bf16.mxu0 0
    %3852 = vmatmul.mubr.bf16.gmra.mxu0 %v3814
    %v3853 = vpop.f32.mrf.mxu0
    %v3854 = vadd.f32 0.0, %v3853
    %v3855 = vpop.f32.mrf.mxu0
    %v3856 = vpop.f32.mrf.mxu0
    %v3857 = vadd.f32 0.0, %v3856
    %v3858 = vpop.f32.mrf.mxu0
    %3859 = vdwg.mxu0
    %v3860 = vadd.f32 %v3808, %v3854
    %v3861 = vadd.f32 %v3809, %v3857
    %v3862 = vpack.c.bf16 %v3666, %v3661
    %s3863 = scalar_lea.vmem %s11, 24
    %v3864 = vld [vmem:[%s3863] sm:$0xf]
    %v3866 = vsel %vm960, %v3862, 0
    %v3869 = vsel %vm96, %v3864, 0
    %3871 = vmatprep.subr.bf16.mxu0 0
    %3872 = vmatpush1.bf16.msra.mxu0 0
    %3873 = vmatprep.subr.bf16.mxu0 0
    %3874 = vmatpush1.bf16.msra.mxu0 0
    %3875 = vmatprep.subr.bf16.mxu0 0
    %3876 = vmatpush1.bf16.msra.mxu0 0
    %3877 = vmatprep.subr.bf16.mxu0 0
    %3878 = vmatpush1.bf16.msra.mxu0 0
    %3879 = vmatprep.subr.bf16.mxu0 0
    %3880 = vmatpush1.bf16.msra.mxu0 0
    %3881 = vmatprep.subr.bf16.mxu0 0
    %3882 = vmatpush1.bf16.msra.mxu0 0
    %3883 = vmatprep.subr.bf16.mxu0 0
    %3884 = vmatpush1.bf16.msra.mxu0 0
    %3885 = vmatprep.subr.bf16.mxu0 0
    %3886 = vmatpush1.bf16.msra.mxu0 %v3869
    %3887 = vmatprep.subr.bf16.mxu0 0
    %3888 = vmatpush2.bf16.msra.mxu0 0
    %3889 = vmatprep.subr.bf16.mxu0 0
    %3890 = vmatpush2.bf16.msra.mxu0 0
    %3891 = vmatprep.subr.bf16.mxu0 0
    %3892 = vmatpush2.bf16.msra.mxu0 0
    %3893 = vmatprep.subr.bf16.mxu0 0
    %3894 = vmatpush2.bf16.msra.mxu0 0
    %3895 = vmatprep.subr.bf16.mxu0 0
    %3896 = vmatpush2.bf16.msra.mxu0 0
    %3897 = vmatprep.subr.bf16.mxu0 0
    %3898 = vmatpush2.bf16.msra.mxu0 0
    %3899 = vmatprep.subr.bf16.mxu0 0
    %3900 = vmatpush2.bf16.msra.mxu0 0
    %3901 = vmatprep.subr.bf16.mxu0 0
    %3902 = vmatpush2.bf16.msra.mxu0 0
    %3903 = vmatprep.mubr.bf16.mxu0 0
    %3904 = vmatmul.mubr.bf16.gmra.mxu0 %v3866
    %v3905 = vpop.f32.mrf.mxu0
    %v3906 = vadd.f32 0.0, %v3905
    %v3907 = vpop.f32.mrf.mxu0
    %v3908 = vpop.f32.mrf.mxu0
    %v3909 = vadd.f32 0.0, %v3908
    %v3910 = vpop.f32.mrf.mxu0
    %3911 = vdwg.mxu0
    %v3912 = vadd.f32 %v3860, %v3906
    %v3913 = vadd.f32 %v3861, %v3909
    %v3914 = vpack.c.bf16 %v3747, %v3742
    %s3915 = scalar_lea.vmem %s11, 28
    %v3916 = vld [vmem:[%s3915] sm:$0xf]
    %v3918 = vsel %vm960, %v3914, 0
    %v3921 = vsel %vm96, %v3916, 0
    %3923 = vmatprep.subr.bf16.mxu0 0
    %3924 = vmatpush1.bf16.msra.mxu0 0
    %3925 = vmatprep.subr.bf16.mxu0 0
    %3926 = vmatpush1.bf16.msra.mxu0 0
    %3927 = vmatprep.subr.bf16.mxu0 0
    %3928 = vmatpush1.bf16.msra.mxu0 0
    %3929 = vmatprep.subr.bf16.mxu0 0
    %3930 = vmatpush1.bf16.msra.mxu0 0
    %3931 = vmatprep.subr.bf16.mxu0 0
    %3932 = vmatpush1.bf16.msra.mxu0 0
    %3933 = vmatprep.subr.bf16.mxu0 0
    %3934 = vmatpush1.bf16.msra.mxu0 0
    %3935 = vmatprep.subr.bf16.mxu0 0
    %3936 = vmatpush1.bf16.msra.mxu0 0
    %3937 = vmatprep.subr.bf16.mxu0 0
    %3938 = vmatpush1.bf16.msra.mxu0 %v3921
    %3939 = vmatprep.subr.bf16.mxu0 0
    %3940 = vmatpush2.bf16.msra.mxu0 0
    %3941 = vmatprep.subr.bf16.mxu0 0
    %3942 = vmatpush2.bf16.msra.mxu0 0
    %3943 = vmatprep.subr.bf16.mxu0 0
    %3944 = vmatpush2.bf16.msra.mxu0 0
    %3945 = vmatprep.subr.bf16.mxu0 0
    %3946 = vmatpush2.bf16.msra.mxu0 0
    %3947 = vmatprep.subr.bf16.mxu0 0
    %3948 = vmatpush2.bf16.msra.mxu0 0
    %3949 = vmatprep.subr.bf16.mxu0 0
    %3950 = vmatpush2.bf16.msra.mxu0 0
    %3951 = vmatprep.subr.bf16.mxu0 0
    %3952 = vmatpush2.bf16.msra.mxu0 0
    %3953 = vmatprep.subr.bf16.mxu0 0
    %3954 = vmatpush2.bf16.msra.mxu0 0
    %3955 = vmatprep.mubr.bf16.mxu0 0
    %3956 = vmatmul.mubr.bf16.gmra.mxu0 %v3918
    %v3957 = vpop.f32.mrf.mxu0
    %v3958 = vadd.f32 0.0, %v3957
    %v3959 = vpop.f32.mrf.mxu0
    %v3960 = vpop.f32.mrf.mxu0
    %v3961 = vadd.f32 0.0, %v3960
    %v3962 = vpop.f32.mrf.mxu0
    %3963 = vdwg.mxu0
    %v3964 = vadd.f32 %v3912, %v3958
    %v3965 = vadd.f32 %v3913, %v3961
    %v3966 = vadd.f32 %v2150, %v3964
    %v3967 = vadd.f32 %v2151, %v3965
    %s3968 = scalar_lea.vmem %s13, 1
    %v3969 = vld [vmem:[%s3968] sm:$0x1]
    %v3970 = vmul.f32 %v3966, %v3966
    %v3971 = vmul.f32 %v3967, %v3967
    %v3972 = vsel %vm146, %v3970, 0.0
    %3973 = vadd.xlane.f32.xlu0 %v3972
    %v3974 = vpop.xlane.xlu0 %3973
    %v3975 = vsel %vm146, %v3971, 0.0
    %3976 = vadd.xlane.f32.xlu0 %v3975
    %v3977 = vpop.xlane.xlu0 %3976
    %v3978 = vmul.f32 %v3974, %v153
    %v3979 = vmul.f32 %v3977, %v153
    %v3980 = vadd.f32 %v3978, 1e-05
    %v3981 = vadd.f32 %v3979, 1e-05
    %v3982 = vrsqrt.pop %v3980
    %v3983 = vrsqrt.pop %v3981
    %v3984 = vmul.f32 %v3966, %v3982
    %v3985 = vmul.f32 %v3967, %v3983
    %v3987 = vlaneseq
    %v3988 = vshrl.u32 %v3987, 7
    %v3989 = vsub.s32 0, %v3988
    %v3990 = vrot.slane %v3969, %v3989
    %v3992 = vmul.f32 %v3984, %v3990
    %v3993 = vmul.f32 %v3985, %v3990
    %v3994 = vpack.c.bf16 %v3993, %v3992
    %s3995 = scalar_lea.vmem %s14, 16
    %v3996 = vld [vmem:[%s3995] sm:$0xf]
    %v3997 = vld [vmem:[%s3995 + $0x4] sm:$0xf]
    %v3998 = vld [vmem:[%s3995 + $0x8] sm:$0xf]
    %v3999 = vld [vmem:[%s3995 + $0xc] sm:$0xf]
    %s4000 = scalar_lea.vmem %s15, 1
    %v4001 = vld [vmem:[%s4000] sm:$0x1]
    %v4003 = vlaneseq
    %v4004 = vshrl.u32 %v4003, 7
    %v4005 = vsub.s32 0, %v4004
    %v4006 = vrot.slane %v4001, %v4005
    %v4012 = vunpack.c.l.b16 %v3996
    %v4013 = vunpack.c.l.b16 %v3997
    %v4014 = vunpack.c.l.b16 %v3998
    %v4015 = vunpack.c.l.b16 %v3999
    %v4016 = vpack.c.b16 %v4013, %v4012
    %v4017 = vpack.c.b16 %v4015, %v4014
    %v4021 = vsel %vm146, %v3994, 0
    %4023 = vmatprep.subr.bf16.mxu0 0
    %4024 = vmatpush1.bf16.msra.mxu0 0
    %4025 = vmatprep.subr.bf16.mxu0 0
    %4026 = vmatpush1.bf16.msra.mxu0 0
    %4027 = vmatprep.subr.bf16.mxu0 0
    %4028 = vmatpush1.bf16.msra.mxu0 0
    %4029 = vmatprep.subr.bf16.mxu0 0
    %4030 = vmatpush1.bf16.msra.mxu0 0
    %4031 = vmatprep.subr.bf16.mxu0 0
    %4032 = vmatpush1.bf16.msra.mxu0 0
    %4033 = vmatprep.subr.bf16.mxu0 0
    %4034 = vmatpush1.bf16.msra.mxu0 0
    %4035 = vmatprep.subr.bf16.mxu0 0
    %4036 = vmatpush1.bf16.msra.mxu0 %v4017
    %4037 = vmatprep.subr.bf16.mxu0 0
    %4038 = vmatpush1.bf16.msra.mxu0 %v4016
    %4039 = vmatprep.subr.bf16.mxu0 0
    %4040 = vmatpush2.bf16.msra.mxu0 0
    %4041 = vmatprep.subr.bf16.mxu0 0
    %4042 = vmatpush2.bf16.msra.mxu0 0
    %4043 = vmatprep.subr.bf16.mxu0 0
    %4044 = vmatpush2.bf16.msra.mxu0 0
    %4045 = vmatprep.subr.bf16.mxu0 0
    %4046 = vmatpush2.bf16.msra.mxu0 0
    %4047 = vmatprep.subr.bf16.mxu0 0
    %4048 = vmatpush2.bf16.msra.mxu0 0
    %4049 = vmatprep.subr.bf16.mxu0 0
    %4050 = vmatpush2.bf16.msra.mxu0 0
    %4051 = vmatprep.subr.bf16.mxu0 0
    %4052 = vmatpush2.bf16.msra.mxu0 0
    %4053 = vmatprep.subr.bf16.mxu0 0
    %4054 = vmatpush2.bf16.msra.mxu0 0
    %4055 = vmatprep.mubr.bf16.mxu0 0
    %4056 = vmatmul.mubr.bf16.gmra.mxu0 %v4021
    %v4057 = vpop.f32.mrf.mxu0
    %v4058 = vadd.f32 %v4006, %v4057
    %v4059 = vpop.f32.mrf.mxu0
    %v4060 = vpop.f32.mrf.mxu0
    %v4061 = vadd.f32 %v4006, %v4060
    %v4062 = vpop.f32.mrf.mxu0
    %4063 = vdwg.mxu0
    %v4064 = vmul.f32 %v4058, %v4058
    %v4065 = vmul.f32 %v4061, %v4061
    %v4066 = vmul.f32 %v4058, %v4064
    %v4067 = vmul.f32 %v4061, %v4065
    %v4068 = vmul.f32 %v4066, 0.044715
    %v4069 = vmul.f32 %v4067, 0.044715
    %v4070 = vadd.f32 %v4058, %v4068
    %v4071 = vadd.f32 %v4061, %v4069
    %v4072 = vmul.f32 %v4070, 0.7978846
    %v4073 = vmul.f32 %v4071, 0.7978846
    %v4074 = vtanh.pop %v4072
    %v4075 = vtanh.pop %v4073
    %v4076 = vadd.f32 %v4074, 1.0
    %v4077 = vadd.f32 %v4075, 1.0
    %v4078 = vmul.f32 %v4076, 0.5
    %v4079 = vmul.f32 %v4077, 0.5
    %v4080 = vmul.f32 %v4058, %v4078
    %v4081 = vmul.f32 %v4061, %v4079
    %v4082 = vpack.c.bf16 %v4081, %v4080
    %s4083 = scalar_lea.vmem %s16, 32
    %v4084 = vld [vmem:[%s4083] sm:$0xf]
    %v4085 = vld [vmem:[%s4083 + $0x4] sm:$0xf]
    %v4086 = vld [vmem:[%s4083 + $0x8] sm:$0xf]
    %v4087 = vld [vmem:[%s4083 + $0xc] sm:$0xf]
    %v4088 = vld [vmem:[%s4083 + $0x10] sm:$0xf]
    %v4089 = vld [vmem:[%s4083 + $0x14] sm:$0xf]
    %v4090 = vld [vmem:[%s4083 + $0x18] sm:$0xf]
    %v4091 = vld [vmem:[%s4083 + $0x1c] sm:$0xf]
    %s4092 = scalar_lea.vmem %s17, 1
    %v4093 = vld [vmem:[%s4092] sm:$0x1]
    %v4095 = vlaneseq
    %v4096 = vshrl.u32 %v4095, 7
    %v4097 = vsub.s32 0, %v4096
    %v4098 = vrot.slane %v4093, %v4097
    %v4108 = vunpack.c.l.b16 %v4084
    %v4109 = vunpack.c.l.b16 %v4085
    %v4110 = vunpack.c.l.b16 %v4086
    %v4111 = vunpack.c.l.b16 %v4087
    %v4112 = vunpack.c.l.b16 %v4088
    %v4113 = vunpack.c.l.b16 %v4089
    %v4114 = vunpack.c.l.b16 %v4090
    %v4115 = vunpack.c.l.b16 %v4091
    %v4116 = vpack.c.b16 %v4109, %v4108
    %v4117 = vpack.c.b16 %v4111, %v4110
    %v4118 = vpack.c.b16 %v4113, %v4112
    %v4119 = vpack.c.b16 %v4115, %v4114
    %v4125 = vsel %vm2105, %v4082, 0
    %4127 = vmatprep.subr.bf16.mxu0 0
    %4128 = vmatpush1.bf16.msra.mxu0 0
    %4129 = vmatprep.subr.bf16.mxu0 0
    %4130 = vmatpush1.bf16.msra.mxu0 0
    %4131 = vmatprep.subr.bf16.mxu0 0
    %4132 = vmatpush1.bf16.msra.mxu0 0
    %4133 = vmatprep.subr.bf16.mxu0 0
    %4134 = vmatpush1.bf16.msra.mxu0 0
    %4135 = vmatprep.subr.bf16.mxu0 0
    %4136 = vmatpush1.bf16.msra.mxu0 %v4119
    %4137 = vmatprep.subr.bf16.mxu0 0
    %4138 = vmatpush1.bf16.msra.mxu0 %v4118
    %4139 = vmatprep.subr.bf16.mxu0 0
    %4140 = vmatpush1.bf16.msra.mxu0 %v4117
    %4141 = vmatprep.subr.bf16.mxu0 0
    %4142 = vmatpush1.bf16.msra.mxu0 %v4116
    %4143 = vmatprep.subr.bf16.mxu0 0
    %4144 = vmatpush2.bf16.msra.mxu0 0
    %4145 = vmatprep.subr.bf16.mxu0 0
    %4146 = vmatpush2.bf16.msra.mxu0 0
    %4147 = vmatprep.subr.bf16.mxu0 0
    %4148 = vmatpush2.bf16.msra.mxu0 0
    %4149 = vmatprep.subr.bf16.mxu0 0
    %4150 = vmatpush2.bf16.msra.mxu0 0
    %4151 = vmatprep.subr.bf16.mxu0 0
    %4152 = vmatpush2.bf16.msra.mxu0 0
    %4153 = vmatprep.subr.bf16.mxu0 0
    %4154 = vmatpush2.bf16.msra.mxu0 0
    %4155 = vmatprep.subr.bf16.mxu0 0
    %4156 = vmatpush2.bf16.msra.mxu0 0
    %4157 = vmatprep.subr.bf16.mxu0 0
    %4158 = vmatpush2.bf16.msra.mxu0 0
    %4159 = vmatprep.mubr.bf16.mxu0 0
    %4160 = vmatmul.mubr.bf16.gmra.mxu0 %v4125
    %v4161 = vpop.f32.mrf.mxu0
    %v4162 = vadd.f32 %v4098, %v4161
    %v4163 = vpop.f32.mrf.mxu0
    %v4164 = vpop.f32.mrf.mxu0
    %v4165 = vadd.f32 %v4098, %v4164
    %v4166 = vpop.f32.mrf.mxu0
    %4167 = vdwg.mxu0
    %v4168 = vadd.f32 %v3966, %v4162
    %v4169 = vadd.f32 %v3967, %v4165
    %v4170 = vld [vmem:[%s18] sm:$0x1]
    %v4171 = vmul.f32 %v4168, %v4168
    %v4172 = vmul.f32 %v4169, %v4169
    %v4173 = vsel %vm146, %v4171, 0.0
    %4174 = vadd.xlane.f32.xlu0 %v4173
    %v4175 = vpop.xlane.xlu0 %4174
    %v4176 = vsel %vm146, %v4172, 0.0
    %4177 = vadd.xlane.f32.xlu0 %v4176
    %v4178 = vpop.xlane.xlu0 %4177
    %v4179 = vmul.f32 %v4175, %v153
    %v4180 = vmul.f32 %v4178, %v153
    %v4181 = vadd.f32 %v4179, 1e-05
    %v4182 = vadd.f32 %v4180, 1e-05
    %v4183 = vrsqrt.pop %v4181
    %v4184 = vrsqrt.pop %v4182
    %v4185 = vmul.f32 %v4168, %v4183
    %v4186 = vmul.f32 %v4169, %v4184
    %v4188 = vlaneseq
    %v4189 = vshrl.u32 %v4188, 7
    %v4190 = vsub.s32 0, %v4189
    %v4191 = vrot.slane %v4170, %v4190
    %v4193 = vmul.f32 %v4185, %v4191
    %v4194 = vmul.f32 %v4186, %v4191
    %v4195 = vld [vmem:[%s19] sm:$0x1]
    %v4197 = vlaneseq
    %v4198 = vshrl.u32 %v4197, 7
    %v4199 = vsub.s32 0, %v4198
    %v4200 = vrot.slane %v4195, %v4199
    %v4202 = vmul.f32 %v4193, %v4200
    %v4203 = vmul.f32 %v4194, %v4200
    %v4204 = vsel %vm146, %v4202, 0.0
    %4205 = vadd.xlane.f32.xlu0 %v4204
    %v4206 = vpop.xlane.xlu0 %4205
    %v4207 = vsel %vm146, %v4203, 0.0
    %4208 = vadd.xlane.f32.xlu0 %v4207
    %v4209 = vpop.xlane.xlu0 %4208
    %v4210 = vld [vmem:[#allocation2] sm:$0x1]
    %v4212 = vlaneseq
    %v4213 = vshrl.u32 %v4212, 7
    %v4214 = vsub.s32 0, %v4213
    %v4215 = vrot.slane %v4210, %v4214
    %v4217 = vadd.f32 %v4206, %v4215
    %v4218 = vadd.f32 %v4209, %v4215
    %vm4219 = vcmask 7168
    %v4220 = vsel %vm4219, %v4217, -inf
    %v4221 = vrot.slane %v4220, 4
    %v4222 = vmax.f32 %v4220, %v4221
    %v4223 = vrot.slane %v4222, 2
    %v4224 = vmax.f32 %v4222, %v4223
    %v4225 = vrot.slane %v4224, 1
    %v4226 = vmax.f32 %v4224, %v4225
    %v4227 = vsel %vm4219, %v4218, -inf
    %v4228 = vrot.slane %v4227, 4
    %v4229 = vmax.f32 %v4227, %v4228
    %v4230 = vrot.slane %v4229, 2
    %v4231 = vmax.f32 %v4229, %v4230
    %v4232 = vrot.slane %v4231, 1
    %v4233 = vmax.f32 %v4231, %v4232
    %v4234 = vsub.f32 %v4217, %v4226
    %v4235 = vsub.f32 %v4218, %v4233
    %v4236 = vmul.f32 %v4234, 1.442695
    %v4237 = vpow.pop %v4236
    %v4238 = vmul.f32 %v4235, 1.442695
    %v4239 = vpow.pop %v4238
    %v4240 = vsel %vm4219, %v4237, 0.0
    %v4241 = vrot.slane %v4240, 4
    %v4242 = vadd.f32 %v4240, %v4241
    %v4243 = vrot.slane %v4242, 2
    %v4244 = vadd.f32 %v4242, %v4243
    %v4245 = vrot.slane %v4244, 1
    %v4246 = vadd.f32 %v4244, %v4245
    %v4247 = vsel %vm4219, %v4239, 0.0
    %v4248 = vrot.slane %v4247, 4
    %v4249 = vadd.f32 %v4247, %v4248
    %v4250 = vrot.slane %v4249, 2
    %v4251 = vadd.f32 %v4249, %v4250
    %v4252 = vrot.slane %v4251, 1
    %v4253 = vadd.f32 %v4251, %v4252
    %v4254 = vrcp.pop %v4246
    %v4255 = vrcp.pop %v4253
    %v4256 = vmul.f32 %v4237, %v4254
    %v4257 = vmul.f32 %v4239, %v4255
    %4259 = vset.pattern.permute.xlu0 0
    %4260 = vperm.xlu0 %4259, %v4256
    %v4261 = vpop.permute.xlu0 %4260
    %4264 = vset.pattern.permute.xlu0 0
    %4265 = vperm.xlu0 %4264, %v4257
    %v4266 = vpop.permute.xlu0 %4265
    %v4268 = vmul.f32 %v4261, %v4193
    %v4269 = vmul.f32 %v4266, %v4194
    %v4270 = vsel %vm146, %v4268, 0.0
    %v4271 = vrot.slane %v4270, 4
    %v4272 = vadd.f32 %v4270, %v4271
    %v4273 = vrot.slane %v4272, 2
    %v4274 = vadd.f32 %v4272, %v4273
    %v4275 = vrot.slane %v4274, 1
    %v4276 = vadd.f32 %v4274, %v4275
    %v4277 = vsel %vm146, %v4269, 0.0
    %v4278 = vrot.slane %v4277, 4
    %v4279 = vadd.f32 %v4277, %v4278
    %v4280 = vrot.slane %v4279, 2
    %v4281 = vadd.f32 %v4279, %v4280
    %v4282 = vrot.slane %v4281, 1
    %v4283 = vadd.f32 %v4281, %v4282
    %v4284 = vpack.c.bf16 %v4276, %v4276
    %v4285 = vpack.c.bf16 %v4283, %v4283
    %v4286 = vld [vmem:[%s21] sm:$0xf]
    %v4287 = vld [vmem:[%s21 + $0x4] sm:$0xf]
    %v4288 = vld [vmem:[%s21 + $0x8] sm:$0xf]
    %v4289 = vld [vmem:[%s21 + $0xc] sm:$0xf]
    %v4292 = vunpack.c.l.b16 %v4284
    %v4293 = vunpack.c.l.b16 %v4285
    %vm4294 = vcmask 1041409
    %v4295 = vsel %vm4294, %v4293, %v4292
    %v4296 = vpack.c.b16 %v4295, %v4295
    %v4301 = vunpack.c.l.b16 %v4286
    %v4302 = vunpack.c.l.b16 %v4287
    %v4303 = vunpack.c.l.b16 %v4288
    %v4304 = vunpack.c.l.b16 %v4289
    %v4305 = vpack.c.b16 %v4302, %v4301
    %v4306 = vpack.c.b16 %v4304, %v4303
    %v4310 = vsel %vm146, %v4296, 0
    %4312 = vmatprep.subr.bf16.mxu0 0
    %4313 = vmatpush1.bf16.msra.mxu0 0
    %4314 = vmatprep.subr.bf16.mxu0 0
    %4315 = vmatpush1.bf16.msra.mxu0 0
    %4316 = vmatprep.subr.bf16.mxu0 0
    %4317 = vmatpush1.bf16.msra.mxu0 0
    %4318 = vmatprep.subr.bf16.mxu0 0
    %4319 = vmatpush1.bf16.msra.mxu0 0
    %4320 = vmatprep.subr.bf16.mxu0 0
    %4321 = vmatpush1.bf16.msra.mxu0 0
    %4322 = vmatprep.subr.bf16.mxu0 0
    %4323 = vmatpush1.bf16.msra.mxu0 0
    %4324 = vmatprep.subr.bf16.mxu0 0
    %4325 = vmatpush1.bf16.msra.mxu0 %v4306
    %4326 = vmatprep.subr.bf16.mxu0 0
    %4327 = vmatpush1.bf16.msra.mxu0 %v4305
    %4328 = vmatprep.subr.bf16.mxu0 0
    %4329 = vmatpush2.bf16.msra.mxu0 0
    %4330 = vmatprep.subr.bf16.mxu0 0
    %4331 = vmatpush2.bf16.msra.mxu0 0
    %4332 = vmatprep.subr.bf16.mxu0 0
    %4333 = vmatpush2.bf16.msra.mxu0 0
    %4334 = vmatprep.subr.bf16.mxu0 0
    %4335 = vmatpush2.bf16.msra.mxu0 0
    %4336 = vmatprep.subr.bf16.mxu0 0
    %4337 = vmatpush2.bf16.msra.mxu0 0
    %4338 = vmatprep.subr.bf16.mxu0 0
    %4339 = vmatpush2.bf16.msra.mxu0 0
    %4340 = vmatprep.subr.bf16.mxu0 0
    %4341 = vmatpush2.bf16.msra.mxu0 0
    %4342 = vmatprep.subr.bf16.mxu0 0
    %4343 = vmatpush2.bf16.msra.mxu0 0
    %4344 = vmatprep.mubr.bf16.mxu0 0
    %4345 = vmatmul.mubr.bf16.gmra.mxu0 %v4310
    %v4346 = vpop.f32.mrf.mxu0
    %v4347 = vadd.f32 0.0, %v4346
    %v4348 = vpop.f32.mrf.mxu0
    %v4349 = vpop.f32.mrf.mxu0
    %v4350 = vpop.f32.mrf.mxu0
    %4351 = vdwg.mxu0
    %vm4352 = vcmask 41984
    %4353 = vst.msk [vmem:[#allocation3] sm:$0x3] %vm4352, %v4347
    // Predicated region
    $region90: #{tpu_custom_call.1} parent=1 // pred_check
      _
    $region91: #{tpu_custom_call.1} parent=1 // pred_check_branch
      %4355 = sbr.rel (0) target = $region93
    $region92: #{tpu_custom_call.1} parent=1 // pred_region
      %s4357 = ssub.s32 32, 32
      %4358 = vsyncadd [#allocation4], %s4357
      %s4360 = sshll.u32 [#allocation3], 4
      %s4361 = int_to_ptr.vmem [resolvable:$true] %s4360
      %4363 = dma.vmem_to_hbm [thread:$0]  %s4361, 32, %s22, [#allocation4]
    $region93: #{tpu_custom_call.1} parent=1 // pred_fallthru
      _
    // Predicated region
    $region94: #{tpu_custom_call.1} parent=1 // pred_check
      _
    $region95: #{tpu_custom_call.1} parent=1 // pred_check_branch
      %4365 = sbr.rel (0) target = $region97
    $region96: #{tpu_custom_call.1} parent=1 // pred_region
      %4366 = dma.done [#allocation4], 32
    $region97: #{tpu_custom_call.1} parent=1 // pred_fallthru
      _
    %4367 = vsyncpa [#allocation4], 1

</llo_original>
